<compile_context>
chip_gen: v5e
topology: v5e:2x2
jax: 0.10.0
libtpu: 0.0.40
codegen_flags: <defaults>
</compile_context>

<pallas_src>
import jax
import jax.numpy as jnp
from jax.experimental import pallas as pl
from jax.experimental.pallas import tpu as pltpu

# ----------------------------- model config ---------------------------------
VOCAB = 65          # len(CODON_INDICES) + 1  (64 codons + 1)
HIDDEN = 24         # hidden_dim
CAI_SIZE = 4        # len(CAI_TEMPLATE)
NHEAD = 2
NUM_LAYERS = 2
D_FF = 2048         # nn.TransformerDecoderLayer default dim_feedforward
MAX_SEQ_LEN = 64    # shrunk from 1300 for the small example
D_MODEL = HIDDEN + CAI_SIZE * NHEAD   # transformer_input_dim = 32
D_HEAD = D_MODEL // NHEAD             # 16
LN_EPS = 1e-5
VOCAB_PAD = 128                       # lane-dense logits width (sliced to VOCAB)


# ------------------------------ fused kernel ---------------------------------
def _layer_norm(v, g, b):
    mu = jnp.mean(v, axis=-1, keepdims=True)
    var = jnp.mean((v - mu) ** 2, axis=-1, keepdims=True)
    return (v - mu) * jax.lax.rsqrt(var + LN_EPS) * g + b


def _rnaformer_kernel(
    x_ref, cai_ref, mem_ref,
    wq_ref, wk_ref, wv_ref, bq_ref, bk_ref, bv_ref, wo_ref, bo_ref,
    cw_ref, cb_ref,
    ln1g_ref, ln1b_ref, ln2g_ref, ln2b_ref, ln3g_ref, ln3b_ref,
    w1_ref, b1_ref, w2_ref, b2_ref,
    flng_ref, flnb_ref, wout_ref, bout_ref,
    o_ref,
):
    bt, s, _ = x_ref.shape
    rows = bt * s
    scale = 1.0 / (D_HEAD ** 0.5)

    # Transformer input: embedding(+pos-enc) occupies lanes [0, HIDDEN); the CAI block
    # lives in lanes [HIDDEN, D_MODEL) of cai_ref and is broadcast over the sequence
    # (replaces the wrapper-side tile+concat through HBM).  Rows are flattened so the
    # QKV / FFN / logits matmuls see Bt*S rows per MXU pass.
    x = (x_ref[...] + cai_ref[...]).reshape(rows, D_MODEL)
    # Per-element CAI memory row broadcast over the sequence (hoisted out of the loop).
    mem_rows = jnp.broadcast_to(mem_ref[...], (bt, s, D_MODEL)).reshape(rows, D_MODEL)

    for l in range(NUM_LAYERS):                       # static unroll over layers
        # -------- self-attention: per-head projections (no lane slicing) --------
        sa = bo_ref[l]                                # (1, D_MODEL) out-proj bias
        for h in range(NHEAD):
            q = jnp.dot(x, wq_ref[l, h], preferred_element_type=jnp.float32) + bq_ref[l, h]
            k = jnp.dot(x, wk_ref[l, h], preferred_element_type=jnp.float32) + bk_ref[l, h]
            v = jnp.dot(x, wv_ref[l, h], preferred_element_type=jnp.float32) + bv_ref[l, h]
            q3 = q.reshape(bt, s, D_HEAD)
            k3 = k.reshape(bt, s, D_HEAD)
            v3 = v.reshape(bt, s, D_HEAD)
            sc = jnp.einsum("bqd,bkd->bqk", q3, k3,
                            preferred_element_type=jnp.float32) * scale
            # TODO(synk): no tgt_mask (matches forward() default); causal masking for
            #             step() and flash-style KV tiling for S=1300 not implemented.
            m = jnp.max(sc, axis=-1, keepdims=True)
            p = jnp.exp(sc - m)
            p = p / jnp.sum(p, axis=-1, keepdims=True)
            attn = jnp.einsum("bqk,bkd->bqd", p, v3,
                              preferred_element_type=jnp.float32)   # (bt, s, D_HEAD)
            # per-head partial output projection == concat(heads) @ W_o
            sa = sa + jnp.dot(attn.reshape(rows, D_HEAD), wo_ref[l, h],
                              preferred_element_type=jnp.float32)
        x = _layer_norm(x + sa, ln1g_ref[l], ln1b_ref[l])

        # -------- cross-attention vs. identical CAI memory rows (exact) --------
        # All memory rows are identical per batch element -> softmax(QK^T) is uniform
        # -> output = out_proj(V(mem_row)); V and out_proj are pre-fused into cw/cb.
        ca = jnp.dot(mem_rows, cw_ref[l], preferred_element_type=jnp.float32) + cb_ref[l]
        x = _layer_norm(x + ca, ln2g_ref[l], ln2b_ref[l])

        # -------------------------- feed-forward (ReLU) --------------------------
        h1 = jnp.dot(x, w1_ref[l], preferred_element_type=jnp.float32) + b1_ref[l]
        h1 = jnp.maximum(h1, 0.0)
        f = jnp.dot(h1, w2_ref[l], preferred_element_type=jnp.float32) + b2_ref[l]
        x = _layer_norm(x + f, ln3g_ref[l], ln3b_ref[l])

    # Final decoder LayerNorm, then ONE fused (proj @ emb^T) matmul straight to
    # 128-lane-padded logits (unmasked, lane-dense stores).
    x = _layer_norm(x, flng_ref[...], flnb_ref[...])
    logits = jnp.dot(x, wout_ref[...], preferred_element_type=jnp.float32) + bout_ref[...]
    o_ref[...] = logits.reshape(bt, s, VOCAB_PAD)


# ------------------------------ glue / params --------------------------------
def make_pos_encoding(max_seq_len, hidden_dim):
    position = jnp.arange(max_seq_len, dtype=jnp.float32)[:, None]
    _2i = jnp.arange(0, hidden_dim, 2, dtype=jnp.float32)
    angle = position / (10000.0 ** (_2i / hidden_dim))
    pe = jnp.zeros((max_seq_len, hidden_dim), jnp.float32)
    pe = pe.at[:, 0::2].set(jnp.sin(angle))
    pe = pe.at[:, 1::2].set(jnp.cos(angle))
    return pe


def init_params(key):
    keys = iter(jax.random.split(key, 32))

    def dense(shape):
        return jax.random.normal(next(keys), shape, jnp.float32) * 0.02

    L, H = NUM_LAYERS, NHEAD
    emb = dense((VOCAB, HIDDEN))
    pos = make_pos_encoding(MAX_SEQ_LEN, HIDDEN)

    # Cross-attention fusion: only the value / out-proj path can influence the output
    # (memory rows identical per batch element), so fold them at init.
    cwv, cbv = dense((L, D_MODEL, D_MODEL)), jnp.zeros((L, 1, D_MODEL), jnp.float32)
    cwo, cbo = dense((L, D_MODEL, D_MODEL)), jnp.zeros((L, 1, D_MODEL), jnp.float32)
    cw = jnp.einsum("lij,ljk->lik", cwv, cwo)
    cb = jnp.einsum("lij,ljk->lik", cbv, cwo) + cbo

    # Final projection folded into the tied-embedding logits matmul (both linear),
    # padded to 128 lanes for unmasked stores.
    proj_w, proj_b = dense((D_MODEL, HIDDEN)), jnp.zeros((1, HIDDEN), jnp.float32)
    emb_t_pad = jnp.pad(emb.T, ((0, 0), (0, VOCAB_PAD - VOCAB)))
    wout = proj_w @ emb_t_pad            # (D_MODEL, VOCAB_PAD)
    bout = proj_b @ emb_t_pad            # (1, VOCAB_PAD)

    return {
        # embedding / pos-enc zero-padded to D_MODEL lanes: no per-token CAI
        # concat / broadcast materialised in HBM.
        "emb_pad": jnp.pad(emb, ((0, 0), (0, D_MODEL - HIDDEN))),
        "pos_enc_pad": jnp.pad(pos, ((0, 0), (0, D_MODEL - HIDDEN))),
        # self-attention: per-head weights (avoids 16-lane slicing in-kernel)
        "wq": dense((L, H, D_MODEL, D_HEAD)),
        "wk": dense((L, H, D_MODEL, D_HEAD)),
        "wv": dense((L, H, D_MODEL, D_HEAD)),
        "bq": jnp.zeros((L, H, 1, D_HEAD), jnp.float32),
        "bk": jnp.zeros((L, H, 1, D_HEAD), jnp.float32),
        "bv": jnp.zeros((L, H, 1, D_HEAD), jnp.float32),
        "wo": dense((L, H, D_HEAD, D_MODEL)),
        "bo": jnp.zeros((L, 1, D_MODEL), jnp.float32),
        # fused cross-attention
        "cw": cw, "cb": cb,
        # layer norms
        "ln1_g": jnp.ones((L, 1, D_MODEL), jnp.float32),
        "ln1_b": jnp.zeros((L, 1, D_MODEL), jnp.float32),
        "ln2_g": jnp.ones((L, 1, D_MODEL), jnp.float32),
        "ln2_b": jnp.zeros((L, 1, D_MODEL), jnp.float32),
        "ln3_g": jnp.ones((L, 1, D_MODEL), jnp.float32),
        "ln3_b": jnp.zeros((L, 1, D_MODEL), jnp.float32),
        # feed-forward
        "w1": dense((L, D_MODEL, D_FF)),
        "b1": jnp.zeros((L, 1, D_FF), jnp.float32),
        "w2": dense((L, D_FF, D_MODEL)),
        "b2": jnp.zeros((L, 1, D_MODEL), jnp.float32),
        # final decoder LN + fused proj->logits weight
        "fln_g": jnp.ones((1, D_MODEL), jnp.float32),
        "fln_b": jnp.zeros((1, D_MODEL), jnp.float32),
        "wout": wout, "bout": bout,
    }


def _pick_batch_tile(B, S):
    """Rows per grid step: fill the MXU / amortise step overhead, but bound the f32
    (rows, D_FF) ReLU intermediate (v7x 64-MiB VMEM) and keep >=2 parallel grid
    blocks when the batch allows (v7x has 2 TensorCores)."""
    target_rows = 256
    max_ffn_rows = 1024          # ~8 MiB f32 at D_FF=2048
    bt = max(1, min(B, target_rows // S if S <= target_rows else 1))
    bt = min(bt, max(1, max_ffn_rows // S))
    while bt > 1 and pl.cdiv(B, bt) < 2:
        bt //= 2
    while B % bt:
        bt -= 1
    return bt


# ------------------------------ full forward ----------------------------------
def rnaformer_forward(params, tokens, cai):
    """tokens: (B, S) int32, cai: (B, CAI_SIZE) float32 -> logits (B, S, VOCAB)."""
    B, S = tokens.shape
    assert S % 8 == 0, "in-kernel row flattening assumes sublane-aligned S"

    # embedding + positional encoding (already padded to D_MODEL lanes) -- tiny XLA glue
    x = jnp.take(params["emb_pad"], tokens, axis=0) + params["pos_enc_pad"][None, :S, :]

    # Tiny (B, 1, D_MODEL) rows: CAI replicated into the last CAI*NHEAD lanes
    # (input-concat replacement) and CAI tiled across all lanes (decoder memory row).
    cai_cat = jnp.concatenate(
        [jnp.zeros((B, HIDDEN), cai.dtype), jnp.tile(cai, (1, NHEAD))], axis=-1)[:, None, :]
    mem = jnp.tile(cai, (1, D_MODEL // CAI_SIZE))[:, None, :]

    Bt = _pick_batch_tile(B, S)
    grid = (B // Bt,)
    L = NUM_LAYERS

    batch3 = lambda b: (b, 0, 0)
    w2d = lambda b: (0, 0)
    w3d = lambda b: (0, 0, 0)
    w4d = lambda b: (0, 0, 0, 0)

    in_specs = [
        pl.BlockSpec((Bt, S, D_MODEL), batch3),             # x (emb + pos, lane-padded)
        pl.BlockSpec((Bt, 1, D_MODEL), batch3),             # CAI lanes row
        pl.BlockSpec((Bt, 1, D_MODEL), batch3),             # CAI memory row
        pl.BlockSpec((L, NHEAD, D_MODEL, D_HEAD), w4d),     # wq
        pl.BlockSpec((L, NHEAD, D_MODEL, D_HEAD), w4d),     # wk
        pl.BlockSpec((L, NHEAD, D_MODEL, D_HEAD), w4d),     # wv
        pl.BlockSpec((L, NHEAD, 1, D_HEAD), w4d),           # bq
        pl.BlockSpec((L, NHEAD, 1, D_HEAD), w4d),           # bk
        pl.BlockSpec((L, NHEAD, 1, D_HEAD), w4d),           # bv
        pl.BlockSpec((L, NHEAD, D_HEAD, D_MODEL), w4d),     # wo
        pl.BlockSpec((L, 1, D_MODEL), w3d),                 # bo
        pl.BlockSpec((L, D_MODEL, D_MODEL), w3d),           # cw (fused V@O)
        pl.BlockSpec((L, 1, D_MODEL), w3d),                 # cb
        pl.BlockSpec((L, 1, D_MODEL), w3d),                 # ln1_g
        pl.BlockSpec((L, 1, D_MODEL), w3d),                 # ln1_b
        pl.BlockSpec((L, 1, D_MODEL), w3d),                 # ln2_g
        pl.BlockSpec((L, 1, D_MODEL), w3d),                 # ln2_b
        pl.BlockSpec((L, 1, D_MODEL), w3d),                 # ln3_g
        pl.BlockSpec((L, 1, D_MODEL), w3d),                 # ln3_b
        pl.BlockSpec((L, D_MODEL, D_FF), w3d),              # w1
        pl.BlockSpec((L, 1, D_FF), w3d),                    # b1
        pl.BlockSpec((L, D_FF, D_MODEL), w3d),              # w2
        pl.BlockSpec((L, 1, D_MODEL), w3d),                 # b2
        pl.BlockSpec((1, D_MODEL), w2d),                    # fln_g
        pl.BlockSpec((1, D_MODEL), w2d),                    # fln_b
        pl.BlockSpec((D_MODEL, VOCAB_PAD), w2d),            # wout (proj @ emb^T, padded)
        pl.BlockSpec((1, VOCAB_PAD), w2d),                  # bout
    ]

    logits_pad = pl.pallas_call(
        _rnaformer_kernel,
        out_shape=jax.ShapeDtypeStruct((B, S, VOCAB_PAD), jnp.float32),
        grid=grid,
        in_specs=in_specs,
        out_specs=pl.BlockSpec((Bt, S, VOCAB_PAD), batch3),
        compiler_params=pltpu.CompilerParams(
            dimension_semantics=("parallel",)),              # v7x: shard batch over 2 TCs
    )(
        x, cai_cat, mem,
        params["wq"], params["wk"], params["wv"],
        params["bq"], params["bk"], params["bv"],
        params["wo"], params["bo"],
        params["cw"], params["cb"],
        params["ln1_g"], params["ln1_b"], params["ln2_g"], params["ln2_b"],
        params["ln3_g"], params["ln3_b"],
        params["w1"], params["b1"], params["w2"], params["b2"],
        params["fln_g"], params["fln_b"], params["wout"], params["bout"],
    )
    return logits_pad[:, :, :VOCAB]


# ---------------------------------- main ---------------------------------------
if __name__ == "__main__":
    key = jax.random.PRNGKey(0)
    k_param, k_tok, k_cai = jax.random.split(key, 3)

    params = init_params(k_param)

    B, S = 2, 8
    tokens = jax.random.randint(k_tok, (B, S), 0, VOCAB, dtype=jnp.int32)
    cai = jax.random.uniform(k_cai, (B, CAI_SIZE), dtype=jnp.float32)

    fwd = jax.jit(rnaformer_forward)
    out = jax.block_until_ready(fwd(params, tokens, cai))

    assert out.shape == (B, S, VOCAB), out.shape
    assert bool(jnp.all(jnp.isfinite(out)))
    print("KERNEL_OK")
</pallas_src>

<mosaic_0001>
module attributes {stable_mosaic.version = 11 : i64} {
  func.func @_rnaformer_kernel(%arg0: i32, %arg1: memref<1x8x32xf32, #tpu.memory_space<vmem>>, %arg2: memref<1x1x32xf32, #tpu.memory_space<vmem>>, %arg3: memref<1x1x32xf32, #tpu.memory_space<vmem>>, %arg4: memref<2x2x32x16xf32, #tpu.memory_space<vmem>>, %arg5: memref<2x2x32x16xf32, #tpu.memory_space<vmem>>, %arg6: memref<2x2x32x16xf32, #tpu.memory_space<vmem>>, %arg7: memref<2x2x1x16xf32, #tpu.memory_space<vmem>>, %arg8: memref<2x2x1x16xf32, #tpu.memory_space<vmem>>, %arg9: memref<2x2x1x16xf32, #tpu.memory_space<vmem>>, %arg10: memref<2x2x16x32xf32, #tpu.memory_space<vmem>>, %arg11: memref<2x1x32xf32, #tpu.memory_space<vmem>>, %arg12: memref<2x32x32xf32, #tpu.memory_space<vmem>>, %arg13: memref<2x1x32xf32, #tpu.memory_space<vmem>>, %arg14: memref<2x1x32xf32, #tpu.memory_space<vmem>>, %arg15: memref<2x1x32xf32, #tpu.memory_space<vmem>>, %arg16: memref<2x1x32xf32, #tpu.memory_space<vmem>>, %arg17: memref<2x1x32xf32, #tpu.memory_space<vmem>>, %arg18: memref<2x1x32xf32, #tpu.memory_space<vmem>>, %arg19: memref<2x1x32xf32, #tpu.memory_space<vmem>>, %arg20: memref<2x32x2048xf32, #tpu.memory_space<vmem>>, %arg21: memref<2x1x2048xf32, #tpu.memory_space<vmem>>, %arg22: memref<2x2048x32xf32, #tpu.memory_space<vmem>>, %arg23: memref<2x1x32xf32, #tpu.memory_space<vmem>>, %arg24: memref<1x32xf32, #tpu.memory_space<vmem>>, %arg25: memref<1x32xf32, #tpu.memory_space<vmem>>, %arg26: memref<32x128xf32, #tpu.memory_space<vmem>>, %arg27: memref<1x128xf32, #tpu.memory_space<vmem>>, %arg28: memref<1x8x128xf32, #tpu.memory_space<vmem>>) attributes {dimension_semantics = [#tpu.dimension_semantics<parallel>], iteration_bounds = array<i64: 2>, scalar_prefetch = 0 : i64, scratch_operands = 0 : i64, tpu.core_type = #tpu.core_type<tc>, window_params = [{transform_indices = @transform_0, window_bounds = array<i64: 1, 8, 32>}, {transform_indices = @transform_1, window_bounds = array<i64: 1, 1, 32>}, {transform_indices = @transform_2, window_bounds = array<i64: 1, 1, 32>}, {pipeline_mode = #tpu.pipeline_mode<synchronous>, transform_indices = @transform_3, window_bounds = array<i64: 2, 2, 32, 16>}, {pipeline_mode = #tpu.pipeline_mode<synchronous>, transform_indices = @transform_4, window_bounds = array<i64: 2, 2, 32, 16>}, {pipeline_mode = #tpu.pipeline_mode<synchronous>, transform_indices = @transform_5, window_bounds = array<i64: 2, 2, 32, 16>}, {pipeline_mode = #tpu.pipeline_mode<synchronous>, transform_indices = @transform_6, window_bounds = array<i64: 2, 2, 1, 16>}, {pipeline_mode = #tpu.pipeline_mode<synchronous>, transform_indices = @transform_7, window_bounds = array<i64: 2, 2, 1, 16>}, {pipeline_mode = #tpu.pipeline_mode<synchronous>, transform_indices = @transform_8, window_bounds = array<i64: 2, 2, 1, 16>}, {pipeline_mode = #tpu.pipeline_mode<synchronous>, transform_indices = @transform_9, window_bounds = array<i64: 2, 2, 16, 32>}, {pipeline_mode = #tpu.pipeline_mode<synchronous>, transform_indices = @transform_10, window_bounds = array<i64: 2, 1, 32>}, {pipeline_mode = #tpu.pipeline_mode<synchronous>, transform_indices = @transform_11, window_bounds = array<i64: 2, 32, 32>}, {pipeline_mode = #tpu.pipeline_mode<synchronous>, transform_indices = @transform_12, window_bounds = array<i64: 2, 1, 32>}, {pipeline_mode = #tpu.pipeline_mode<synchronous>, transform_indices = @transform_13, window_bounds = array<i64: 2, 1, 32>}, {pipeline_mode = #tpu.pipeline_mode<synchronous>, transform_indices = @transform_14, window_bounds = array<i64: 2, 1, 32>}, {pipeline_mode = #tpu.pipeline_mode<synchronous>, transform_indices = @transform_15, window_bounds = array<i64: 2, 1, 32>}, {pipeline_mode = #tpu.pipeline_mode<synchronous>, transform_indices = @transform_16, window_bounds = array<i64: 2, 1, 32>}, {pipeline_mode = #tpu.pipeline_mode<synchronous>, transform_indices = @transform_17, window_bounds = array<i64: 2, 1, 32>}, {pipeline_mode = #tpu.pipeline_mode<synchronous>, transform_indices = @transform_18, window_bounds = array<i64: 2, 1, 32>}, {pipeline_mode = #tpu.pipeline_mode<synchronous>, transform_indices = @transform_19, window_bounds = array<i64: 2, 32, 2048>}, {pipeline_mode = #tpu.pipeline_mode<synchronous>, transform_indices = @transform_20, window_bounds = array<i64: 2, 1, 2048>}, {pipeline_mode = #tpu.pipeline_mode<synchronous>, transform_indices = @transform_21, window_bounds = array<i64: 2, 2048, 32>}, {pipeline_mode = #tpu.pipeline_mode<synchronous>, transform_indices = @transform_22, window_bounds = array<i64: 2, 1, 32>}, {pipeline_mode = #tpu.pipeline_mode<synchronous>, transform_indices = @transform_23, window_bounds = array<i64: 1, 32>}, {pipeline_mode = #tpu.pipeline_mode<synchronous>, transform_indices = @transform_24, window_bounds = array<i64: 1, 32>}, {pipeline_mode = #tpu.pipeline_mode<synchronous>, transform_indices = @transform_25, window_bounds = array<i64: 32, 128>}, {pipeline_mode = #tpu.pipeline_mode<synchronous>, transform_indices = @transform_26, window_bounds = array<i64: 1, 128>}, {transform_indices = @transform_27, window_bounds = array<i64: 1, 8, 128>}]} {
    %c0 = arith.constant 0 : index
    %c0_0 = arith.constant 0 : index
    %c0_1 = arith.constant 0 : index
    %0 = vector.load %arg1[%c0, %c0_0, %c0_1] : memref<1x8x32xf32, #tpu.memory_space<vmem>>, vector<1x8x32xf32>
    %c0_2 = arith.constant 0 : index
    %c0_3 = arith.constant 0 : index
    %c0_4 = arith.constant 0 : index
    %1 = vector.load %arg2[%c0_2, %c0_3, %c0_4] : memref<1x1x32xf32, #tpu.memory_space<vmem>>, vector<1x1x32xf32>
    %2 = vector.broadcast %1 : vector<1x1x32xf32> to vector<1x8x32xf32>
    %3 = arith.addf %0, %2 : vector<1x8x32xf32>
    %4 = vector.shape_cast %3 : vector<1x8x32xf32> to vector<8x32xf32>
    %c0_5 = arith.constant 0 : index
    %c0_6 = arith.constant 0 : index
    %c0_7 = arith.constant 0 : index
    %5 = vector.load %arg3[%c0_5, %c0_6, %c0_7] : memref<1x1x32xf32, #tpu.memory_space<vmem>>, vector<1x1x32xf32>
    %6 = vector.shape_cast %5 : vector<1x1x32xf32> to vector<1x1x32xf32>
    %7 = vector.broadcast %6 : vector<1x1x32xf32> to vector<1x8x32xf32>
    %8 = vector.shape_cast %7 : vector<1x8x32xf32> to vector<8x32xf32>
    %c0_8 = arith.constant 0 : index
    %c0_9 = arith.constant 0 : index
    %c0_10 = arith.constant 0 : index
    %9 = vector.load %arg11[%c0_8, %c0_9, %c0_10] : memref<2x1x32xf32, #tpu.memory_space<vmem>>, vector<1x1x32xf32>
    %10 = vector.shape_cast %9 : vector<1x1x32xf32> to vector<1x32xf32>
    %c0_11 = arith.constant 0 : index
    %c0_12 = arith.constant 0 : index
    %c0_13 = arith.constant 0 : index
    %c0_14 = arith.constant 0 : index
    %11 = vector.load %arg4[%c0_11, %c0_12, %c0_13, %c0_14] : memref<2x2x32x16xf32, #tpu.memory_space<vmem>>, vector<1x1x32x16xf32>
    %12 = vector.shape_cast %11 : vector<1x1x32x16xf32> to vector<32x16xf32>
    %cst = arith.constant dense<0.000000e+00> : vector<8x16xf32>
    %13 = tpu.matmul %4, %12, %cst {dimension_numbers = #tpu.dot_dimension_numbers<[1], [0], [0], [1], [0, 0, 1, 1], [], []>} : vector<8x32xf32>, vector<32x16xf32>, vector<8x16xf32> -> vector<8x16xf32>
    %c0_15 = arith.constant 0 : index
    %c0_16 = arith.constant 0 : index
    %c0_17 = arith.constant 0 : index
    %c0_18 = arith.constant 0 : index
    %14 = vector.load %arg7[%c0_15, %c0_16, %c0_17, %c0_18] : memref<2x2x1x16xf32, #tpu.memory_space<vmem>>, vector<1x1x1x16xf32>
    %15 = vector.shape_cast %14 : vector<1x1x1x16xf32> to vector<1x16xf32>
    %16 = vector.broadcast %15 : vector<1x16xf32> to vector<8x16xf32>
    %17 = arith.addf %13, %16 : vector<8x16xf32>
    %c0_19 = arith.constant 0 : index
    %c0_20 = arith.constant 0 : index
    %c0_21 = arith.constant 0 : index
    %c0_22 = arith.constant 0 : index
    %18 = vector.load %arg5[%c0_19, %c0_20, %c0_21, %c0_22] : memref<2x2x32x16xf32, #tpu.memory_space<vmem>>, vector<1x1x32x16xf32>
    %19 = vector.shape_cast %18 : vector<1x1x32x16xf32> to vector<32x16xf32>
    %cst_23 = arith.constant dense<0.000000e+00> : vector<8x16xf32>
    %20 = tpu.matmul %4, %19, %cst_23 {dimension_numbers = #tpu.dot_dimension_numbers<[1], [0], [0], [1], [0, 0, 1, 1], [], []>} : vector<8x32xf32>, vector<32x16xf32>, vector<8x16xf32> -> vector<8x16xf32>
    %c0_24 = arith.constant 0 : index
    %c0_25 = arith.constant 0 : index
    %c0_26 = arith.constant 0 : index
    %c0_27 = arith.constant 0 : index
    %21 = vector.load %arg8[%c0_24, %c0_25, %c0_26, %c0_27] : memref<2x2x1x16xf32, #tpu.memory_space<vmem>>, vector<1x1x1x16xf32>
    %22 = vector.shape_cast %21 : vector<1x1x1x16xf32> to vector<1x16xf32>
    %23 = vector.broadcast %22 : vector<1x16xf32> to vector<8x16xf32>
    %24 = arith.addf %20, %23 : vector<8x16xf32>
    %c0_28 = arith.constant 0 : index
    %c0_29 = arith.constant 0 : index
    %c0_30 = arith.constant 0 : index
    %c0_31 = arith.constant 0 : index
    %25 = vector.load %arg6[%c0_28, %c0_29, %c0_30, %c0_31] : memref<2x2x32x16xf32, #tpu.memory_space<vmem>>, vector<1x1x32x16xf32>
    %26 = vector.shape_cast %25 : vector<1x1x32x16xf32> to vector<32x16xf32>
    %cst_32 = arith.constant dense<0.000000e+00> : vector<8x16xf32>
    %27 = tpu.matmul %4, %26, %cst_32 {dimension_numbers = #tpu.dot_dimension_numbers<[1], [0], [0], [1], [0, 0, 1, 1], [], []>} : vector<8x32xf32>, vector<32x16xf32>, vector<8x16xf32> -> vector<8x16xf32>
    %c0_33 = arith.constant 0 : index
    %c0_34 = arith.constant 0 : index
    %c0_35 = arith.constant 0 : index
    %c0_36 = arith.constant 0 : index
    %28 = vector.load %arg9[%c0_33, %c0_34, %c0_35, %c0_36] : memref<2x2x1x16xf32, #tpu.memory_space<vmem>>, vector<1x1x1x16xf32>
    %29 = vector.shape_cast %28 : vector<1x1x1x16xf32> to vector<1x16xf32>
    %30 = vector.broadcast %29 : vector<1x16xf32> to vector<8x16xf32>
    %31 = arith.addf %27, %30 : vector<8x16xf32>
    %32 = vector.shape_cast %17 : vector<8x16xf32> to vector<1x8x16xf32>
    %33 = vector.shape_cast %24 : vector<8x16xf32> to vector<1x8x16xf32>
    %34 = vector.shape_cast %31 : vector<8x16xf32> to vector<1x8x16xf32>
    "tpu.trace_start"() <{level = 10 : i32, message = "bqd,bkd->bqk"}> : () -> ()
    %cst_37 = arith.constant dense<0.000000e+00> : vector<1x8x8xf32>
    %35 = tpu.matmul %32, %33, %cst_37 {dimension_numbers = #tpu.dot_dimension_numbers<[2], [2], [1], [1], [0, 0, 0, 1, 1, 1], [0], [0]>} : vector<1x8x16xf32>, vector<1x8x16xf32>, vector<1x8x8xf32> -> vector<1x8x8xf32>
    "tpu.trace_stop"() : () -> ()
    %cst_38 = arith.constant 2.500000e-01 : f32
    %36 = vector.broadcast %cst_38 : f32 to vector<1x8x8xf32>
    %37 = arith.mulf %35, %36 : vector<1x8x8xf32>
    %cst_39 = arith.constant dense<0xFF800000> : vector<1x8xf32>
    %38 = vector.multi_reduction <maximumf>, %37, %cst_39 [2] : vector<1x8x8xf32> to vector<1x8xf32>
    %39 = vector.shape_cast %38 : vector<1x8xf32> to vector<1x8x1xf32>
    %40 = vector.broadcast %39 : vector<1x8x1xf32> to vector<1x8x8xf32>
    %41 = arith.subf %37, %40 : vector<1x8x8xf32>
    %42 = math.exp %41 : vector<1x8x8xf32>
    %cst_40 = arith.constant dense<0.000000e+00> : vector<1x8xf32>
    %43 = vector.multi_reduction <add>, %42, %cst_40 [2] : vector<1x8x8xf32> to vector<1x8xf32>
    %44 = vector.shape_cast %43 : vector<1x8xf32> to vector<1x8x1xf32>
    %45 = vector.broadcast %44 : vector<1x8x1xf32> to vector<1x8x8xf32>
    %46 = arith.divf %42, %45 : vector<1x8x8xf32>
    "tpu.trace_start"() <{level = 10 : i32, message = "bqk,bkd->bqd"}> : () -> ()
    %cst_41 = arith.constant dense<0.000000e+00> : vector<1x8x16xf32>
    %47 = tpu.matmul %46, %34, %cst_41 {dimension_numbers = #tpu.dot_dimension_numbers<[2], [1], [1], [2], [0, 0, 0, 1, 1, 2], [0], [0]>} : vector<1x8x8xf32>, vector<1x8x16xf32>, vector<1x8x16xf32> -> vector<1x8x16xf32>
    "tpu.trace_stop"() : () -> ()
    %48 = vector.shape_cast %47 : vector<1x8x16xf32> to vector<8x16xf32>
    %c0_42 = arith.constant 0 : index
    %c0_43 = arith.constant 0 : index
    %c0_44 = arith.constant 0 : index
    %c0_45 = arith.constant 0 : index
    %49 = vector.load %arg10[%c0_42, %c0_43, %c0_44, %c0_45] : memref<2x2x16x32xf32, #tpu.memory_space<vmem>>, vector<1x1x16x32xf32>
    %50 = vector.shape_cast %49 : vector<1x1x16x32xf32> to vector<16x32xf32>
    %cst_46 = arith.constant dense<0.000000e+00> : vector<8x32xf32>
    %51 = tpu.matmul %48, %50, %cst_46 {dimension_numbers = #tpu.dot_dimension_numbers<[1], [0], [0], [1], [0, 0, 1, 1], [], []>} : vector<8x16xf32>, vector<16x32xf32>, vector<8x32xf32> -> vector<8x32xf32>
    %52 = vector.broadcast %10 : vector<1x32xf32> to vector<8x32xf32>
    %53 = arith.addf %52, %51 : vector<8x32xf32>
    %c0_47 = arith.constant 0 : index
    %c1 = arith.constant 1 : index
    %c0_48 = arith.constant 0 : index
    %c0_49 = arith.constant 0 : index
    %54 = vector.load %arg4[%c0_47, %c1, %c0_48, %c0_49] : memref<2x2x32x16xf32, #tpu.memory_space<vmem>>, vector<1x1x32x16xf32>
    %55 = vector.shape_cast %54 : vector<1x1x32x16xf32> to vector<32x16xf32>
    %cst_50 = arith.constant dense<0.000000e+00> : vector<8x16xf32>
    %56 = tpu.matmul %4, %55, %cst_50 {dimension_numbers = #tpu.dot_dimension_numbers<[1], [0], [0], [1], [0, 0, 1, 1], [], []>} : vector<8x32xf32>, vector<32x16xf32>, vector<8x16xf32> -> vector<8x16xf32>
    %c0_51 = arith.constant 0 : index
    %c1_52 = arith.constant 1 : index
    %c0_53 = arith.constant 0 : index
    %c0_54 = arith.constant 0 : index
    %57 = vector.load %arg7[%c0_51, %c1_52, %c0_53, %c0_54] : memref<2x2x1x16xf32, #tpu.memory_space<vmem>>, vector<1x1x1x16xf32>
    %58 = vector.shape_cast %57 : vector<1x1x1x16xf32> to vector<1x16xf32>
    %59 = vector.broadcast %58 : vector<1x16xf32> to vector<8x16xf32>
    %60 = arith.addf %56, %59 : vector<8x16xf32>
    %c0_55 = arith.constant 0 : index
    %c1_56 = arith.constant 1 : index
    %c0_57 = arith.constant 0 : index
    %c0_58 = arith.constant 0 : index
    %61 = vector.load %arg5[%c0_55, %c1_56, %c0_57, %c0_58] : memref<2x2x32x16xf32, #tpu.memory_space<vmem>>, vector<1x1x32x16xf32>
    %62 = vector.shape_cast %61 : vector<1x1x32x16xf32> to vector<32x16xf32>
    %cst_59 = arith.constant dense<0.000000e+00> : vector<8x16xf32>
    %63 = tpu.matmul %4, %62, %cst_59 {dimension_numbers = #tpu.dot_dimension_numbers<[1], [0], [0], [1], [0, 0, 1, 1], [], []>} : vector<8x32xf32>, vector<32x16xf32>, vector<8x16xf32> -> vector<8x16xf32>
    %c0_60 = arith.constant 0 : index
    %c1_61 = arith.constant 1 : index
    %c0_62 = arith.constant 0 : index
    %c0_63 = arith.constant 0 : index
    %64 = vector.load %arg8[%c0_60, %c1_61, %c0_62, %c0_63] : memref<2x2x1x16xf32, #tpu.memory_space<vmem>>, vector<1x1x1x16xf32>
    %65 = vector.shape_cast %64 : vector<1x1x1x16xf32> to vector<1x16xf32>
    %66 = vector.broadcast %65 : vector<1x16xf32> to vector<8x16xf32>
    %67 = arith.addf %63, %66 : vector<8x16xf32>
    %c0_64 = arith.constant 0 : index
    %c1_65 = arith.constant 1 : index
    %c0_66 = arith.constant 0 : index
    %c0_67 = arith.constant 0 : index
    %68 = vector.load %arg6[%c0_64, %c1_65, %c0_66, %c0_67] : memref<2x2x32x16xf32, #tpu.memory_space<vmem>>, vector<1x1x32x16xf32>
    %69 = vector.shape_cast %68 : vector<1x1x32x16xf32> to vector<32x16xf32>
    %cst_68 = arith.constant dense<0.000000e+00> : vector<8x16xf32>
    %70 = tpu.matmul %4, %69, %cst_68 {dimension_numbers = #tpu.dot_dimension_numbers<[1], [0], [0], [1], [0, 0, 1, 1], [], []>} : vector<8x32xf32>, vector<32x16xf32>, vector<8x16xf32> -> vector<8x16xf32>
    %c0_69 = arith.constant 0 : index
    %c1_70 = arith.constant 1 : index
    %c0_71 = arith.constant 0 : index
    %c0_72 = arith.constant 0 : index
    %71 = vector.load %arg9[%c0_69, %c1_70, %c0_71, %c0_72] : memref<2x2x1x16xf32, #tpu.memory_space<vmem>>, vector<1x1x1x16xf32>
    %72 = vector.shape_cast %71 : vector<1x1x1x16xf32> to vector<1x16xf32>
    %73 = vector.broadcast %72 : vector<1x16xf32> to vector<8x16xf32>
    %74 = arith.addf %70, %73 : vector<8x16xf32>
    %75 = vector.shape_cast %60 : vector<8x16xf32> to vector<1x8x16xf32>
    %76 = vector.shape_cast %67 : vector<8x16xf32> to vector<1x8x16xf32>
    %77 = vector.shape_cast %74 : vector<8x16xf32> to vector<1x8x16xf32>
    "tpu.trace_start"() <{level = 10 : i32, message = "bqd,bkd->bqk"}> : () -> ()
    %cst_73 = arith.constant dense<0.000000e+00> : vector<1x8x8xf32>
    %78 = tpu.matmul %75, %76, %cst_73 {dimension_numbers = #tpu.dot_dimension_numbers<[2], [2], [1], [1], [0, 0, 0, 1, 1, 1], [0], [0]>} : vector<1x8x16xf32>, vector<1x8x16xf32>, vector<1x8x8xf32> -> vector<1x8x8xf32>
    "tpu.trace_stop"() : () -> ()
    %cst_74 = arith.constant 2.500000e-01 : f32
    %79 = vector.broadcast %cst_74 : f32 to vector<1x8x8xf32>
    %80 = arith.mulf %78, %79 : vector<1x8x8xf32>
    %cst_75 = arith.constant dense<0xFF800000> : vector<1x8xf32>
    %81 = vector.multi_reduction <maximumf>, %80, %cst_75 [2] : vector<1x8x8xf32> to vector<1x8xf32>
    %82 = vector.shape_cast %81 : vector<1x8xf32> to vector<1x8x1xf32>
    %83 = vector.broadcast %82 : vector<1x8x1xf32> to vector<1x8x8xf32>
    %84 = arith.subf %80, %83 : vector<1x8x8xf32>
    %85 = math.exp %84 : vector<1x8x8xf32>
    %cst_76 = arith.constant dense<0.000000e+00> : vector<1x8xf32>
    %86 = vector.multi_reduction <add>, %85, %cst_76 [2] : vector<1x8x8xf32> to vector<1x8xf32>
    %87 = vector.shape_cast %86 : vector<1x8xf32> to vector<1x8x1xf32>
    %88 = vector.broadcast %87 : vector<1x8x1xf32> to vector<1x8x8xf32>
    %89 = arith.divf %85, %88 : vector<1x8x8xf32>
    "tpu.trace_start"() <{level = 10 : i32, message = "bqk,bkd->bqd"}> : () -> ()
    %cst_77 = arith.constant dense<0.000000e+00> : vector<1x8x16xf32>
    %90 = tpu.matmul %89, %77, %cst_77 {dimension_numbers = #tpu.dot_dimension_numbers<[2], [1], [1], [2], [0, 0, 0, 1, 1, 2], [0], [0]>} : vector<1x8x8xf32>, vector<1x8x16xf32>, vector<1x8x16xf32> -> vector<1x8x16xf32>
    "tpu.trace_stop"() : () -> ()
    %91 = vector.shape_cast %90 : vector<1x8x16xf32> to vector<8x16xf32>
    %c0_78 = arith.constant 0 : index
    %c1_79 = arith.constant 1 : index
    %c0_80 = arith.constant 0 : index
    %c0_81 = arith.constant 0 : index
    %92 = vector.load %arg10[%c0_78, %c1_79, %c0_80, %c0_81] : memref<2x2x16x32xf32, #tpu.memory_space<vmem>>, vector<1x1x16x32xf32>
    %93 = vector.shape_cast %92 : vector<1x1x16x32xf32> to vector<16x32xf32>
    %cst_82 = arith.constant dense<0.000000e+00> : vector<8x32xf32>
    %94 = tpu.matmul %91, %93, %cst_82 {dimension_numbers = #tpu.dot_dimension_numbers<[1], [0], [0], [1], [0, 0, 1, 1], [], []>} : vector<8x16xf32>, vector<16x32xf32>, vector<8x32xf32> -> vector<8x32xf32>
    %95 = arith.addf %53, %94 : vector<8x32xf32>
    %96 = arith.addf %4, %95 : vector<8x32xf32>
    %c0_83 = arith.constant 0 : index
    %c0_84 = arith.constant 0 : index
    %c0_85 = arith.constant 0 : index
    %97 = vector.load %arg14[%c0_83, %c0_84, %c0_85] : memref<2x1x32xf32, #tpu.memory_space<vmem>>, vector<1x1x32xf32>
    %98 = vector.shape_cast %97 : vector<1x1x32xf32> to vector<1x32xf32>
    %c0_86 = arith.constant 0 : index
    %c0_87 = arith.constant 0 : index
    %c0_88 = arith.constant 0 : index
    %99 = vector.load %arg15[%c0_86, %c0_87, %c0_88] : memref<2x1x32xf32, #tpu.memory_space<vmem>>, vector<1x1x32xf32>
    %100 = vector.shape_cast %99 : vector<1x1x32xf32> to vector<1x32xf32>
    %cst_89 = arith.constant dense<0.000000e+00> : vector<8xf32>
    %101 = vector.multi_reduction <add>, %96, %cst_89 [1] : vector<8x32xf32> to vector<8xf32>
    %102 = vector.shape_cast %101 : vector<8xf32> to vector<8x1xf32>
    %cst_90 = arith.constant 3.200000e+01 : f32
    %103 = vector.broadcast %cst_90 : f32 to vector<8x1xf32>
    %104 = arith.divf %102, %103 : vector<8x1xf32>
    %105 = vector.broadcast %104 : vector<8x1xf32> to vector<8x32xf32>
    %106 = arith.subf %96, %105 : vector<8x32xf32>
    %107 = arith.mulf %106, %106 : vector<8x32xf32>
    %cst_91 = arith.constant dense<0.000000e+00> : vector<8xf32>
    %108 = vector.multi_reduction <add>, %107, %cst_91 [1] : vector<8x32xf32> to vector<8xf32>
    %109 = vector.shape_cast %108 : vector<8xf32> to vector<8x1xf32>
    %cst_92 = arith.constant 3.200000e+01 : f32
    %110 = vector.broadcast %cst_92 : f32 to vector<8x1xf32>
    %111 = arith.divf %109, %110 : vector<8x1xf32>
    %112 = vector.broadcast %104 : vector<8x1xf32> to vector<8x32xf32>
    %113 = arith.subf %96, %112 : vector<8x32xf32>
    %cst_93 = arith.constant 9.99999974E-6 : f32
    %114 = vector.broadcast %cst_93 : f32 to vector<8x1xf32>
    %115 = arith.addf %111, %114 : vector<8x1xf32>
    %116 = math.rsqrt %115 : vector<8x1xf32>
    %117 = vector.broadcast %116 : vector<8x1xf32> to vector<8x32xf32>
    %118 = arith.mulf %113, %117 : vector<8x32xf32>
    %119 = vector.broadcast %98 : vector<1x32xf32> to vector<8x32xf32>
    %120 = arith.mulf %118, %119 : vector<8x32xf32>
    %121 = vector.broadcast %100 : vector<1x32xf32> to vector<8x32xf32>
    %122 = arith.addf %120, %121 : vector<8x32xf32>
    %c0_94 = arith.constant 0 : index
    %c0_95 = arith.constant 0 : index
    %c0_96 = arith.constant 0 : index
    %123 = vector.load %arg12[%c0_94, %c0_95, %c0_96] : memref<2x32x32xf32, #tpu.memory_space<vmem>>, vector<1x32x32xf32>
    %124 = vector.shape_cast %123 : vector<1x32x32xf32> to vector<32x32xf32>
    %cst_97 = arith.constant dense<0.000000e+00> : vector<8x32xf32>
    %125 = tpu.matmul %8, %124, %cst_97 {dimension_numbers = #tpu.dot_dimension_numbers<[1], [0], [0], [1], [0, 0, 1, 1], [], []>} : vector<8x32xf32>, vector<32x32xf32>, vector<8x32xf32> -> vector<8x32xf32>
    %c0_98 = arith.constant 0 : index
    %c0_99 = arith.constant 0 : index
    %c0_100 = arith.constant 0 : index
    %126 = vector.load %arg13[%c0_98, %c0_99, %c0_100] : memref<2x1x32xf32, #tpu.memory_space<vmem>>, vector<1x1x32xf32>
    %127 = vector.shape_cast %126 : vector<1x1x32xf32> to vector<1x32xf32>
    %128 = vector.broadcast %127 : vector<1x32xf32> to vector<8x32xf32>
    %129 = arith.addf %125, %128 : vector<8x32xf32>
    %130 = arith.addf %122, %129 : vector<8x32xf32>
    %c0_101 = arith.constant 0 : index
    %c0_102 = arith.constant 0 : index
    %c0_103 = arith.constant 0 : index
    %131 = vector.load %arg16[%c0_101, %c0_102, %c0_103] : memref<2x1x32xf32, #tpu.memory_space<vmem>>, vector<1x1x32xf32>
    %132 = vector.shape_cast %131 : vector<1x1x32xf32> to vector<1x32xf32>
    %c0_104 = arith.constant 0 : index
    %c0_105 = arith.constant 0 : index
    %c0_106 = arith.constant 0 : index
    %133 = vector.load %arg17[%c0_104, %c0_105, %c0_106] : memref<2x1x32xf32, #tpu.memory_space<vmem>>, vector<1x1x32xf32>
    %134 = vector.shape_cast %133 : vector<1x1x32xf32> to vector<1x32xf32>
    %cst_107 = arith.constant dense<0.000000e+00> : vector<8xf32>
    %135 = vector.multi_reduction <add>, %130, %cst_107 [1] : vector<8x32xf32> to vector<8xf32>
    %136 = vector.shape_cast %135 : vector<8xf32> to vector<8x1xf32>
    %cst_108 = arith.constant 3.200000e+01 : f32
    %137 = vector.broadcast %cst_108 : f32 to vector<8x1xf32>
    %138 = arith.divf %136, %137 : vector<8x1xf32>
    %139 = vector.broadcast %138 : vector<8x1xf32> to vector<8x32xf32>
    %140 = arith.subf %130, %139 : vector<8x32xf32>
    %141 = arith.mulf %140, %140 : vector<8x32xf32>
    %cst_109 = arith.constant dense<0.000000e+00> : vector<8xf32>
    %142 = vector.multi_reduction <add>, %141, %cst_109 [1] : vector<8x32xf32> to vector<8xf32>
    %143 = vector.shape_cast %142 : vector<8xf32> to vector<8x1xf32>
    %cst_110 = arith.constant 3.200000e+01 : f32
    %144 = vector.broadcast %cst_110 : f32 to vector<8x1xf32>
    %145 = arith.divf %143, %144 : vector<8x1xf32>
    %146 = vector.broadcast %138 : vector<8x1xf32> to vector<8x32xf32>
    %147 = arith.subf %130, %146 : vector<8x32xf32>
    %cst_111 = arith.constant 9.99999974E-6 : f32
    %148 = vector.broadcast %cst_111 : f32 to vector<8x1xf32>
    %149 = arith.addf %145, %148 : vector<8x1xf32>
    %150 = math.rsqrt %149 : vector<8x1xf32>
    %151 = vector.broadcast %150 : vector<8x1xf32> to vector<8x32xf32>
    %152 = arith.mulf %147, %151 : vector<8x32xf32>
    %153 = vector.broadcast %132 : vector<1x32xf32> to vector<8x32xf32>
    %154 = arith.mulf %152, %153 : vector<8x32xf32>
    %155 = vector.broadcast %134 : vector<1x32xf32> to vector<8x32xf32>
    %156 = arith.addf %154, %155 : vector<8x32xf32>
    %c0_112 = arith.constant 0 : index
    %c0_113 = arith.constant 0 : index
    %c0_114 = arith.constant 0 : index
    %157 = vector.load %arg20[%c0_112, %c0_113, %c0_114] : memref<2x32x2048xf32, #tpu.memory_space<vmem>>, vector<1x32x2048xf32>
    %158 = vector.shape_cast %157 : vector<1x32x2048xf32> to vector<32x2048xf32>
    %cst_115 = arith.constant dense<0.000000e+00> : vector<8x2048xf32>
    %159 = tpu.matmul %156, %158, %cst_115 {dimension_numbers = #tpu.dot_dimension_numbers<[1], [0], [0], [1], [0, 0, 1, 1], [], []>} : vector<8x32xf32>, vector<32x2048xf32>, vector<8x2048xf32> -> vector<8x2048xf32>
    %c0_116 = arith.constant 0 : index
    %c0_117 = arith.constant 0 : index
    %c0_118 = arith.constant 0 : index
    %160 = vector.load %arg21[%c0_116, %c0_117, %c0_118] : memref<2x1x2048xf32, #tpu.memory_space<vmem>>, vector<1x1x2048xf32>
    %161 = vector.shape_cast %160 : vector<1x1x2048xf32> to vector<1x2048xf32>
    %162 = vector.broadcast %161 : vector<1x2048xf32> to vector<8x2048xf32>
    %163 = arith.addf %159, %162 : vector<8x2048xf32>
    %cst_119 = arith.constant 0.000000e+00 : f32
    %164 = vector.broadcast %cst_119 : f32 to vector<8x2048xf32>
    %165 = arith.maximumf %163, %164 : vector<8x2048xf32>
    %c0_120 = arith.constant 0 : index
    %c0_121 = arith.constant 0 : index
    %c0_122 = arith.constant 0 : index
    %166 = vector.load %arg22[%c0_120, %c0_121, %c0_122] : memref<2x2048x32xf32, #tpu.memory_space<vmem>>, vector<1x2048x32xf32>
    %167 = vector.shape_cast %166 : vector<1x2048x32xf32> to vector<2048x32xf32>
    %cst_123 = arith.constant dense<0.000000e+00> : vector<8x32xf32>
    %168 = tpu.matmul %165, %167, %cst_123 {dimension_numbers = #tpu.dot_dimension_numbers<[1], [0], [0], [1], [0, 0, 1, 1], [], []>} : vector<8x2048xf32>, vector<2048x32xf32>, vector<8x32xf32> -> vector<8x32xf32>
    %c0_124 = arith.constant 0 : index
    %c0_125 = arith.constant 0 : index
    %c0_126 = arith.constant 0 : index
    %169 = vector.load %arg23[%c0_124, %c0_125, %c0_126] : memref<2x1x32xf32, #tpu.memory_space<vmem>>, vector<1x1x32xf32>
    %170 = vector.shape_cast %169 : vector<1x1x32xf32> to vector<1x32xf32>
    %171 = vector.broadcast %170 : vector<1x32xf32> to vector<8x32xf32>
    %172 = arith.addf %168, %171 : vector<8x32xf32>
    %173 = arith.addf %156, %172 : vector<8x32xf32>
    %c0_127 = arith.constant 0 : index
    %c0_128 = arith.constant 0 : index
    %c0_129 = arith.constant 0 : index
    %174 = vector.load %arg18[%c0_127, %c0_128, %c0_129] : memref<2x1x32xf32, #tpu.memory_space<vmem>>, vector<1x1x32xf32>
    %175 = vector.shape_cast %174 : vector<1x1x32xf32> to vector<1x32xf32>
    %c0_130 = arith.constant 0 : index
    %c0_131 = arith.constant 0 : index
    %c0_132 = arith.constant 0 : index
    %176 = vector.load %arg19[%c0_130, %c0_131, %c0_132] : memref<2x1x32xf32, #tpu.memory_space<vmem>>, vector<1x1x32xf32>
    %177 = vector.shape_cast %176 : vector<1x1x32xf32> to vector<1x32xf32>
    %cst_133 = arith.constant dense<0.000000e+00> : vector<8xf32>
    %178 = vector.multi_reduction <add>, %173, %cst_133 [1] : vector<8x32xf32> to vector<8xf32>
    %179 = vector.shape_cast %178 : vector<8xf32> to vector<8x1xf32>
    %cst_134 = arith.constant 3.200000e+01 : f32
    %180 = vector.broadcast %cst_134 : f32 to vector<8x1xf32>
    %181 = arith.divf %179, %180 : vector<8x1xf32>
    %182 = vector.broadcast %181 : vector<8x1xf32> to vector<8x32xf32>
    %183 = arith.subf %173, %182 : vector<8x32xf32>
    %184 = arith.mulf %183, %183 : vector<8x32xf32>
    %cst_135 = arith.constant dense<0.000000e+00> : vector<8xf32>
    %185 = vector.multi_reduction <add>, %184, %cst_135 [1] : vector<8x32xf32> to vector<8xf32>
    %186 = vector.shape_cast %185 : vector<8xf32> to vector<8x1xf32>
    %cst_136 = arith.constant 3.200000e+01 : f32
    %187 = vector.broadcast %cst_136 : f32 to vector<8x1xf32>
    %188 = arith.divf %186, %187 : vector<8x1xf32>
    %189 = vector.broadcast %181 : vector<8x1xf32> to vector<8x32xf32>
    %190 = arith.subf %173, %189 : vector<8x32xf32>
    %cst_137 = arith.constant 9.99999974E-6 : f32
    %191 = vector.broadcast %cst_137 : f32 to vector<8x1xf32>
    %192 = arith.addf %188, %191 : vector<8x1xf32>
    %193 = math.rsqrt %192 : vector<8x1xf32>
    %194 = vector.broadcast %193 : vector<8x1xf32> to vector<8x32xf32>
    %195 = arith.mulf %190, %194 : vector<8x32xf32>
    %196 = vector.broadcast %175 : vector<1x32xf32> to vector<8x32xf32>
    %197 = arith.mulf %195, %196 : vector<8x32xf32>
    %198 = vector.broadcast %177 : vector<1x32xf32> to vector<8x32xf32>
    %199 = arith.addf %197, %198 : vector<8x32xf32>
    %c1_138 = arith.constant 1 : index
    %c0_139 = arith.constant 0 : index
    %c0_140 = arith.constant 0 : index
    %200 = vector.load %arg11[%c1_138, %c0_139, %c0_140] : memref<2x1x32xf32, #tpu.memory_space<vmem>>, vector<1x1x32xf32>
    %201 = vector.shape_cast %200 : vector<1x1x32xf32> to vector<1x32xf32>
    %c1_141 = arith.constant 1 : index
    %c0_142 = arith.constant 0 : index
    %c0_143 = arith.constant 0 : index
    %c0_144 = arith.constant 0 : index
    %202 = vector.load %arg4[%c1_141, %c0_142, %c0_143, %c0_144] : memref<2x2x32x16xf32, #tpu.memory_space<vmem>>, vector<1x1x32x16xf32>
    %203 = vector.shape_cast %202 : vector<1x1x32x16xf32> to vector<32x16xf32>
    %cst_145 = arith.constant dense<0.000000e+00> : vector<8x16xf32>
    %204 = tpu.matmul %199, %203, %cst_145 {dimension_numbers = #tpu.dot_dimension_numbers<[1], [0], [0], [1], [0, 0, 1, 1], [], []>} : vector<8x32xf32>, vector<32x16xf32>, vector<8x16xf32> -> vector<8x16xf32>
    %c1_146 = arith.constant 1 : index
    %c0_147 = arith.constant 0 : index
    %c0_148 = arith.constant 0 : index
    %c0_149 = arith.constant 0 : index
    %205 = vector.load %arg7[%c1_146, %c0_147, %c0_148, %c0_149] : memref<2x2x1x16xf32, #tpu.memory_space<vmem>>, vector<1x1x1x16xf32>
    %206 = vector.shape_cast %205 : vector<1x1x1x16xf32> to vector<1x16xf32>
    %207 = vector.broadcast %206 : vector<1x16xf32> to vector<8x16xf32>
    %208 = arith.addf %204, %207 : vector<8x16xf32>
    %c1_150 = arith.constant 1 : index
    %c0_151 = arith.constant 0 : index
    %c0_152 = arith.constant 0 : index
    %c0_153 = arith.constant 0 : index
    %209 = vector.load %arg5[%c1_150, %c0_151, %c0_152, %c0_153] : memref<2x2x32x16xf32, #tpu.memory_space<vmem>>, vector<1x1x32x16xf32>
    %210 = vector.shape_cast %209 : vector<1x1x32x16xf32> to vector<32x16xf32>
    %cst_154 = arith.constant dense<0.000000e+00> : vector<8x16xf32>
    %211 = tpu.matmul %199, %210, %cst_154 {dimension_numbers = #tpu.dot_dimension_numbers<[1], [0], [0], [1], [0, 0, 1, 1], [], []>} : vector<8x32xf32>, vector<32x16xf32>, vector<8x16xf32> -> vector<8x16xf32>
    %c1_155 = arith.constant 1 : index
    %c0_156 = arith.constant 0 : index
    %c0_157 = arith.constant 0 : index
    %c0_158 = arith.constant 0 : index
    %212 = vector.load %arg8[%c1_155, %c0_156, %c0_157, %c0_158] : memref<2x2x1x16xf32, #tpu.memory_space<vmem>>, vector<1x1x1x16xf32>
    %213 = vector.shape_cast %212 : vector<1x1x1x16xf32> to vector<1x16xf32>
    %214 = vector.broadcast %213 : vector<1x16xf32> to vector<8x16xf32>
    %215 = arith.addf %211, %214 : vector<8x16xf32>
    %c1_159 = arith.constant 1 : index
    %c0_160 = arith.constant 0 : index
    %c0_161 = arith.constant 0 : index
    %c0_162 = arith.constant 0 : index
    %216 = vector.load %arg6[%c1_159, %c0_160, %c0_161, %c0_162] : memref<2x2x32x16xf32, #tpu.memory_space<vmem>>, vector<1x1x32x16xf32>
    %217 = vector.shape_cast %216 : vector<1x1x32x16xf32> to vector<32x16xf32>
    %cst_163 = arith.constant dense<0.000000e+00> : vector<8x16xf32>
    %218 = tpu.matmul %199, %217, %cst_163 {dimension_numbers = #tpu.dot_dimension_numbers<[1], [0], [0], [1], [0, 0, 1, 1], [], []>} : vector<8x32xf32>, vector<32x16xf32>, vector<8x16xf32> -> vector<8x16xf32>
    %c1_164 = arith.constant 1 : index
    %c0_165 = arith.constant 0 : index
    %c0_166 = arith.constant 0 : index
    %c0_167 = arith.constant 0 : index
    %219 = vector.load %arg9[%c1_164, %c0_165, %c0_166, %c0_167] : memref<2x2x1x16xf32, #tpu.memory_space<vmem>>, vector<1x1x1x16xf32>
    %220 = vector.shape_cast %219 : vector<1x1x1x16xf32> to vector<1x16xf32>
    %221 = vector.broadcast %220 : vector<1x16xf32> to vector<8x16xf32>
    %222 = arith.addf %218, %221 : vector<8x16xf32>
    %223 = vector.shape_cast %208 : vector<8x16xf32> to vector<1x8x16xf32>
    %224 = vector.shape_cast %215 : vector<8x16xf32> to vector<1x8x16xf32>
    %225 = vector.shape_cast %222 : vector<8x16xf32> to vector<1x8x16xf32>
    "tpu.trace_start"() <{level = 10 : i32, message = "bqd,bkd->bqk"}> : () -> ()
    %cst_168 = arith.constant dense<0.000000e+00> : vector<1x8x8xf32>
    %226 = tpu.matmul %223, %224, %cst_168 {dimension_numbers = #tpu.dot_dimension_numbers<[2], [2], [1], [1], [0, 0, 0, 1, 1, 1], [0], [0]>} : vector<1x8x16xf32>, vector<1x8x16xf32>, vector<1x8x8xf32> -> vector<1x8x8xf32>
    "tpu.trace_stop"() : () -> ()
    %cst_169 = arith.constant 2.500000e-01 : f32
    %227 = vector.broadcast %cst_169 : f32 to vector<1x8x8xf32>
    %228 = arith.mulf %226, %227 : vector<1x8x8xf32>
    %cst_170 = arith.constant dense<0xFF800000> : vector<1x8xf32>
    %229 = vector.multi_reduction <maximumf>, %228, %cst_170 [2] : vector<1x8x8xf32> to vector<1x8xf32>
    %230 = vector.shape_cast %229 : vector<1x8xf32> to vector<1x8x1xf32>
    %231 = vector.broadcast %230 : vector<1x8x1xf32> to vector<1x8x8xf32>
    %232 = arith.subf %228, %231 : vector<1x8x8xf32>
    %233 = math.exp %232 : vector<1x8x8xf32>
    %cst_171 = arith.constant dense<0.000000e+00> : vector<1x8xf32>
    %234 = vector.multi_reduction <add>, %233, %cst_171 [2] : vector<1x8x8xf32> to vector<1x8xf32>
    %235 = vector.shape_cast %234 : vector<1x8xf32> to vector<1x8x1xf32>
    %236 = vector.broadcast %235 : vector<1x8x1xf32> to vector<1x8x8xf32>
    %237 = arith.divf %233, %236 : vector<1x8x8xf32>
    "tpu.trace_start"() <{level = 10 : i32, message = "bqk,bkd->bqd"}> : () -> ()
    %cst_172 = arith.constant dense<0.000000e+00> : vector<1x8x16xf32>
    %238 = tpu.matmul %237, %225, %cst_172 {dimension_numbers = #tpu.dot_dimension_numbers<[2], [1], [1], [2], [0, 0, 0, 1, 1, 2], [0], [0]>} : vector<1x8x8xf32>, vector<1x8x16xf32>, vector<1x8x16xf32> -> vector<1x8x16xf32>
    "tpu.trace_stop"() : () -> ()
    %239 = vector.shape_cast %238 : vector<1x8x16xf32> to vector<8x16xf32>
    %c1_173 = arith.constant 1 : index
    %c0_174 = arith.constant 0 : index
    %c0_175 = arith.constant 0 : index
    %c0_176 = arith.constant 0 : index
    %240 = vector.load %arg10[%c1_173, %c0_174, %c0_175, %c0_176] : memref<2x2x16x32xf32, #tpu.memory_space<vmem>>, vector<1x1x16x32xf32>
    %241 = vector.shape_cast %240 : vector<1x1x16x32xf32> to vector<16x32xf32>
    %cst_177 = arith.constant dense<0.000000e+00> : vector<8x32xf32>
    %242 = tpu.matmul %239, %241, %cst_177 {dimension_numbers = #tpu.dot_dimension_numbers<[1], [0], [0], [1], [0, 0, 1, 1], [], []>} : vector<8x16xf32>, vector<16x32xf32>, vector<8x32xf32> -> vector<8x32xf32>
    %243 = vector.broadcast %201 : vector<1x32xf32> to vector<8x32xf32>
    %244 = arith.addf %243, %242 : vector<8x32xf32>
    %c1_178 = arith.constant 1 : index
    %c1_179 = arith.constant 1 : index
    %c0_180 = arith.constant 0 : index
    %c0_181 = arith.constant 0 : index
    %245 = vector.load %arg4[%c1_178, %c1_179, %c0_180, %c0_181] : memref<2x2x32x16xf32, #tpu.memory_space<vmem>>, vector<1x1x32x16xf32>
    %246 = vector.shape_cast %245 : vector<1x1x32x16xf32> to vector<32x16xf32>
    %cst_182 = arith.constant dense<0.000000e+00> : vector<8x16xf32>
    %247 = tpu.matmul %199, %246, %cst_182 {dimension_numbers = #tpu.dot_dimension_numbers<[1], [0], [0], [1], [0, 0, 1, 1], [], []>} : vector<8x32xf32>, vector<32x16xf32>, vector<8x16xf32> -> vector<8x16xf32>
    %c1_183 = arith.constant 1 : index
    %c1_184 = arith.constant 1 : index
    %c0_185 = arith.constant 0 : index
    %c0_186 = arith.constant 0 : index
    %248 = vector.load %arg7[%c1_183, %c1_184, %c0_185, %c0_186] : memref<2x2x1x16xf32, #tpu.memory_space<vmem>>, vector<1x1x1x16xf32>
    %249 = vector.shape_cast %248 : vector<1x1x1x16xf32> to vector<1x16xf32>
    %250 = vector.broadcast %249 : vector<1x16xf32> to vector<8x16xf32>
    %251 = arith.addf %247, %250 : vector<8x16xf32>
    %c1_187 = arith.constant 1 : index
    %c1_188 = arith.constant 1 : index
    %c0_189 = arith.constant 0 : index
    %c0_190 = arith.constant 0 : index
    %252 = vector.load %arg5[%c1_187, %c1_188, %c0_189, %c0_190] : memref<2x2x32x16xf32, #tpu.memory_space<vmem>>, vector<1x1x32x16xf32>
    %253 = vector.shape_cast %252 : vector<1x1x32x16xf32> to vector<32x16xf32>
    %cst_191 = arith.constant dense<0.000000e+00> : vector<8x16xf32>
    %254 = tpu.matmul %199, %253, %cst_191 {dimension_numbers = #tpu.dot_dimension_numbers<[1], [0], [0], [1], [0, 0, 1, 1], [], []>} : vector<8x32xf32>, vector<32x16xf32>, vector<8x16xf32> -> vector<8x16xf32>
    %c1_192 = arith.constant 1 : index
    %c1_193 = arith.constant 1 : index
    %c0_194 = arith.constant 0 : index
    %c0_195 = arith.constant 0 : index
    %255 = vector.load %arg8[%c1_192, %c1_193, %c0_194, %c0_195] : memref<2x2x1x16xf32, #tpu.memory_space<vmem>>, vector<1x1x1x16xf32>
    %256 = vector.shape_cast %255 : vector<1x1x1x16xf32> to vector<1x16xf32>
    %257 = vector.broadcast %256 : vector<1x16xf32> to vector<8x16xf32>
    %258 = arith.addf %254, %257 : vector<8x16xf32>
    %c1_196 = arith.constant 1 : index
    %c1_197 = arith.constant 1 : index
    %c0_198 = arith.constant 0 : index
    %c0_199 = arith.constant 0 : index
    %259 = vector.load %arg6[%c1_196, %c1_197, %c0_198, %c0_199] : memref<2x2x32x16xf32, #tpu.memory_space<vmem>>, vector<1x1x32x16xf32>
    %260 = vector.shape_cast %259 : vector<1x1x32x16xf32> to vector<32x16xf32>
    %cst_200 = arith.constant dense<0.000000e+00> : vector<8x16xf32>
    %261 = tpu.matmul %199, %260, %cst_200 {dimension_numbers = #tpu.dot_dimension_numbers<[1], [0], [0], [1], [0, 0, 1, 1], [], []>} : vector<8x32xf32>, vector<32x16xf32>, vector<8x16xf32> -> vector<8x16xf32>
    %c1_201 = arith.constant 1 : index
    %c1_202 = arith.constant 1 : index
    %c0_203 = arith.constant 0 : index
    %c0_204 = arith.constant 0 : index
    %262 = vector.load %arg9[%c1_201, %c1_202, %c0_203, %c0_204] : memref<2x2x1x16xf32, #tpu.memory_space<vmem>>, vector<1x1x1x16xf32>
    %263 = vector.shape_cast %262 : vector<1x1x1x16xf32> to vector<1x16xf32>
    %264 = vector.broadcast %263 : vector<1x16xf32> to vector<8x16xf32>
    %265 = arith.addf %261, %264 : vector<8x16xf32>
    %266 = vector.shape_cast %251 : vector<8x16xf32> to vector<1x8x16xf32>
    %267 = vector.shape_cast %258 : vector<8x16xf32> to vector<1x8x16xf32>
    %268 = vector.shape_cast %265 : vector<8x16xf32> to vector<1x8x16xf32>
    "tpu.trace_start"() <{level = 10 : i32, message = "bqd,bkd->bqk"}> : () -> ()
    %cst_205 = arith.constant dense<0.000000e+00> : vector<1x8x8xf32>
    %269 = tpu.matmul %266, %267, %cst_205 {dimension_numbers = #tpu.dot_dimension_numbers<[2], [2], [1], [1], [0, 0, 0, 1, 1, 1], [0], [0]>} : vector<1x8x16xf32>, vector<1x8x16xf32>, vector<1x8x8xf32> -> vector<1x8x8xf32>
    "tpu.trace_stop"() : () -> ()
    %cst_206 = arith.constant 2.500000e-01 : f32
    %270 = vector.broadcast %cst_206 : f32 to vector<1x8x8xf32>
    %271 = arith.mulf %269, %270 : vector<1x8x8xf32>
    %cst_207 = arith.constant dense<0xFF800000> : vector<1x8xf32>
    %272 = vector.multi_reduction <maximumf>, %271, %cst_207 [2] : vector<1x8x8xf32> to vector<1x8xf32>
    %273 = vector.shape_cast %272 : vector<1x8xf32> to vector<1x8x1xf32>
    %274 = vector.broadcast %273 : vector<1x8x1xf32> to vector<1x8x8xf32>
    %275 = arith.subf %271, %274 : vector<1x8x8xf32>
    %276 = math.exp %275 : vector<1x8x8xf32>
    %cst_208 = arith.constant dense<0.000000e+00> : vector<1x8xf32>
    %277 = vector.multi_reduction <add>, %276, %cst_208 [2] : vector<1x8x8xf32> to vector<1x8xf32>
    %278 = vector.shape_cast %277 : vector<1x8xf32> to vector<1x8x1xf32>
    %279 = vector.broadcast %278 : vector<1x8x1xf32> to vector<1x8x8xf32>
    %280 = arith.divf %276, %279 : vector<1x8x8xf32>
    "tpu.trace_start"() <{level = 10 : i32, message = "bqk,bkd->bqd"}> : () -> ()
    %cst_209 = arith.constant dense<0.000000e+00> : vector<1x8x16xf32>
    %281 = tpu.matmul %280, %268, %cst_209 {dimension_numbers = #tpu.dot_dimension_numbers<[2], [1], [1], [2], [0, 0, 0, 1, 1, 2], [0], [0]>} : vector<1x8x8xf32>, vector<1x8x16xf32>, vector<1x8x16xf32> -> vector<1x8x16xf32>
    "tpu.trace_stop"() : () -> ()
    %282 = vector.shape_cast %281 : vector<1x8x16xf32> to vector<8x16xf32>
    %c1_210 = arith.constant 1 : index
    %c1_211 = arith.constant 1 : index
    %c0_212 = arith.constant 0 : index
    %c0_213 = arith.constant 0 : index
    %283 = vector.load %arg10[%c1_210, %c1_211, %c0_212, %c0_213] : memref<2x2x16x32xf32, #tpu.memory_space<vmem>>, vector<1x1x16x32xf32>
    %284 = vector.shape_cast %283 : vector<1x1x16x32xf32> to vector<16x32xf32>
    %cst_214 = arith.constant dense<0.000000e+00> : vector<8x32xf32>
    %285 = tpu.matmul %282, %284, %cst_214 {dimension_numbers = #tpu.dot_dimension_numbers<[1], [0], [0], [1], [0, 0, 1, 1], [], []>} : vector<8x16xf32>, vector<16x32xf32>, vector<8x32xf32> -> vector<8x32xf32>
    %286 = arith.addf %244, %285 : vector<8x32xf32>
    %287 = arith.addf %199, %286 : vector<8x32xf32>
    %c1_215 = arith.constant 1 : index
    %c0_216 = arith.constant 0 : index
    %c0_217 = arith.constant 0 : index
    %288 = vector.load %arg14[%c1_215, %c0_216, %c0_217] : memref<2x1x32xf32, #tpu.memory_space<vmem>>, vector<1x1x32xf32>
    %289 = vector.shape_cast %288 : vector<1x1x32xf32> to vector<1x32xf32>
    %c1_218 = arith.constant 1 : index
    %c0_219 = arith.constant 0 : index
    %c0_220 = arith.constant 0 : index
    %290 = vector.load %arg15[%c1_218, %c0_219, %c0_220] : memref<2x1x32xf32, #tpu.memory_space<vmem>>, vector<1x1x32xf32>
    %291 = vector.shape_cast %290 : vector<1x1x32xf32> to vector<1x32xf32>
    %cst_221 = arith.constant dense<0.000000e+00> : vector<8xf32>
    %292 = vector.multi_reduction <add>, %287, %cst_221 [1] : vector<8x32xf32> to vector<8xf32>
    %293 = vector.shape_cast %292 : vector<8xf32> to vector<8x1xf32>
    %cst_222 = arith.constant 3.200000e+01 : f32
    %294 = vector.broadcast %cst_222 : f32 to vector<8x1xf32>
    %295 = arith.divf %293, %294 : vector<8x1xf32>
    %296 = vector.broadcast %295 : vector<8x1xf32> to vector<8x32xf32>
    %297 = arith.subf %287, %296 : vector<8x32xf32>
    %298 = arith.mulf %297, %297 : vector<8x32xf32>
    %cst_223 = arith.constant dense<0.000000e+00> : vector<8xf32>
    %299 = vector.multi_reduction <add>, %298, %cst_223 [1] : vector<8x32xf32> to vector<8xf32>
    %300 = vector.shape_cast %299 : vector<8xf32> to vector<8x1xf32>
    %cst_224 = arith.constant 3.200000e+01 : f32
    %301 = vector.broadcast %cst_224 : f32 to vector<8x1xf32>
    %302 = arith.divf %300, %301 : vector<8x1xf32>
    %303 = vector.broadcast %295 : vector<8x1xf32> to vector<8x32xf32>
    %304 = arith.subf %287, %303 : vector<8x32xf32>
    %cst_225 = arith.constant 9.99999974E-6 : f32
    %305 = vector.broadcast %cst_225 : f32 to vector<8x1xf32>
    %306 = arith.addf %302, %305 : vector<8x1xf32>
    %307 = math.rsqrt %306 : vector<8x1xf32>
    %308 = vector.broadcast %307 : vector<8x1xf32> to vector<8x32xf32>
    %309 = arith.mulf %304, %308 : vector<8x32xf32>
    %310 = vector.broadcast %289 : vector<1x32xf32> to vector<8x32xf32>
    %311 = arith.mulf %309, %310 : vector<8x32xf32>
    %312 = vector.broadcast %291 : vector<1x32xf32> to vector<8x32xf32>
    %313 = arith.addf %311, %312 : vector<8x32xf32>
    %c1_226 = arith.constant 1 : index
    %c0_227 = arith.constant 0 : index
    %c0_228 = arith.constant 0 : index
    %314 = vector.load %arg12[%c1_226, %c0_227, %c0_228] : memref<2x32x32xf32, #tpu.memory_space<vmem>>, vector<1x32x32xf32>
    %315 = vector.shape_cast %314 : vector<1x32x32xf32> to vector<32x32xf32>
    %cst_229 = arith.constant dense<0.000000e+00> : vector<8x32xf32>
    %316 = tpu.matmul %8, %315, %cst_229 {dimension_numbers = #tpu.dot_dimension_numbers<[1], [0], [0], [1], [0, 0, 1, 1], [], []>} : vector<8x32xf32>, vector<32x32xf32>, vector<8x32xf32> -> vector<8x32xf32>
    %c1_230 = arith.constant 1 : index
    %c0_231 = arith.constant 0 : index
    %c0_232 = arith.constant 0 : index
    %317 = vector.load %arg13[%c1_230, %c0_231, %c0_232] : memref<2x1x32xf32, #tpu.memory_space<vmem>>, vector<1x1x32xf32>
    %318 = vector.shape_cast %317 : vector<1x1x32xf32> to vector<1x32xf32>
    %319 = vector.broadcast %318 : vector<1x32xf32> to vector<8x32xf32>
    %320 = arith.addf %316, %319 : vector<8x32xf32>
    %321 = arith.addf %313, %320 : vector<8x32xf32>
    %c1_233 = arith.constant 1 : index
    %c0_234 = arith.constant 0 : index
    %c0_235 = arith.constant 0 : index
    %322 = vector.load %arg16[%c1_233, %c0_234, %c0_235] : memref<2x1x32xf32, #tpu.memory_space<vmem>>, vector<1x1x32xf32>
    %323 = vector.shape_cast %322 : vector<1x1x32xf32> to vector<1x32xf32>
    %c1_236 = arith.constant 1 : index
    %c0_237 = arith.constant 0 : index
    %c0_238 = arith.constant 0 : index
    %324 = vector.load %arg17[%c1_236, %c0_237, %c0_238] : memref<2x1x32xf32, #tpu.memory_space<vmem>>, vector<1x1x32xf32>
    %325 = vector.shape_cast %324 : vector<1x1x32xf32> to vector<1x32xf32>
    %cst_239 = arith.constant dense<0.000000e+00> : vector<8xf32>
    %326 = vector.multi_reduction <add>, %321, %cst_239 [1] : vector<8x32xf32> to vector<8xf32>
    %327 = vector.shape_cast %326 : vector<8xf32> to vector<8x1xf32>
    %cst_240 = arith.constant 3.200000e+01 : f32
    %328 = vector.broadcast %cst_240 : f32 to vector<8x1xf32>
    %329 = arith.divf %327, %328 : vector<8x1xf32>
    %330 = vector.broadcast %329 : vector<8x1xf32> to vector<8x32xf32>
    %331 = arith.subf %321, %330 : vector<8x32xf32>
    %332 = arith.mulf %331, %331 : vector<8x32xf32>
    %cst_241 = arith.constant dense<0.000000e+00> : vector<8xf32>
    %333 = vector.multi_reduction <add>, %332, %cst_241 [1] : vector<8x32xf32> to vector<8xf32>
    %334 = vector.shape_cast %333 : vector<8xf32> to vector<8x1xf32>
    %cst_242 = arith.constant 3.200000e+01 : f32
    %335 = vector.broadcast %cst_242 : f32 to vector<8x1xf32>
    %336 = arith.divf %334, %335 : vector<8x1xf32>
    %337 = vector.broadcast %329 : vector<8x1xf32> to vector<8x32xf32>
    %338 = arith.subf %321, %337 : vector<8x32xf32>
    %cst_243 = arith.constant 9.99999974E-6 : f32
    %339 = vector.broadcast %cst_243 : f32 to vector<8x1xf32>
    %340 = arith.addf %336, %339 : vector<8x1xf32>
    %341 = math.rsqrt %340 : vector<8x1xf32>
    %342 = vector.broadcast %341 : vector<8x1xf32> to vector<8x32xf32>
    %343 = arith.mulf %338, %342 : vector<8x32xf32>
    %344 = vector.broadcast %323 : vector<1x32xf32> to vector<8x32xf32>
    %345 = arith.mulf %343, %344 : vector<8x32xf32>
    %346 = vector.broadcast %325 : vector<1x32xf32> to vector<8x32xf32>
    %347 = arith.addf %345, %346 : vector<8x32xf32>
    %c1_244 = arith.constant 1 : index
    %c0_245 = arith.constant 0 : index
    %c0_246 = arith.constant 0 : index
    %348 = vector.load %arg20[%c1_244, %c0_245, %c0_246] : memref<2x32x2048xf32, #tpu.memory_space<vmem>>, vector<1x32x2048xf32>
    %349 = vector.shape_cast %348 : vector<1x32x2048xf32> to vector<32x2048xf32>
    %cst_247 = arith.constant dense<0.000000e+00> : vector<8x2048xf32>
    %350 = tpu.matmul %347, %349, %cst_247 {dimension_numbers = #tpu.dot_dimension_numbers<[1], [0], [0], [1], [0, 0, 1, 1], [], []>} : vector<8x32xf32>, vector<32x2048xf32>, vector<8x2048xf32> -> vector<8x2048xf32>
    %c1_248 = arith.constant 1 : index
    %c0_249 = arith.constant 0 : index
    %c0_250 = arith.constant 0 : index
    %351 = vector.load %arg21[%c1_248, %c0_249, %c0_250] : memref<2x1x2048xf32, #tpu.memory_space<vmem>>, vector<1x1x2048xf32>
    %352 = vector.shape_cast %351 : vector<1x1x2048xf32> to vector<1x2048xf32>
    %353 = vector.broadcast %352 : vector<1x2048xf32> to vector<8x2048xf32>
    %354 = arith.addf %350, %353 : vector<8x2048xf32>
    %cst_251 = arith.constant 0.000000e+00 : f32
    %355 = vector.broadcast %cst_251 : f32 to vector<8x2048xf32>
    %356 = arith.maximumf %354, %355 : vector<8x2048xf32>
    %c1_252 = arith.constant 1 : index
    %c0_253 = arith.constant 0 : index
    %c0_254 = arith.constant 0 : index
    %357 = vector.load %arg22[%c1_252, %c0_253, %c0_254] : memref<2x2048x32xf32, #tpu.memory_space<vmem>>, vector<1x2048x32xf32>
    %358 = vector.shape_cast %357 : vector<1x2048x32xf32> to vector<2048x32xf32>
    %cst_255 = arith.constant dense<0.000000e+00> : vector<8x32xf32>
    %359 = tpu.matmul %356, %358, %cst_255 {dimension_numbers = #tpu.dot_dimension_numbers<[1], [0], [0], [1], [0, 0, 1, 1], [], []>} : vector<8x2048xf32>, vector<2048x32xf32>, vector<8x32xf32> -> vector<8x32xf32>
    %c1_256 = arith.constant 1 : index
    %c0_257 = arith.constant 0 : index
    %c0_258 = arith.constant 0 : index
    %360 = vector.load %arg23[%c1_256, %c0_257, %c0_258] : memref<2x1x32xf32, #tpu.memory_space<vmem>>, vector<1x1x32xf32>
    %361 = vector.shape_cast %360 : vector<1x1x32xf32> to vector<1x32xf32>
    %362 = vector.broadcast %361 : vector<1x32xf32> to vector<8x32xf32>
    %363 = arith.addf %359, %362 : vector<8x32xf32>
    %364 = arith.addf %347, %363 : vector<8x32xf32>
    %c1_259 = arith.constant 1 : index
    %c0_260 = arith.constant 0 : index
    %c0_261 = arith.constant 0 : index
    %365 = vector.load %arg18[%c1_259, %c0_260, %c0_261] : memref<2x1x32xf32, #tpu.memory_space<vmem>>, vector<1x1x32xf32>
    %366 = vector.shape_cast %365 : vector<1x1x32xf32> to vector<1x32xf32>
    %c1_262 = arith.constant 1 : index
    %c0_263 = arith.constant 0 : index
    %c0_264 = arith.constant 0 : index
    %367 = vector.load %arg19[%c1_262, %c0_263, %c0_264] : memref<2x1x32xf32, #tpu.memory_space<vmem>>, vector<1x1x32xf32>
    %368 = vector.shape_cast %367 : vector<1x1x32xf32> to vector<1x32xf32>
    %cst_265 = arith.constant dense<0.000000e+00> : vector<8xf32>
    %369 = vector.multi_reduction <add>, %364, %cst_265 [1] : vector<8x32xf32> to vector<8xf32>
    %370 = vector.shape_cast %369 : vector<8xf32> to vector<8x1xf32>
    %cst_266 = arith.constant 3.200000e+01 : f32
    %371 = vector.broadcast %cst_266 : f32 to vector<8x1xf32>
    %372 = arith.divf %370, %371 : vector<8x1xf32>
    %373 = vector.broadcast %372 : vector<8x1xf32> to vector<8x32xf32>
    %374 = arith.subf %364, %373 : vector<8x32xf32>
    %375 = arith.mulf %374, %374 : vector<8x32xf32>
    %cst_267 = arith.constant dense<0.000000e+00> : vector<8xf32>
    %376 = vector.multi_reduction <add>, %375, %cst_267 [1] : vector<8x32xf32> to vector<8xf32>
    %377 = vector.shape_cast %376 : vector<8xf32> to vector<8x1xf32>
    %cst_268 = arith.constant 3.200000e+01 : f32
    %378 = vector.broadcast %cst_268 : f32 to vector<8x1xf32>
    %379 = arith.divf %377, %378 : vector<8x1xf32>
    %380 = vector.broadcast %372 : vector<8x1xf32> to vector<8x32xf32>
    %381 = arith.subf %364, %380 : vector<8x32xf32>
    %cst_269 = arith.constant 9.99999974E-6 : f32
    %382 = vector.broadcast %cst_269 : f32 to vector<8x1xf32>
    %383 = arith.addf %379, %382 : vector<8x1xf32>
    %384 = math.rsqrt %383 : vector<8x1xf32>
    %385 = vector.broadcast %384 : vector<8x1xf32> to vector<8x32xf32>
    %386 = arith.mulf %381, %385 : vector<8x32xf32>
    %387 = vector.broadcast %366 : vector<1x32xf32> to vector<8x32xf32>
    %388 = arith.mulf %386, %387 : vector<8x32xf32>
    %389 = vector.broadcast %368 : vector<1x32xf32> to vector<8x32xf32>
    %390 = arith.addf %388, %389 : vector<8x32xf32>
    %c0_270 = arith.constant 0 : index
    %c0_271 = arith.constant 0 : index
    %391 = vector.load %arg24[%c0_270, %c0_271] : memref<1x32xf32, #tpu.memory_space<vmem>>, vector<1x32xf32>
    %c0_272 = arith.constant 0 : index
    %c0_273 = arith.constant 0 : index
    %392 = vector.load %arg25[%c0_272, %c0_273] : memref<1x32xf32, #tpu.memory_space<vmem>>, vector<1x32xf32>
    %cst_274 = arith.constant dense<0.000000e+00> : vector<8xf32>
    %393 = vector.multi_reduction <add>, %390, %cst_274 [1] : vector<8x32xf32> to vector<8xf32>
    %394 = vector.shape_cast %393 : vector<8xf32> to vector<8x1xf32>
    %cst_275 = arith.constant 3.200000e+01 : f32
    %395 = vector.broadcast %cst_275 : f32 to vector<8x1xf32>
    %396 = arith.divf %394, %395 : vector<8x1xf32>
    %397 = vector.broadcast %396 : vector<8x1xf32> to vector<8x32xf32>
    %398 = arith.subf %390, %397 : vector<8x32xf32>
    %399 = arith.mulf %398, %398 : vector<8x32xf32>
    %cst_276 = arith.constant dense<0.000000e+00> : vector<8xf32>
    %400 = vector.multi_reduction <add>, %399, %cst_276 [1] : vector<8x32xf32> to vector<8xf32>
    %401 = vector.shape_cast %400 : vector<8xf32> to vector<8x1xf32>
    %cst_277 = arith.constant 3.200000e+01 : f32
    %402 = vector.broadcast %cst_277 : f32 to vector<8x1xf32>
    %403 = arith.divf %401, %402 : vector<8x1xf32>
    %404 = vector.broadcast %396 : vector<8x1xf32> to vector<8x32xf32>
    %405 = arith.subf %390, %404 : vector<8x32xf32>
    %cst_278 = arith.constant 9.99999974E-6 : f32
    %406 = vector.broadcast %cst_278 : f32 to vector<8x1xf32>
    %407 = arith.addf %403, %406 : vector<8x1xf32>
    %408 = math.rsqrt %407 : vector<8x1xf32>
    %409 = vector.broadcast %408 : vector<8x1xf32> to vector<8x32xf32>
    %410 = arith.mulf %405, %409 : vector<8x32xf32>
    %411 = vector.broadcast %391 : vector<1x32xf32> to vector<8x32xf32>
    %412 = arith.mulf %410, %411 : vector<8x32xf32>
    %413 = vector.broadcast %392 : vector<1x32xf32> to vector<8x32xf32>
    %414 = arith.addf %412, %413 : vector<8x32xf32>
    %c0_279 = arith.constant 0 : index
    %c0_280 = arith.constant 0 : index
    %415 = vector.load %arg26[%c0_279, %c0_280] : memref<32x128xf32, #tpu.memory_space<vmem>>, vector<32x128xf32>
    %cst_281 = arith.constant dense<0.000000e+00> : vector<8x128xf32>
    %416 = tpu.matmul %414, %415, %cst_281 {dimension_numbers = #tpu.dot_dimension_numbers<[1], [0], [0], [1], [0, 0, 1, 1], [], []>} : vector<8x32xf32>, vector<32x128xf32>, vector<8x128xf32> -> vector<8x128xf32>
    %c0_282 = arith.constant 0 : index
    %c0_283 = arith.constant 0 : index
    %417 = vector.load %arg27[%c0_282, %c0_283] : memref<1x128xf32, #tpu.memory_space<vmem>>, vector<1x128xf32>
    %418 = vector.broadcast %417 : vector<1x128xf32> to vector<8x128xf32>
    %419 = arith.addf %416, %418 : vector<8x128xf32>
    %420 = vector.shape_cast %419 : vector<8x128xf32> to vector<1x8x128xf32>
    %c0_284 = arith.constant 0 : index
    %c0_285 = arith.constant 0 : index
    %c0_286 = arith.constant 0 : index
    %421 = vector.load %arg28[%c0_284, %c0_285, %c0_286] : memref<1x8x128xf32, #tpu.memory_space<vmem>>, vector<1x8x128xf32>
    tpu.vector_store %arg28[%c0_284, %c0_285, %c0_286], %420 {strides = array<i32>} : memref<1x8x128xf32, #tpu.memory_space<vmem>>, vector<1x8x128xf32>,
    return
  }
  func.func @transform_0(%arg0: i32) -> (i32, i32, i32) {
    %c0_i32 = arith.constant 0 : i32
    %c0_i32_0 = arith.constant 0 : i32
    %c0_i32_1 = arith.constant 0 : i32
    return %arg0, %c0_i32, %c0_i32_0 : i32, i32, i32
  }
  func.func @transform_1(%arg0: i32) -> (i32, i32, i32) {
    %c0_i32 = arith.constant 0 : i32
    %c0_i32_0 = arith.constant 0 : i32
    %c0_i32_1 = arith.constant 0 : i32
    return %arg0, %c0_i32, %c0_i32_0 : i32, i32, i32
  }
  func.func @transform_2(%arg0: i32) -> (i32, i32, i32) {
    %c0_i32 = arith.constant 0 : i32
    %c0_i32_0 = arith.constant 0 : i32
    %c0_i32_1 = arith.constant 0 : i32
    return %arg0, %c0_i32, %c0_i32_0 : i32, i32, i32
  }
  func.func @transform_3(%arg0: i32) -> (i32, i32, i32, i32) {
    %c0_i32 = arith.constant 0 : i32
    %c0_i32_0 = arith.constant 0 : i32
    %c0_i32_1 = arith.constant 0 : i32
    %c0_i32_2 = arith.constant 0 : i32
    %c0_i32_3 = arith.constant 0 : i32
    return %c0_i32, %c0_i32_0, %c0_i32_1, %c0_i32_2 : i32, i32, i32, i32
  }
  func.func @transform_4(%arg0: i32) -> (i32, i32, i32, i32) {
    %c0_i32 = arith.constant 0 : i32
    %c0_i32_0 = arith.constant 0 : i32
    %c0_i32_1 = arith.constant 0 : i32
    %c0_i32_2 = arith.constant 0 : i32
    %c0_i32_3 = arith.constant 0 : i32
    return %c0_i32, %c0_i32_0, %c0_i32_1, %c0_i32_2 : i32, i32, i32, i32
  }
  func.func @transform_5(%arg0: i32) -> (i32, i32, i32, i32) {
    %c0_i32 = arith.constant 0 : i32
    %c0_i32_0 = arith.constant 0 : i32
    %c0_i32_1 = arith.constant 0 : i32
    %c0_i32_2 = arith.constant 0 : i32
    %c0_i32_3 = arith.constant 0 : i32
    return %c0_i32, %c0_i32_0, %c0_i32_1, %c0_i32_2 : i32, i32, i32, i32
  }
  func.func @transform_6(%arg0: i32) -> (i32, i32, i32, i32) {
    %c0_i32 = arith.constant 0 : i32
    %c0_i32_0 = arith.constant 0 : i32
    %c0_i32_1 = arith.constant 0 : i32
    %c0_i32_2 = arith.constant 0 : i32
    %c0_i32_3 = arith.constant 0 : i32
    return %c0_i32, %c0_i32_0, %c0_i32_1, %c0_i32_2 : i32, i32, i32, i32
  }
  func.func @transform_7(%arg0: i32) -> (i32, i32, i32, i32) {
    %c0_i32 = arith.constant 0 : i32
    %c0_i32_0 = arith.constant 0 : i32
    %c0_i32_1 = arith.constant 0 : i32
    %c0_i32_2 = arith.constant 0 : i32
    %c0_i32_3 = arith.constant 0 : i32
    return %c0_i32, %c0_i32_0, %c0_i32_1, %c0_i32_2 : i32, i32, i32, i32
  }
  func.func @transform_8(%arg0: i32) -> (i32, i32, i32, i32) {
    %c0_i32 = arith.constant 0 : i32
    %c0_i32_0 = arith.constant 0 : i32
    %c0_i32_1 = arith.constant 0 : i32
    %c0_i32_2 = arith.constant 0 : i32
    %c0_i32_3 = arith.constant 0 : i32
    return %c0_i32, %c0_i32_0, %c0_i32_1, %c0_i32_2 : i32, i32, i32, i32
  }
  func.func @transform_9(%arg0: i32) -> (i32, i32, i32, i32) {
    %c0_i32 = arith.constant 0 : i32
    %c0_i32_0 = arith.constant 0 : i32
    %c0_i32_1 = arith.constant 0 : i32
    %c0_i32_2 = arith.constant 0 : i32
    %c0_i32_3 = arith.constant 0 : i32
    return %c0_i32, %c0_i32_0, %c0_i32_1, %c0_i32_2 : i32, i32, i32, i32
  }
  func.func @transform_10(%arg0: i32) -> (i32, i32, i32) {
    %c0_i32 = arith.constant 0 : i32
    %c0_i32_0 = arith.constant 0 : i32
    %c0_i32_1 = arith.constant 0 : i32
    %c0_i32_2 = arith.constant 0 : i32
    return %c0_i32, %c0_i32_0, %c0_i32_1 : i32, i32, i32
  }
  func.func @transform_11(%arg0: i32) -> (i32, i32, i32) {
    %c0_i32 = arith.constant 0 : i32
    %c0_i32_0 = arith.constant 0 : i32
    %c0_i32_1 = arith.constant 0 : i32
    %c0_i32_2 = arith.constant 0 : i32
    return %c0_i32, %c0_i32_0, %c0_i32_1 : i32, i32, i32
  }
  func.func @transform_12(%arg0: i32) -> (i32, i32, i32) {
    %c0_i32 = arith.constant 0 : i32
    %c0_i32_0 = arith.constant 0 : i32
    %c0_i32_1 = arith.constant 0 : i32
    %c0_i32_2 = arith.constant 0 : i32
    return %c0_i32, %c0_i32_0, %c0_i32_1 : i32, i32, i32
  }
  func.func @transform_13(%arg0: i32) -> (i32, i32, i32) {
    %c0_i32 = arith.constant 0 : i32
    %c0_i32_0 = arith.constant 0 : i32
    %c0_i32_1 = arith.constant 0 : i32
    %c0_i32_2 = arith.constant 0 : i32
    return %c0_i32, %c0_i32_0, %c0_i32_1 : i32, i32, i32
  }
  func.func @transform_14(%arg0: i32) -> (i32, i32, i32) {
    %c0_i32 = arith.constant 0 : i32
    %c0_i32_0 = arith.constant 0 : i32
    %c0_i32_1 = arith.constant 0 : i32
    %c0_i32_2 = arith.constant 0 : i32
    return %c0_i32, %c0_i32_0, %c0_i32_1 : i32, i32, i32
  }
  func.func @transform_15(%arg0: i32) -> (i32, i32, i32) {
    %c0_i32 = arith.constant 0 : i32
    %c0_i32_0 = arith.constant 0 : i32
    %c0_i32_1 = arith.constant 0 : i32
    %c0_i32_2 = arith.constant 0 : i32
    return %c0_i32, %c0_i32_0, %c0_i32_1 : i32, i32, i32
  }
  func.func @transform_16(%arg0: i32) -> (i32, i32, i32) {
    %c0_i32 = arith.constant 0 : i32
    %c0_i32_0 = arith.constant 0 : i32
    %c0_i32_1 = arith.constant 0 : i32
    %c0_i32_2 = arith.constant 0 : i32
    return %c0_i32, %c0_i32_0, %c0_i32_1 : i32, i32, i32
  }
  func.func @transform_17(%arg0: i32) -> (i32, i32, i32) {
    %c0_i32 = arith.constant 0 : i32
    %c0_i32_0 = arith.constant 0 : i32
    %c0_i32_1 = arith.constant 0 : i32
    %c0_i32_2 = arith.constant 0 : i32
    return %c0_i32, %c0_i32_0, %c0_i32_1 : i32, i32, i32
  }
  func.func @transform_18(%arg0: i32) -> (i32, i32, i32) {
    %c0_i32 = arith.constant 0 : i32
    %c0_i32_0 = arith.constant 0 : i32
    %c0_i32_1 = arith.constant 0 : i32
    %c0_i32_2 = arith.constant 0 : i32
    return %c0_i32, %c0_i32_0, %c0_i32_1 : i32, i32, i32
  }
  func.func @transform_19(%arg0: i32) -> (i32, i32, i32) {
    %c0_i32 = arith.constant 0 : i32
    %c0_i32_0 = arith.constant 0 : i32
    %c0_i32_1 = arith.constant 0 : i32
    %c0_i32_2 = arith.constant 0 : i32
    return %c0_i32, %c0_i32_0, %c0_i32_1 : i32, i32, i32
  }
  func.func @transform_20(%arg0: i32) -> (i32, i32, i32) {
    %c0_i32 = arith.constant 0 : i32
    %c0_i32_0 = arith.constant 0 : i32
    %c0_i32_1 = arith.constant 0 : i32
    %c0_i32_2 = arith.constant 0 : i32
    return %c0_i32, %c0_i32_0, %c0_i32_1 : i32, i32, i32
  }
  func.func @transform_21(%arg0: i32) -> (i32, i32, i32) {
    %c0_i32 = arith.constant 0 : i32
    %c0_i32_0 = arith.constant 0 : i32
    %c0_i32_1 = arith.constant 0 : i32
    %c0_i32_2 = arith.constant 0 : i32
    return %c0_i32, %c0_i32_0, %c0_i32_1 : i32, i32, i32
  }
  func.func @transform_22(%arg0: i32) -> (i32, i32, i32) {
    %c0_i32 = arith.constant 0 : i32
    %c0_i32_0 = arith.constant 0 : i32
    %c0_i32_1 = arith.constant 0 : i32
    %c0_i32_2 = arith.constant 0 : i32
    return %c0_i32, %c0_i32_0, %c0_i32_1 : i32, i32, i32
  }
  func.func @transform_23(%arg0: i32) -> (i32, i32) {
    %c0_i32 = arith.constant 0 : i32
    %c0_i32_0 = arith.constant 0 : i32
    %c0_i32_1 = arith.constant 0 : i32
    return %c0_i32, %c0_i32_0 : i32, i32
  }
  func.func @transform_24(%arg0: i32) -> (i32, i32) {
    %c0_i32 = arith.constant 0 : i32
    %c0_i32_0 = arith.constant 0 : i32
    %c0_i32_1 = arith.constant 0 : i32
    return %c0_i32, %c0_i32_0 : i32, i32
  }
  func.func @transform_25(%arg0: i32) -> (i32, i32) {
    %c0_i32 = arith.constant 0 : i32
    %c0_i32_0 = arith.constant 0 : i32
    %c0_i32_1 = arith.constant 0 : i32
    return %c0_i32, %c0_i32_0 : i32, i32
  }
  func.func @transform_26(%arg0: i32) -> (i32, i32) {
    %c0_i32 = arith.constant 0 : i32
    %c0_i32_0 = arith.constant 0 : i32
    %c0_i32_1 = arith.constant 0 : i32
    return %c0_i32, %c0_i32_0 : i32, i32
  }
  func.func @transform_27(%arg0: i32) -> (i32, i32, i32) {
    %c0_i32 = arith.constant 0 : i32
    %c0_i32_0 = arith.constant 0 : i32
    %c0_i32_1 = arith.constant 0 : i32
    return %arg0, %c0_i32, %c0_i32_0 : i32, i32, i32
  }
}

</mosaic_0001>

<llo_original>
// kernel: tile.14
$region0: #{tile.14}
  %s0 = inlined_call_operand.vmem [shape: f32[2,2,4], index: 0, kind: input, shape index: {}]
  %s1 = inlined_call_operand.vmem [shape: f32[2,8], index: 1, kind: output, shape index: {}]
  $region1: #{tile.14} parent=0
    #allocation0 [shape = 'u8[4096]{0}', space=vmem, size = 0x1000, scoped, tag = 'scoped mem for output reshape']
    #allocation1 [shape = 'u8[8192]{0}', space=vmem, size = 0x2000, scoped, tag = 'scoped mem for input reshape']
    %s3 = ssub.s32 4, 1
    %s4 = scalar_lea.vmem %s0, 2
    %v5 = vld [vmem:[%s4] sm:%s3]
    %s6 = scalar_lea.vmem [#allocation1], 8
    %7 = vst [vmem:[%s6] sm:%s3] %v5
    %v8 = vld [vmem:[%s0] sm:%s3]
    %9 = vst [vmem:[#allocation1] sm:%s3] %v8
    %s10 = smov 3
    %v11 = vld [vmem:[#allocation1] ss:$8 sm:%s10]
    %vm12 = vcmask 31744
    %13 = vst.msk [vmem:[#allocation0] sm:$0x3] %vm12, %v11
    %s14 = scalar_lea.vmem [#allocation1], 1
    %s15 = smov 3
    %v16 = vld [vmem:[%s14] ss:$8 sm:%s15]
    %17 = vrot.lane.b32.xlu0 %v16, 4
    %v18 = vpop.permute.xlu0 %17
    %vm19 = vcmask 64544
    %20 = vst.msk [vmem:[#allocation0] sm:$0x3] %vm19, %v18
    %s22 = ssub.s32 4, 1
    %v23 = vld [vmem:[#allocation0] sm:%s22]
    %s25 = ssub.s32 4, 1
    %26 = vst [vmem:[%s1] sm:%s25] %v23

// kernel: rnaformer_forward.1
$region0: #{rnaformer_forward.1}
  #allocation0 [shape = 'u32[]', space=smem, size = 0x4, offset = 0x4, fixed_abs, tag = 'smem constant byte address 0x4 - core index']
  #allocation1 [shape = 'u32[72,128]{1,0:T(1,128)}', space=vmem, size = 0x9000, scoped, tag = 'internal scratch']
  %s0 = inlined_call_operand.vmem [shape: f32[2,8,32], index: 0, kind: input, shape index: {}]
  %s1 = inlined_call_operand.vmem [shape: f32[2,1,32], index: 1, kind: input, shape index: {}]
  %s2 = inlined_call_operand.vmem [shape: f32[2,1,32], index: 2, kind: input, shape index: {}]
  %s3 = inlined_call_operand.vmem [shape: f32[2,2,32,16], index: 3, kind: input, shape index: {}]
  %s4 = inlined_call_operand.vmem [shape: f32[2,2,32,16], index: 4, kind: input, shape index: {}]
  %s5 = inlined_call_operand.vmem [shape: f32[2,2,32,16], index: 5, kind: input, shape index: {}]
  %s6 = inlined_call_operand.vmem [shape: f32[2,2,1,16], index: 6, kind: input, shape index: {}]
  %s7 = inlined_call_operand.vmem [shape: f32[2,2,1,16], index: 7, kind: input, shape index: {}]
  %s8 = inlined_call_operand.vmem [shape: f32[2,2,1,16], index: 8, kind: input, shape index: {}]
  %s9 = inlined_call_operand.vmem [shape: f32[2,2,16,32], index: 9, kind: input, shape index: {}]
  %s10 = inlined_call_operand.vmem [shape: f32[2,1,32], index: 10, kind: input, shape index: {}]
  %s11 = inlined_call_operand.vmem [shape: f32[2,32,32], index: 11, kind: input, shape index: {}]
  %s12 = inlined_call_operand.vmem [shape: f32[2,1,32], index: 12, kind: input, shape index: {}]
  %s13 = inlined_call_operand.vmem [shape: f32[2,1,32], index: 13, kind: input, shape index: {}]
  %s14 = inlined_call_operand.vmem [shape: f32[2,1,32], index: 14, kind: input, shape index: {}]
  %s15 = inlined_call_operand.vmem [shape: f32[2,1,32], index: 15, kind: input, shape index: {}]
  %s16 = inlined_call_operand.vmem [shape: f32[2,1,32], index: 16, kind: input, shape index: {}]
  %s17 = inlined_call_operand.vmem [shape: f32[2,1,32], index: 17, kind: input, shape index: {}]
  %s18 = inlined_call_operand.vmem [shape: f32[2,1,32], index: 18, kind: input, shape index: {}]
  %s19 = inlined_call_operand.vmem [shape: f32[2,32,2048], index: 19, kind: input, shape index: {}]
  %s20 = inlined_call_operand.vmem [shape: f32[2,1,2048], index: 20, kind: input, shape index: {}]
  %s21 = inlined_call_operand.vmem [shape: f32[2,2048,32], index: 21, kind: input, shape index: {}]
  %s22 = inlined_call_operand.vmem [shape: f32[2,1,32], index: 22, kind: input, shape index: {}]
  %s23 = inlined_call_operand.vmem [shape: f32[1,32], index: 23, kind: input, shape index: {}]
  %s24 = inlined_call_operand.vmem [shape: f32[1,32], index: 24, kind: input, shape index: {}]
  %s25 = inlined_call_operand.vmem [shape: f32[32,128], index: 25, kind: input, shape index: {}]
  %s26 = inlined_call_operand.vmem [shape: f32[1,128], index: 26, kind: input, shape index: {}]
  %s27 = inlined_call_operand.hbm [shape: f32[2,8,128], index: 27, kind: output, shape index: {}]
  %s28 = sld [smem:[#allocation0]]
  $region141: #{rnaformer_forward.1} parent=0
    _
  %s30 = ssub.s32 1, %s28
  %s31 = scalar_select 0, %s30, %s28
  $region1: #{rnaformer_forward.1} parent=0
    #allocation2 [shape = 'u8[8192]{0}', space=vmem, size = 0x2000, scoped, tag = 'output window, operand 0']
    #allocation3 [shape = 's32[2]{0}', space=sflag, size = 0x8, scoped, tag = 'scoped memory for rnaformer_forward.1']
    %32 = vsyncpa [#allocation3], 0
    %s33 = scalar_lea.sflag [#allocation3], 1
    %34 = vsyncpa %s33, 0
    loop: start=0, step=1, limit=4
    $region2: #{rnaformer_forward.1} parent=1 // loop_pre_header
      _
    $region3: #{rnaformer_forward.1} parent=1 // loop_header
      %s36 = sphi 0, %s40
      %p37 = scmp.ge.s32.totalorder %s36, 4
      %s46 = sphi 0, %s48
      %s49 = sphi 0, %s46
      %s50 = sphi 0, %s49
      %s66 = sphi 0, %s50
      %s72 = sphi 0, %s74
      %s75 = sphi 0, %s72
      %s76 = sphi 0, %s75
      %s92 = sphi 0, %s76
      %s98 = sphi 0, %s100
      %s101 = sphi 0, %s98
      %s102 = sphi 0, %s101
      %s118 = sphi 0, %s102
      %s122 = sphi 0, %s122
      %s124 = sphi 0, %s122
      %s125 = sphi 0, %s124
      %s139 = sphi 0, %s125
      %s143 = sphi 0, %s143
      %s145 = sphi 0, %s143
      %s146 = sphi 0, %s145
      %s160 = sphi 0, %s146
      %s164 = sphi 0, %s164
      %s166 = sphi 0, %s164
      %s167 = sphi 0, %s166
      %s181 = sphi 0, %s167
      %s185 = sphi 0, %s185
      %s187 = sphi 0, %s185
      %s188 = sphi 0, %s187
      %s202 = sphi 0, %s188
      %s206 = sphi 0, %s206
      %s208 = sphi 0, %s206
      %s209 = sphi 0, %s208
      %s223 = sphi 0, %s209
      %s227 = sphi 0, %s227
      %s229 = sphi 0, %s227
      %s230 = sphi 0, %s229
      %s244 = sphi 0, %s230
      %s248 = sphi 0, %s248
      %s250 = sphi 0, %s248
      %s251 = sphi 0, %s250
      %s265 = sphi 0, %s251
      %s269 = sphi 0, %s269
      %s271 = sphi 0, %s269
      %s272 = sphi 0, %s271
      %s286 = sphi 0, %s272
      %s290 = sphi 0, %s290
      %s292 = sphi 0, %s290
      %s293 = sphi 0, %s292
      %s307 = sphi 0, %s293
      %s311 = sphi 0, %s311
      %s313 = sphi 0, %s311
      %s314 = sphi 0, %s313
      %s328 = sphi 0, %s314
      %s332 = sphi 0, %s332
      %s334 = sphi 0, %s332
      %s335 = sphi 0, %s334
      %s349 = sphi 0, %s335
      %s353 = sphi 0, %s353
      %s355 = sphi 0, %s353
      %s356 = sphi 0, %s355
      %s370 = sphi 0, %s356
      %s374 = sphi 0, %s374
      %s376 = sphi 0, %s374
      %s377 = sphi 0, %s376
      %s391 = sphi 0, %s377
      %s395 = sphi 0, %s395
      %s397 = sphi 0, %s395
      %s398 = sphi 0, %s397
      %s412 = sphi 0, %s398
      %s416 = sphi 0, %s416
      %s418 = sphi 0, %s416
      %s419 = sphi 0, %s418
      %s433 = sphi 0, %s419
      %s437 = sphi 0, %s437
      %s439 = sphi 0, %s437
      %s440 = sphi 0, %s439
      %s454 = sphi 0, %s440
      %s458 = sphi 0, %s458
      %s460 = sphi 0, %s458
      %s461 = sphi 0, %s460
      %s475 = sphi 0, %s461
      %s479 = sphi 0, %s479
      %s481 = sphi 0, %s479
      %s482 = sphi 0, %s481
      %s496 = sphi 0, %s482
      %s500 = sphi 0, %s500
      %s502 = sphi 0, %s500
      %s503 = sphi 0, %s502
      %s517 = sphi 0, %s503
      %s521 = sphi 0, %s521
      %s523 = sphi 0, %s521
      %s524 = sphi 0, %s523
      %s538 = sphi 0, %s524
      %s542 = sphi 0, %s542
      %s544 = sphi 0, %s542
      %s545 = sphi 0, %s544
      %s559 = sphi 0, %s545
      %s563 = sphi 0, %s563
      %s565 = sphi 0, %s563
      %s566 = sphi 0, %s565
      %s580 = sphi 0, %s566
      %s584 = sphi 0, %s584
      %s586 = sphi 0, %s584
      %s587 = sphi 0, %s586
      %s601 = sphi 0, %s587
      %s605 = sphi 0, %s605
      %s607 = sphi 0, %s605
      %s608 = sphi 0, %s607
      %s622 = sphi 0, %s608
      %s628 = sphi 0, %s630
      %s631 = sphi 0, %s628
      %s632 = sphi 0, %s631
      %s648 = sphi 0, %s632
    $region4: #{rnaformer_forward.1} parent=1 // loop_header_branch
      %39 = sbr.rel (%p37) target = $region8
    $region5: #{rnaformer_forward.1} parent=1 // loop_body
      %s41 = ssub.s32 %s36, 1
      %s42 = ssub.s32 %s36, 2
      %s43 = sadd.s32 %s36, 1
      %s44 = ssub.s32 %s36, %s43
      %p45 = scmp.eq.s32.totalorder %s44, 0
      %s47 = sadd.s32 %s46, 1
      %s48 = scalar_select %p45, %s46, %s47
      %p51 = pneg %p45
      %p52 = scmp.eq.s32.totalorder %s36, 1
      %p53 = por %p51, %p52
      %p54 = scmp.ne.s32.totalorder %s46, %s49
      %p55 = scmp.eq.s32.totalorder %s36, 0
      %p56 = por %p54, %p55
      %p57 = scmp.ne.s32.totalorder %s46, %s49
      %p58 = scmp.eq.s32.totalorder %s41, 1
      %p59 = por %p57, %p58
      %p60 = scmp.ne.s32.totalorder %s49, %s50
      %p61 = scmp.eq.s32.totalorder %s41, 0
      %p62 = por %p60, %p61
      %p63 = scmp.ne.s32.totalorder %s49, %s50
      %p64 = scmp.eq.s32.totalorder %s42, 1
      %p65 = por %p63, %p64
      %p67 = scmp.ne.s32.totalorder %s50, %s66
      %p68 = scmp.eq.s32.totalorder %s42, 0
      %p69 = por %p67, %p68
      %s70 = ssub.s32 %s36, %s43
      %p71 = scmp.eq.s32.totalorder %s70, 0
      %s73 = sadd.s32 %s72, 1
      %s74 = scalar_select %p71, %s72, %s73
      %p77 = pneg %p71
      %p78 = scmp.eq.s32.totalorder %s36, 1
      %p79 = por %p77, %p78
      %p80 = scmp.ne.s32.totalorder %s72, %s75
      %p81 = scmp.eq.s32.totalorder %s36, 0
      %p82 = por %p80, %p81
      %p83 = scmp.ne.s32.totalorder %s72, %s75
      %p84 = scmp.eq.s32.totalorder %s41, 1
      %p85 = por %p83, %p84
      %p86 = scmp.ne.s32.totalorder %s75, %s76
      %p87 = scmp.eq.s32.totalorder %s41, 0
      %p88 = por %p86, %p87
      %p89 = scmp.ne.s32.totalorder %s75, %s76
      %p90 = scmp.eq.s32.totalorder %s42, 1
      %p91 = por %p89, %p90
      %p93 = scmp.ne.s32.totalorder %s76, %s92
      %p94 = scmp.eq.s32.totalorder %s42, 0
      %p95 = por %p93, %p94
      %s96 = ssub.s32 %s36, %s43
      %p97 = scmp.eq.s32.totalorder %s96, 0
      %s99 = sadd.s32 %s98, 1
      %s100 = scalar_select %p97, %s98, %s99
      %p103 = pneg %p97
      %p104 = scmp.eq.s32.totalorder %s36, 1
      %p105 = por %p103, %p104
      %p106 = scmp.ne.s32.totalorder %s98, %s101
      %p107 = scmp.eq.s32.totalorder %s36, 0
      %p108 = por %p106, %p107
      %p109 = scmp.ne.s32.totalorder %s98, %s101
      %p110 = scmp.eq.s32.totalorder %s41, 1
      %p111 = por %p109, %p110
      %p112 = scmp.ne.s32.totalorder %s101, %s102
      %p113 = scmp.eq.s32.totalorder %s41, 0
      %p114 = por %p112, %p113
      %p115 = scmp.ne.s32.totalorder %s101, %s102
      %p116 = scmp.eq.s32.totalorder %s42, 1
      %p117 = por %p115, %p116
      %p119 = scmp.ne.s32.totalorder %s102, %s118
      %p120 = scmp.eq.s32.totalorder %s42, 0
      %p121 = por %p119, %p120
      %s123 = sadd.s32 %s122, 1
      %p126 = scmp.eq.s32.totalorder %s36, 1
      %p127 = scmp.ne.s32.totalorder %s122, %s124
      %p128 = scmp.eq.s32.totalorder %s36, 0
      %p129 = por %p127, %p128
      %p130 = scmp.ne.s32.totalorder %s122, %s124
      %p131 = scmp.eq.s32.totalorder %s41, 1
      %p132 = por %p130, %p131
      %p133 = scmp.ne.s32.totalorder %s124, %s125
      %p134 = scmp.eq.s32.totalorder %s41, 0
      %p135 = por %p133, %p134
      %p136 = scmp.ne.s32.totalorder %s124, %s125
      %p137 = scmp.eq.s32.totalorder %s42, 1
      %p138 = por %p136, %p137
      %p140 = scmp.ne.s32.totalorder %s125, %s139
      %p141 = scmp.eq.s32.totalorder %s42, 0
      %p142 = por %p140, %p141
      %s144 = sadd.s32 %s143, 1
      %p147 = scmp.eq.s32.totalorder %s36, 1
      %p148 = scmp.ne.s32.totalorder %s143, %s145
      %p149 = scmp.eq.s32.totalorder %s36, 0
      %p150 = por %p148, %p149
      %p151 = scmp.ne.s32.totalorder %s143, %s145
      %p152 = scmp.eq.s32.totalorder %s41, 1
      %p153 = por %p151, %p152
      %p154 = scmp.ne.s32.totalorder %s145, %s146
      %p155 = scmp.eq.s32.totalorder %s41, 0
      %p156 = por %p154, %p155
      %p157 = scmp.ne.s32.totalorder %s145, %s146
      %p158 = scmp.eq.s32.totalorder %s42, 1
      %p159 = por %p157, %p158
      %p161 = scmp.ne.s32.totalorder %s146, %s160
      %p162 = scmp.eq.s32.totalorder %s42, 0
      %p163 = por %p161, %p162
      %s165 = sadd.s32 %s164, 1
      %p168 = scmp.eq.s32.totalorder %s36, 1
      %p169 = scmp.ne.s32.totalorder %s164, %s166
      %p170 = scmp.eq.s32.totalorder %s36, 0
      %p171 = por %p169, %p170
      %p172 = scmp.ne.s32.totalorder %s164, %s166
      %p173 = scmp.eq.s32.totalorder %s41, 1
      %p174 = por %p172, %p173
      %p175 = scmp.ne.s32.totalorder %s166, %s167
      %p176 = scmp.eq.s32.totalorder %s41, 0
      %p177 = por %p175, %p176
      %p178 = scmp.ne.s32.totalorder %s166, %s167
      %p179 = scmp.eq.s32.totalorder %s42, 1
      %p180 = por %p178, %p179
      %p182 = scmp.ne.s32.totalorder %s167, %s181
      %p183 = scmp.eq.s32.totalorder %s42, 0
      %p184 = por %p182, %p183
      %s186 = sadd.s32 %s185, 1
      %p189 = scmp.eq.s32.totalorder %s36, 1
      %p190 = scmp.ne.s32.totalorder %s185, %s187
      %p191 = scmp.eq.s32.totalorder %s36, 0
      %p192 = por %p190, %p191
      %p193 = scmp.ne.s32.totalorder %s185, %s187
      %p194 = scmp.eq.s32.totalorder %s41, 1
      %p195 = por %p193, %p194
      %p196 = scmp.ne.s32.totalorder %s187, %s188
      %p197 = scmp.eq.s32.totalorder %s41, 0
      %p198 = por %p196, %p197
      %p199 = scmp.ne.s32.totalorder %s187, %s188
      %p200 = scmp.eq.s32.totalorder %s42, 1
      %p201 = por %p199, %p200
      %p203 = scmp.ne.s32.totalorder %s188, %s202
      %p204 = scmp.eq.s32.totalorder %s42, 0
      %p205 = por %p203, %p204
      %s207 = sadd.s32 %s206, 1
      %p210 = scmp.eq.s32.totalorder %s36, 1
      %p211 = scmp.ne.s32.totalorder %s206, %s208
      %p212 = scmp.eq.s32.totalorder %s36, 0
      %p213 = por %p211, %p212
      %p214 = scmp.ne.s32.totalorder %s206, %s208
      %p215 = scmp.eq.s32.totalorder %s41, 1
      %p216 = por %p214, %p215
      %p217 = scmp.ne.s32.totalorder %s208, %s209
      %p218 = scmp.eq.s32.totalorder %s41, 0
      %p219 = por %p217, %p218
      %p220 = scmp.ne.s32.totalorder %s208, %s209
      %p221 = scmp.eq.s32.totalorder %s42, 1
      %p222 = por %p220, %p221
      %p224 = scmp.ne.s32.totalorder %s209, %s223
      %p225 = scmp.eq.s32.totalorder %s42, 0
      %p226 = por %p224, %p225
      %s228 = sadd.s32 %s227, 1
      %p231 = scmp.eq.s32.totalorder %s36, 1
      %p232 = scmp.ne.s32.totalorder %s227, %s229
      %p233 = scmp.eq.s32.totalorder %s36, 0
      %p234 = por %p232, %p233
      %p235 = scmp.ne.s32.totalorder %s227, %s229
      %p236 = scmp.eq.s32.totalorder %s41, 1
      %p237 = por %p235, %p236
      %p238 = scmp.ne.s32.totalorder %s229, %s230
      %p239 = scmp.eq.s32.totalorder %s41, 0
      %p240 = por %p238, %p239
      %p241 = scmp.ne.s32.totalorder %s229, %s230
      %p242 = scmp.eq.s32.totalorder %s42, 1
      %p243 = por %p241, %p242
      %p245 = scmp.ne.s32.totalorder %s230, %s244
      %p246 = scmp.eq.s32.totalorder %s42, 0
      %p247 = por %p245, %p246
      %s249 = sadd.s32 %s248, 1
      %p252 = scmp.eq.s32.totalorder %s36, 1
      %p253 = scmp.ne.s32.totalorder %s248, %s250
      %p254 = scmp.eq.s32.totalorder %s36, 0
      %p255 = por %p253, %p254
      %p256 = scmp.ne.s32.totalorder %s248, %s250
      %p257 = scmp.eq.s32.totalorder %s41, 1
      %p258 = por %p256, %p257
      %p259 = scmp.ne.s32.totalorder %s250, %s251
      %p260 = scmp.eq.s32.totalorder %s41, 0
      %p261 = por %p259, %p260
      %p262 = scmp.ne.s32.totalorder %s250, %s251
      %p263 = scmp.eq.s32.totalorder %s42, 1
      %p264 = por %p262, %p263
      %p266 = scmp.ne.s32.totalorder %s251, %s265
      %p267 = scmp.eq.s32.totalorder %s42, 0
      %p268 = por %p266, %p267
      %s270 = sadd.s32 %s269, 1
      %p273 = scmp.eq.s32.totalorder %s36, 1
      %p274 = scmp.ne.s32.totalorder %s269, %s271
      %p275 = scmp.eq.s32.totalorder %s36, 0
      %p276 = por %p274, %p275
      %p277 = scmp.ne.s32.totalorder %s269, %s271
      %p278 = scmp.eq.s32.totalorder %s41, 1
      %p279 = por %p277, %p278
      %p280 = scmp.ne.s32.totalorder %s271, %s272
      %p281 = scmp.eq.s32.totalorder %s41, 0
      %p282 = por %p280, %p281
      %p283 = scmp.ne.s32.totalorder %s271, %s272
      %p284 = scmp.eq.s32.totalorder %s42, 1
      %p285 = por %p283, %p284
      %p287 = scmp.ne.s32.totalorder %s272, %s286
      %p288 = scmp.eq.s32.totalorder %s42, 0
      %p289 = por %p287, %p288
      %s291 = sadd.s32 %s290, 1
      %p294 = scmp.eq.s32.totalorder %s36, 1
      %p295 = scmp.ne.s32.totalorder %s290, %s292
      %p296 = scmp.eq.s32.totalorder %s36, 0
      %p297 = por %p295, %p296
      %p298 = scmp.ne.s32.totalorder %s290, %s292
      %p299 = scmp.eq.s32.totalorder %s41, 1
      %p300 = por %p298, %p299
      %p301 = scmp.ne.s32.totalorder %s292, %s293
      %p302 = scmp.eq.s32.totalorder %s41, 0
      %p303 = por %p301, %p302
      %p304 = scmp.ne.s32.totalorder %s292, %s293
      %p305 = scmp.eq.s32.totalorder %s42, 1
      %p306 = por %p304, %p305
      %p308 = scmp.ne.s32.totalorder %s293, %s307
      %p309 = scmp.eq.s32.totalorder %s42, 0
      %p310 = por %p308, %p309
      %s312 = sadd.s32 %s311, 1
      %p315 = scmp.eq.s32.totalorder %s36, 1
      %p316 = scmp.ne.s32.totalorder %s311, %s313
      %p317 = scmp.eq.s32.totalorder %s36, 0
      %p318 = por %p316, %p317
      %p319 = scmp.ne.s32.totalorder %s311, %s313
      %p320 = scmp.eq.s32.totalorder %s41, 1
      %p321 = por %p319, %p320
      %p322 = scmp.ne.s32.totalorder %s313, %s314
      %p323 = scmp.eq.s32.totalorder %s41, 0
      %p324 = por %p322, %p323
      %p325 = scmp.ne.s32.totalorder %s313, %s314
      %p326 = scmp.eq.s32.totalorder %s42, 1
      %p327 = por %p325, %p326
      %p329 = scmp.ne.s32.totalorder %s314, %s328
      %p330 = scmp.eq.s32.totalorder %s42, 0
      %p331 = por %p329, %p330
      %s333 = sadd.s32 %s332, 1
      %p336 = scmp.eq.s32.totalorder %s36, 1
      %p337 = scmp.ne.s32.totalorder %s332, %s334
      %p338 = scmp.eq.s32.totalorder %s36, 0
      %p339 = por %p337, %p338
      %p340 = scmp.ne.s32.totalorder %s332, %s334
      %p341 = scmp.eq.s32.totalorder %s41, 1
      %p342 = por %p340, %p341
      %p343 = scmp.ne.s32.totalorder %s334, %s335
      %p344 = scmp.eq.s32.totalorder %s41, 0
      %p345 = por %p343, %p344
      %p346 = scmp.ne.s32.totalorder %s334, %s335
      %p347 = scmp.eq.s32.totalorder %s42, 1
      %p348 = por %p346, %p347
      %p350 = scmp.ne.s32.totalorder %s335, %s349
      %p351 = scmp.eq.s32.totalorder %s42, 0
      %p352 = por %p350, %p351
      %s354 = sadd.s32 %s353, 1
      %p357 = scmp.eq.s32.totalorder %s36, 1
      %p358 = scmp.ne.s32.totalorder %s353, %s355
      %p359 = scmp.eq.s32.totalorder %s36, 0
      %p360 = por %p358, %p359
      %p361 = scmp.ne.s32.totalorder %s353, %s355
      %p362 = scmp.eq.s32.totalorder %s41, 1
      %p363 = por %p361, %p362
      %p364 = scmp.ne.s32.totalorder %s355, %s356
      %p365 = scmp.eq.s32.totalorder %s41, 0
      %p366 = por %p364, %p365
      %p367 = scmp.ne.s32.totalorder %s355, %s356
      %p368 = scmp.eq.s32.totalorder %s42, 1
      %p369 = por %p367, %p368
      %p371 = scmp.ne.s32.totalorder %s356, %s370
      %p372 = scmp.eq.s32.totalorder %s42, 0
      %p373 = por %p371, %p372
      %s375 = sadd.s32 %s374, 1
      %p378 = scmp.eq.s32.totalorder %s36, 1
      %p379 = scmp.ne.s32.totalorder %s374, %s376
      %p380 = scmp.eq.s32.totalorder %s36, 0
      %p381 = por %p379, %p380
      %p382 = scmp.ne.s32.totalorder %s374, %s376
      %p383 = scmp.eq.s32.totalorder %s41, 1
      %p384 = por %p382, %p383
      %p385 = scmp.ne.s32.totalorder %s376, %s377
      %p386 = scmp.eq.s32.totalorder %s41, 0
      %p387 = por %p385, %p386
      %p388 = scmp.ne.s32.totalorder %s376, %s377
      %p389 = scmp.eq.s32.totalorder %s42, 1
      %p390 = por %p388, %p389
      %p392 = scmp.ne.s32.totalorder %s377, %s391
      %p393 = scmp.eq.s32.totalorder %s42, 0
      %p394 = por %p392, %p393
      %s396 = sadd.s32 %s395, 1
      %p399 = scmp.eq.s32.totalorder %s36, 1
      %p400 = scmp.ne.s32.totalorder %s395, %s397
      %p401 = scmp.eq.s32.totalorder %s36, 0
      %p402 = por %p400, %p401
      %p403 = scmp.ne.s32.totalorder %s395, %s397
      %p404 = scmp.eq.s32.totalorder %s41, 1
      %p405 = por %p403, %p404
      %p406 = scmp.ne.s32.totalorder %s397, %s398
      %p407 = scmp.eq.s32.totalorder %s41, 0
      %p408 = por %p406, %p407
      %p409 = scmp.ne.s32.totalorder %s397, %s398
      %p410 = scmp.eq.s32.totalorder %s42, 1
      %p411 = por %p409, %p410
      %p413 = scmp.ne.s32.totalorder %s398, %s412
      %p414 = scmp.eq.s32.totalorder %s42, 0
      %p415 = por %p413, %p414
      %s417 = sadd.s32 %s416, 1
      %p420 = scmp.eq.s32.totalorder %s36, 1
      %p421 = scmp.ne.s32.totalorder %s416, %s418
      %p422 = scmp.eq.s32.totalorder %s36, 0
      %p423 = por %p421, %p422
      %p424 = scmp.ne.s32.totalorder %s416, %s418
      %p425 = scmp.eq.s32.totalorder %s41, 1
      %p426 = por %p424, %p425
      %p427 = scmp.ne.s32.totalorder %s418, %s419
      %p428 = scmp.eq.s32.totalorder %s41, 0
      %p429 = por %p427, %p428
      %p430 = scmp.ne.s32.totalorder %s418, %s419
      %p431 = scmp.eq.s32.totalorder %s42, 1
      %p432 = por %p430, %p431
      %p434 = scmp.ne.s32.totalorder %s419, %s433
      %p435 = scmp.eq.s32.totalorder %s42, 0
      %p436 = por %p434, %p435
      %s438 = sadd.s32 %s437, 1
      %p441 = scmp.eq.s32.totalorder %s36, 1
      %p442 = scmp.ne.s32.totalorder %s437, %s439
      %p443 = scmp.eq.s32.totalorder %s36, 0
      %p444 = por %p442, %p443
      %p445 = scmp.ne.s32.totalorder %s437, %s439
      %p446 = scmp.eq.s32.totalorder %s41, 1
      %p447 = por %p445, %p446
      %p448 = scmp.ne.s32.totalorder %s439, %s440
      %p449 = scmp.eq.s32.totalorder %s41, 0
      %p450 = por %p448, %p449
      %p451 = scmp.ne.s32.totalorder %s439, %s440
      %p452 = scmp.eq.s32.totalorder %s42, 1
      %p453 = por %p451, %p452
      %p455 = scmp.ne.s32.totalorder %s440, %s454
      %p456 = scmp.eq.s32.totalorder %s42, 0
      %p457 = por %p455, %p456
      %s459 = sadd.s32 %s458, 1
      %p462 = scmp.eq.s32.totalorder %s36, 1
      %p463 = scmp.ne.s32.totalorder %s458, %s460
      %p464 = scmp.eq.s32.totalorder %s36, 0
      %p465 = por %p463, %p464
      %p466 = scmp.ne.s32.totalorder %s458, %s460
      %p467 = scmp.eq.s32.totalorder %s41, 1
      %p468 = por %p466, %p467
      %p469 = scmp.ne.s32.totalorder %s460, %s461
      %p470 = scmp.eq.s32.totalorder %s41, 0
      %p471 = por %p469, %p470
      %p472 = scmp.ne.s32.totalorder %s460, %s461
      %p473 = scmp.eq.s32.totalorder %s42, 1
      %p474 = por %p472, %p473
      %p476 = scmp.ne.s32.totalorder %s461, %s475
      %p477 = scmp.eq.s32.totalorder %s42, 0
      %p478 = por %p476, %p477
      %s480 = sadd.s32 %s479, 1
      %p483 = scmp.eq.s32.totalorder %s36, 1
      %p484 = scmp.ne.s32.totalorder %s479, %s481
      %p485 = scmp.eq.s32.totalorder %s36, 0
      %p486 = por %p484, %p485
      %p487 = scmp.ne.s32.totalorder %s479, %s481
      %p488 = scmp.eq.s32.totalorder %s41, 1
      %p489 = por %p487, %p488
      %p490 = scmp.ne.s32.totalorder %s481, %s482
      %p491 = scmp.eq.s32.totalorder %s41, 0
      %p492 = por %p490, %p491
      %p493 = scmp.ne.s32.totalorder %s481, %s482
      %p494 = scmp.eq.s32.totalorder %s42, 1
      %p495 = por %p493, %p494
      %p497 = scmp.ne.s32.totalorder %s482, %s496
      %p498 = scmp.eq.s32.totalorder %s42, 0
      %p499 = por %p497, %p498
      %s501 = sadd.s32 %s500, 1
      %p504 = scmp.eq.s32.totalorder %s36, 1
      %p505 = scmp.ne.s32.totalorder %s500, %s502
      %p506 = scmp.eq.s32.totalorder %s36, 0
      %p507 = por %p505, %p506
      %p508 = scmp.ne.s32.totalorder %s500, %s502
      %p509 = scmp.eq.s32.totalorder %s41, 1
      %p510 = por %p508, %p509
      %p511 = scmp.ne.s32.totalorder %s502, %s503
      %p512 = scmp.eq.s32.totalorder %s41, 0
      %p513 = por %p511, %p512
      %p514 = scmp.ne.s32.totalorder %s502, %s503
      %p515 = scmp.eq.s32.totalorder %s42, 1
      %p516 = por %p514, %p515
      %p518 = scmp.ne.s32.totalorder %s503, %s517
      %p519 = scmp.eq.s32.totalorder %s42, 0
      %p520 = por %p518, %p519
      %s522 = sadd.s32 %s521, 1
      %p525 = scmp.eq.s32.totalorder %s36, 1
      %p526 = scmp.ne.s32.totalorder %s521, %s523
      %p527 = scmp.eq.s32.totalorder %s36, 0
      %p528 = por %p526, %p527
      %p529 = scmp.ne.s32.totalorder %s521, %s523
      %p530 = scmp.eq.s32.totalorder %s41, 1
      %p531 = por %p529, %p530
      %p532 = scmp.ne.s32.totalorder %s523, %s524
      %p533 = scmp.eq.s32.totalorder %s41, 0
      %p534 = por %p532, %p533
      %p535 = scmp.ne.s32.totalorder %s523, %s524
      %p536 = scmp.eq.s32.totalorder %s42, 1
      %p537 = por %p535, %p536
      %p539 = scmp.ne.s32.totalorder %s524, %s538
      %p540 = scmp.eq.s32.totalorder %s42, 0
      %p541 = por %p539, %p540
      %s543 = sadd.s32 %s542, 1
      %p546 = scmp.eq.s32.totalorder %s36, 1
      %p547 = scmp.ne.s32.totalorder %s542, %s544
      %p548 = scmp.eq.s32.totalorder %s36, 0
      %p549 = por %p547, %p548
      %p550 = scmp.ne.s32.totalorder %s542, %s544
      %p551 = scmp.eq.s32.totalorder %s41, 1
      %p552 = por %p550, %p551
      %p553 = scmp.ne.s32.totalorder %s544, %s545
      %p554 = scmp.eq.s32.totalorder %s41, 0
      %p555 = por %p553, %p554
      %p556 = scmp.ne.s32.totalorder %s544, %s545
      %p557 = scmp.eq.s32.totalorder %s42, 1
      %p558 = por %p556, %p557
      %p560 = scmp.ne.s32.totalorder %s545, %s559
      %p561 = scmp.eq.s32.totalorder %s42, 0
      %p562 = por %p560, %p561
      %s564 = sadd.s32 %s563, 1
      %p567 = scmp.eq.s32.totalorder %s36, 1
      %p568 = scmp.ne.s32.totalorder %s563, %s565
      %p569 = scmp.eq.s32.totalorder %s36, 0
      %p570 = por %p568, %p569
      %p571 = scmp.ne.s32.totalorder %s563, %s565
      %p572 = scmp.eq.s32.totalorder %s41, 1
      %p573 = por %p571, %p572
      %p574 = scmp.ne.s32.totalorder %s565, %s566
      %p575 = scmp.eq.s32.totalorder %s41, 0
      %p576 = por %p574, %p575
      %p577 = scmp.ne.s32.totalorder %s565, %s566
      %p578 = scmp.eq.s32.totalorder %s42, 1
      %p579 = por %p577, %p578
      %p581 = scmp.ne.s32.totalorder %s566, %s580
      %p582 = scmp.eq.s32.totalorder %s42, 0
      %p583 = por %p581, %p582
      %s585 = sadd.s32 %s584, 1
      %p588 = scmp.eq.s32.totalorder %s36, 1
      %p589 = scmp.ne.s32.totalorder %s584, %s586
      %p590 = scmp.eq.s32.totalorder %s36, 0
      %p591 = por %p589, %p590
      %p592 = scmp.ne.s32.totalorder %s584, %s586
      %p593 = scmp.eq.s32.totalorder %s41, 1
      %p594 = por %p592, %p593
      %p595 = scmp.ne.s32.totalorder %s586, %s587
      %p596 = scmp.eq.s32.totalorder %s41, 0
      %p597 = por %p595, %p596
      %p598 = scmp.ne.s32.totalorder %s586, %s587
      %p599 = scmp.eq.s32.totalorder %s42, 1
      %p600 = por %p598, %p599
      %p602 = scmp.ne.s32.totalorder %s587, %s601
      %p603 = scmp.eq.s32.totalorder %s42, 0
      %p604 = por %p602, %p603
      %s606 = sadd.s32 %s605, 1
      %p609 = scmp.eq.s32.totalorder %s36, 1
      %p610 = scmp.ne.s32.totalorder %s605, %s607
      %p611 = scmp.eq.s32.totalorder %s36, 0
      %p612 = por %p610, %p611
      %p613 = scmp.ne.s32.totalorder %s605, %s607
      %p614 = scmp.eq.s32.totalorder %s41, 1
      %p615 = por %p613, %p614
      %p616 = scmp.ne.s32.totalorder %s607, %s608
      %p617 = scmp.eq.s32.totalorder %s41, 0
      %p618 = por %p616, %p617
      %p619 = scmp.ne.s32.totalorder %s607, %s608
      %p620 = scmp.eq.s32.totalorder %s42, 1
      %p621 = por %p619, %p620
      %p623 = scmp.ne.s32.totalorder %s608, %s622
      %p624 = scmp.eq.s32.totalorder %s42, 0
      %p625 = por %p623, %p624
      %s626 = ssub.s32 %s36, %s43
      %p627 = scmp.eq.s32.totalorder %s626, 0
      %s629 = sadd.s32 %s628, 1
      %s630 = scalar_select %p627, %s628, %s629
      %p633 = pneg %p627
      %p634 = scmp.eq.s32.totalorder %s36, 1
      %p635 = por %p633, %p634
      %p636 = scmp.ne.s32.totalorder %s628, %s631
      %p637 = scmp.eq.s32.totalorder %s36, 0
      %p638 = por %p636, %p637
      %p639 = scmp.ne.s32.totalorder %s628, %s631
      %p640 = scmp.eq.s32.totalorder %s41, 1
      %p641 = por %p639, %p640
      %p642 = scmp.ne.s32.totalorder %s631, %s632
      %p643 = scmp.eq.s32.totalorder %s41, 0
      %p644 = por %p642, %p643
      %p645 = scmp.ne.s32.totalorder %s631, %s632
      %p646 = scmp.eq.s32.totalorder %s42, 1
      %p647 = por %p645, %p646
      %p649 = scmp.ne.s32.totalorder %s632, %s648
      %p650 = scmp.eq.s32.totalorder %s42, 0
      %p651 = por %p649, %p650
      %p652 = scmp.le.s32.totalorder 1, %s36
      %p653 = scmp.lt.s32.totalorder %s36, 3
      %p654 = pnand %p652, %p653
      %p655 = pneg %p654
      // Predicated region
      $region9: #{rnaformer_forward.1} parent=5 // pred_check
        _
      $region10: #{rnaformer_forward.1} parent=5 // pred_check_branch
        %657 = sbr.rel (%p654) target = $region12
      $region11: #{rnaformer_forward.1} parent=5 // pred_region
        %s658 = ssub.s32 %s36, 1
        // Predicated region
        $region13: #{rnaformer_forward.1} parent=11 // pred_check
          %p659 = pneg %p135
        $region14: #{rnaformer_forward.1} parent=11 // pred_check_branch
          %661 = sbr.rel (%p659) target = $region16
        $region15: #{rnaformer_forward.1} parent=11 // pred_region
          _
        $region16: #{rnaformer_forward.1} parent=11 // pred_fallthru
          _
        // Predicated region
        $region17: #{rnaformer_forward.1} parent=11 // pred_check
          %p662 = pneg %p156
        $region18: #{rnaformer_forward.1} parent=11 // pred_check_branch
          %664 = sbr.rel (%p662) target = $region20
        $region19: #{rnaformer_forward.1} parent=11 // pred_region
          _
        $region20: #{rnaformer_forward.1} parent=11 // pred_fallthru
          _
        // Predicated region
        $region21: #{rnaformer_forward.1} parent=11 // pred_check
          %p665 = pneg %p177
        $region22: #{rnaformer_forward.1} parent=11 // pred_check_branch
          %667 = sbr.rel (%p665) target = $region24
        $region23: #{rnaformer_forward.1} parent=11 // pred_region
          _
        $region24: #{rnaformer_forward.1} parent=11 // pred_fallthru
          _
        // Predicated region
        $region25: #{rnaformer_forward.1} parent=11 // pred_check
          %p668 = pneg %p198
        $region26: #{rnaformer_forward.1} parent=11 // pred_check_branch
          %670 = sbr.rel (%p668) target = $region28
        $region27: #{rnaformer_forward.1} parent=11 // pred_region
          _
        $region28: #{rnaformer_forward.1} parent=11 // pred_fallthru
          _
        // Predicated region
        $region29: #{rnaformer_forward.1} parent=11 // pred_check
          %p671 = pneg %p219
        $region30: #{rnaformer_forward.1} parent=11 // pred_check_branch
          %673 = sbr.rel (%p671) target = $region32
        $region31: #{rnaformer_forward.1} parent=11 // pred_region
          _
        $region32: #{rnaformer_forward.1} parent=11 // pred_fallthru
          _
        // Predicated region
        $region33: #{rnaformer_forward.1} parent=11 // pred_check
          %p674 = pneg %p240
        $region34: #{rnaformer_forward.1} parent=11 // pred_check_branch
          %676 = sbr.rel (%p674) target = $region36
        $region35: #{rnaformer_forward.1} parent=11 // pred_region
          _
        $region36: #{rnaformer_forward.1} parent=11 // pred_fallthru
          _
        // Predicated region
        $region37: #{rnaformer_forward.1} parent=11 // pred_check
          %p677 = pneg %p261
        $region38: #{rnaformer_forward.1} parent=11 // pred_check_branch
          %679 = sbr.rel (%p677) target = $region40
        $region39: #{rnaformer_forward.1} parent=11 // pred_region
          _
        $region40: #{rnaformer_forward.1} parent=11 // pred_fallthru
          _
        // Predicated region
        $region41: #{rnaformer_forward.1} parent=11 // pred_check
          %p680 = pneg %p282
        $region42: #{rnaformer_forward.1} parent=11 // pred_check_branch
          %682 = sbr.rel (%p680) target = $region44
        $region43: #{rnaformer_forward.1} parent=11 // pred_region
          _
        $region44: #{rnaformer_forward.1} parent=11 // pred_fallthru
          _
        // Predicated region
        $region45: #{rnaformer_forward.1} parent=11 // pred_check
          %p683 = pneg %p303
        $region46: #{rnaformer_forward.1} parent=11 // pred_check_branch
          %685 = sbr.rel (%p683) target = $region48
        $region47: #{rnaformer_forward.1} parent=11 // pred_region
          _
        $region48: #{rnaformer_forward.1} parent=11 // pred_fallthru
          _
        // Predicated region
        $region49: #{rnaformer_forward.1} parent=11 // pred_check
          %p686 = pneg %p324
        $region50: #{rnaformer_forward.1} parent=11 // pred_check_branch
          %688 = sbr.rel (%p686) target = $region52
        $region51: #{rnaformer_forward.1} parent=11 // pred_region
          _
        $region52: #{rnaformer_forward.1} parent=11 // pred_fallthru
          _
        // Predicated region
        $region53: #{rnaformer_forward.1} parent=11 // pred_check
          %p689 = pneg %p345
        $region54: #{rnaformer_forward.1} parent=11 // pred_check_branch
          %691 = sbr.rel (%p689) target = $region56
        $region55: #{rnaformer_forward.1} parent=11 // pred_region
          _
        $region56: #{rnaformer_forward.1} parent=11 // pred_fallthru
          _
        // Predicated region
        $region57: #{rnaformer_forward.1} parent=11 // pred_check
          %p692 = pneg %p366
        $region58: #{rnaformer_forward.1} parent=11 // pred_check_branch
          %694 = sbr.rel (%p692) target = $region60
        $region59: #{rnaformer_forward.1} parent=11 // pred_region
          _
        $region60: #{rnaformer_forward.1} parent=11 // pred_fallthru
          _
        // Predicated region
        $region61: #{rnaformer_forward.1} parent=11 // pred_check
          %p695 = pneg %p387
        $region62: #{rnaformer_forward.1} parent=11 // pred_check_branch
          %697 = sbr.rel (%p695) target = $region64
        $region63: #{rnaformer_forward.1} parent=11 // pred_region
          _
        $region64: #{rnaformer_forward.1} parent=11 // pred_fallthru
          _
        // Predicated region
        $region65: #{rnaformer_forward.1} parent=11 // pred_check
          %p698 = pneg %p408
        $region66: #{rnaformer_forward.1} parent=11 // pred_check_branch
          %700 = sbr.rel (%p698) target = $region68
        $region67: #{rnaformer_forward.1} parent=11 // pred_region
          _
        $region68: #{rnaformer_forward.1} parent=11 // pred_fallthru
          _
        // Predicated region
        $region69: #{rnaformer_forward.1} parent=11 // pred_check
          %p701 = pneg %p429
        $region70: #{rnaformer_forward.1} parent=11 // pred_check_branch
          %703 = sbr.rel (%p701) target = $region72
        $region71: #{rnaformer_forward.1} parent=11 // pred_region
          _
        $region72: #{rnaformer_forward.1} parent=11 // pred_fallthru
          _
        // Predicated region
        $region73: #{rnaformer_forward.1} parent=11 // pred_check
          %p704 = pneg %p450
        $region74: #{rnaformer_forward.1} parent=11 // pred_check_branch
          %706 = sbr.rel (%p704) target = $region76
        $region75: #{rnaformer_forward.1} parent=11 // pred_region
          _
        $region76: #{rnaformer_forward.1} parent=11 // pred_fallthru
          _
        // Predicated region
        $region77: #{rnaformer_forward.1} parent=11 // pred_check
          %p707 = pneg %p471
        $region78: #{rnaformer_forward.1} parent=11 // pred_check_branch
          %709 = sbr.rel (%p707) target = $region80
        $region79: #{rnaformer_forward.1} parent=11 // pred_region
          _
        $region80: #{rnaformer_forward.1} parent=11 // pred_fallthru
          _
        // Predicated region
        $region81: #{rnaformer_forward.1} parent=11 // pred_check
          %p710 = pneg %p492
        $region82: #{rnaformer_forward.1} parent=11 // pred_check_branch
          %712 = sbr.rel (%p710) target = $region84
        $region83: #{rnaformer_forward.1} parent=11 // pred_region
          _
        $region84: #{rnaformer_forward.1} parent=11 // pred_fallthru
          _
        // Predicated region
        $region85: #{rnaformer_forward.1} parent=11 // pred_check
          %p713 = pneg %p513
        $region86: #{rnaformer_forward.1} parent=11 // pred_check_branch
          %715 = sbr.rel (%p713) target = $region88
        $region87: #{rnaformer_forward.1} parent=11 // pred_region
          _
        $region88: #{rnaformer_forward.1} parent=11 // pred_fallthru
          _
        // Predicated region
        $region89: #{rnaformer_forward.1} parent=11 // pred_check
          %p716 = pneg %p534
        $region90: #{rnaformer_forward.1} parent=11 // pred_check_branch
          %718 = sbr.rel (%p716) target = $region92
        $region91: #{rnaformer_forward.1} parent=11 // pred_region
          _
        $region92: #{rnaformer_forward.1} parent=11 // pred_fallthru
          _
        // Predicated region
        $region93: #{rnaformer_forward.1} parent=11 // pred_check
          %p719 = pneg %p555
        $region94: #{rnaformer_forward.1} parent=11 // pred_check_branch
          %721 = sbr.rel (%p719) target = $region96
        $region95: #{rnaformer_forward.1} parent=11 // pred_region
          _
        $region96: #{rnaformer_forward.1} parent=11 // pred_fallthru
          _
        // Predicated region
        $region97: #{rnaformer_forward.1} parent=11 // pred_check
          %p722 = pneg %p576
        $region98: #{rnaformer_forward.1} parent=11 // pred_check_branch
          %724 = sbr.rel (%p722) target = $region100
        $region99: #{rnaformer_forward.1} parent=11 // pred_region
          _
        $region100: #{rnaformer_forward.1} parent=11 // pred_fallthru
          _
        // Predicated region
        $region101: #{rnaformer_forward.1} parent=11 // pred_check
          %p725 = pneg %p597
        $region102: #{rnaformer_forward.1} parent=11 // pred_check_branch
          %727 = sbr.rel (%p725) target = $region104
        $region103: #{rnaformer_forward.1} parent=11 // pred_region
          _
        $region104: #{rnaformer_forward.1} parent=11 // pred_fallthru
          _
        // Predicated region
        $region105: #{rnaformer_forward.1} parent=11 // pred_check
          %p728 = pneg %p618
        $region106: #{rnaformer_forward.1} parent=11 // pred_check_branch
          %730 = sbr.rel (%p728) target = $region108
        $region107: #{rnaformer_forward.1} parent=11 // pred_region
          _
        $region108: #{rnaformer_forward.1} parent=11 // pred_fallthru
          _
      $region12: #{rnaformer_forward.1} parent=5 // pred_fallthru
        _
      %p731 = scmp.lt.s32.totalorder %s36, 2
      // Predicated region
      $region109: #{rnaformer_forward.1} parent=5 // pred_check
        %p732 = pneg %p731
      $region110: #{rnaformer_forward.1} parent=5 // pred_check_branch
        %734 = sbr.rel (%p732) target = $region112
      $region111: #{rnaformer_forward.1} parent=5 // pred_region
        // Predicated region
        $region113: #{rnaformer_forward.1} parent=111 // pred_check
          %p735 = pneg %p56
        $region114: #{rnaformer_forward.1} parent=111 // pred_check_branch
          %737 = sbr.rel (%p735) target = $region116
        $region115: #{rnaformer_forward.1} parent=111 // pred_region
          %p738 = scmp.lt.s32.totalorder %s36, 1
          %s739 = scalar_select %p738, %s36, 1
          %s740 = smul.addr %s739, 8
          %s741 = scalar_lea.vmem %s0, %s740
        $region116: #{rnaformer_forward.1} parent=111 // pred_fallthru
          _
        // Predicated region
        $region117: #{rnaformer_forward.1} parent=111 // pred_check
          %p742 = pneg %p82
        $region118: #{rnaformer_forward.1} parent=111 // pred_check_branch
          %744 = sbr.rel (%p742) target = $region120
        $region119: #{rnaformer_forward.1} parent=111 // pred_region
          %p745 = scmp.lt.s32.totalorder %s36, 1
          %s746 = scalar_select %p745, %s36, 1
          %s747 = scalar_lea.vmem %s1, %s746
        $region120: #{rnaformer_forward.1} parent=111 // pred_fallthru
          _
        // Predicated region
        $region121: #{rnaformer_forward.1} parent=111 // pred_check
          %p748 = pneg %p108
        $region122: #{rnaformer_forward.1} parent=111 // pred_check_branch
          %750 = sbr.rel (%p748) target = $region124
        $region123: #{rnaformer_forward.1} parent=111 // pred_region
          %p751 = scmp.lt.s32.totalorder %s36, 1
          %s752 = scalar_select %p751, %s36, 1
          %s753 = scalar_lea.vmem %s2, %s752
        $region124: #{rnaformer_forward.1} parent=111 // pred_fallthru
          _
      $region112: #{rnaformer_forward.1} parent=5 // pred_fallthru
        _
      %p754 = scmp.le.s32.totalorder 1, %s36
      %p755 = scmp.lt.s32.totalorder %s36, 3
      %p756 = pnand %p754, %p755
      %p757 = pneg %p756
      // Predicated region
      $region125: #{rnaformer_forward.1} parent=5 // pred_check
        _
      $region126: #{rnaformer_forward.1} parent=5 // pred_check_branch
        %759 = sbr.rel (%p756) target = $region128
      $region127: #{rnaformer_forward.1} parent=5 // pred_region
        %s760 = ssub.s32 %s36, 1
        %p761 = scmp.lt.s32.totalorder %s41, 1
        %s762 = scalar_select %p761, %s41, 1
        %s763 = smul.addr %s762, 8
        %s764 = scalar_lea.vmem %s0, %s763
        %p765 = pneg %p62
        %p766 = pneg %p59
        %p767 = scmp.lt.s32.totalorder %s41, 1
        %s768 = scalar_select %p767, %s41, 1
        %s769 = scalar_lea.vmem %s1, %s768
        %p770 = pneg %p88
        %p771 = pneg %p85
        %p772 = scmp.lt.s32.totalorder %s41, 1
        %s773 = scalar_select %p772, %s41, 1
        %s774 = scalar_lea.vmem %s2, %s773
        %p775 = pneg %p114
        %p776 = pneg %p111
        %p777 = pneg %p135
        %p778 = pneg %p132
        %p779 = pneg %p156
        %p780 = pneg %p153
        %p781 = pneg %p177
        %p782 = pneg %p174
        %p783 = pneg %p198
        %p784 = pneg %p195
        %p785 = pneg %p219
        %p786 = pneg %p216
        %p787 = pneg %p240
        %p788 = pneg %p237
        %p789 = pneg %p261
        %p790 = pneg %p258
        %p791 = pneg %p282
        %p792 = pneg %p279
        %p793 = pneg %p303
        %p794 = pneg %p300
        %p795 = pneg %p324
        %p796 = pneg %p321
        %p797 = pneg %p345
        %p798 = pneg %p342
        %p799 = pneg %p366
        %p800 = pneg %p363
        %p801 = pneg %p387
        %p802 = pneg %p384
        %p803 = pneg %p408
        %p804 = pneg %p405
        %p805 = pneg %p429
        %p806 = pneg %p426
        %p807 = pneg %p450
        %p808 = pneg %p447
        %p809 = pneg %p471
        %p810 = pneg %p468
        %p811 = pneg %p492
        %p812 = pneg %p489
        %p813 = pneg %p513
        %p814 = pneg %p510
        %p815 = pneg %p534
        %p816 = pneg %p531
        %p817 = pneg %p555
        %p818 = pneg %p552
        %p819 = pneg %p576
        %p820 = pneg %p573
        %p821 = pneg %p597
        %p822 = pneg %p594
        %p823 = pneg %p618
        %p824 = pneg %p615
        %p825 = pneg %p644
        %p826 = pneg %p641
        %s827 = sand.u32 %s631, 1
        %s828 = scalar_lea.sflag [#allocation3], %s827
        %s829 = sand.u32 %s631, 1
        %s830 = smul.addr %s829, 8
        %s831 = scalar_lea.vmem [#allocation2], %s830
        %p832 = scmp.lt.s32.totalorder %s41, 1
        %s833 = scalar_select %p832, %s41, 1
        %s834 = smul.addr %s833, 8
        %s835 = scalar_lea.vmem %s0, %s834
        %p836 = scmp.lt.s32.totalorder %s41, 1
        %s837 = scalar_select %p836, %s41, 1
        %s838 = scalar_lea.vmem %s1, %s837
        %p839 = scmp.lt.s32.totalorder %s41, 1
        %s840 = scalar_select %p839, %s41, 1
        %s841 = scalar_lea.vmem %s2, %s840
        %v842 = vld [vmem:[%s835] sm:$0xff]
        %v843 = vld [vmem:[%s838] sm:$0x1]
        %v845 = vperm.slane %v843, 0
        %v847 = vadd.f32 %v842, %v845
        %v848 = vld [vmem:[%s841] sm:$0x1]
        %v850 = vperm.slane %v848, 0
        %v851 = vld [vmem:[%s10] sm:$0x1]
        %v852 = vld [vmem:[%s3] sm:$0xff]
        %v853 = vld [vmem:[%s3 + $0x8] sm:$0xff]
        %v854 = vld [vmem:[%s3 + $0x10] sm:$0xff]
        %v855 = vld [vmem:[%s3 + $0x18] sm:$0xff]
        %v856 = vld [vmem:[%s6] sm:$0x1]
        %v858 = vperm.slane %v856, 0
        %vm860 = vcmask 261120
        %v862 = vsel %vm860, %v847, 0
        %864 = vmatpush.msra.mxu0 0.0
        %865 = vmatpush.msra.mxu0 0.0
        %866 = vmatpush.msra.mxu0 0.0
        %867 = vmatpush.msra.mxu0 0.0
        %868 = vmatpush.msra.mxu0 0.0
        %869 = vmatpush.msra.mxu0 0.0
        %870 = vmatpush.msra.mxu0 0.0
        %871 = vmatpush.msra.mxu0 0.0
        %872 = vmatpush.msra.mxu0 0.0
        %873 = vmatpush.msra.mxu0 0.0
        %874 = vmatpush.msra.mxu0 0.0
        %875 = vmatpush.msra.mxu0 0.0
        %876 = vmatpush.msra.mxu0 %v855
        %877 = vmatpush.msra.mxu0 %v854
        %878 = vmatpush.msra.mxu0 %v853
        %879 = vmatpush.msra.mxu0 %v852
        %880 = vmatmul.f32.gmra.mxu0 %v862
        %v881 = vpop.f32.mrf.mxu0
        %v882 = vadd.f32 %v858, %v881
        %883 = vdwg.mxu0
        %v884 = vld [vmem:[%s4] sm:$0xff]
        %v885 = vld [vmem:[%s4 + $0x8] sm:$0xff]
        %v886 = vld [vmem:[%s4 + $0x10] sm:$0xff]
        %v887 = vld [vmem:[%s4 + $0x18] sm:$0xff]
        %v888 = vld [vmem:[%s7] sm:$0x1]
        %v890 = vperm.slane %v888, 0
        %892 = vmatpush.msra.mxu0 0.0
        %893 = vmatpush.msra.mxu0 0.0
        %894 = vmatpush.msra.mxu0 0.0
        %895 = vmatpush.msra.mxu0 0.0
        %896 = vmatpush.msra.mxu0 0.0
        %897 = vmatpush.msra.mxu0 0.0
        %898 = vmatpush.msra.mxu0 0.0
        %899 = vmatpush.msra.mxu0 0.0
        %900 = vmatpush.msra.mxu0 0.0
        %901 = vmatpush.msra.mxu0 0.0
        %902 = vmatpush.msra.mxu0 0.0
        %903 = vmatpush.msra.mxu0 0.0
        %904 = vmatpush.msra.mxu0 %v887
        %905 = vmatpush.msra.mxu0 %v886
        %906 = vmatpush.msra.mxu0 %v885
        %907 = vmatpush.msra.mxu0 %v884
        %908 = vmatmul.f32.gmra.mxu0 %v862
        %v909 = vpop.f32.mrf.mxu0
        %v910 = vadd.f32 %v890, %v909
        %911 = vdwg.mxu0
        %v912 = vld [vmem:[%s5] sm:$0xff]
        %v913 = vld [vmem:[%s5 + $0x8] sm:$0xff]
        %v914 = vld [vmem:[%s5 + $0x10] sm:$0xff]
        %v915 = vld [vmem:[%s5 + $0x18] sm:$0xff]
        %v916 = vld [vmem:[%s8] sm:$0x1]
        %v918 = vperm.slane %v916, 0
        %920 = vmatpush.msra.mxu0 0.0
        %921 = vmatpush.msra.mxu0 0.0
        %922 = vmatpush.msra.mxu0 0.0
        %923 = vmatpush.msra.mxu0 0.0
        %924 = vmatpush.msra.mxu0 0.0
        %925 = vmatpush.msra.mxu0 0.0
        %926 = vmatpush.msra.mxu0 0.0
        %927 = vmatpush.msra.mxu0 0.0
        %928 = vmatpush.msra.mxu0 0.0
        %929 = vmatpush.msra.mxu0 0.0
        %930 = vmatpush.msra.mxu0 0.0
        %931 = vmatpush.msra.mxu0 0.0
        %932 = vmatpush.msra.mxu0 %v915
        %933 = vmatpush.msra.mxu0 %v914
        %934 = vmatpush.msra.mxu0 %v913
        %935 = vmatpush.msra.mxu0 %v912
        %936 = vmatmul.f32.gmra.mxu0 %v862
        %v937 = vpop.f32.mrf.mxu0
        %v938 = vadd.f32 %v918, %v937
        %939 = vdwg.mxu0
        %vm940 = vcmask 130048
        %v942 = vsel %vm940, %v882, 0
        %v945 = vsel %vm940, %v910, 0
        %947 = vmatpush.xpose.msra.mxu0 0.0
        %948 = vmatpush.xpose.msra.mxu0 0.0
        %949 = vmatpush.xpose.msra.mxu0 0.0
        %950 = vmatpush.xpose.msra.mxu0 0.0
        %951 = vmatpush.xpose.msra.mxu0 0.0
        %952 = vmatpush.xpose.msra.mxu0 0.0
        %953 = vmatpush.xpose.msra.mxu0 0.0
        %954 = vmatpush.xpose.msra.mxu0 0.0
        %955 = vmatpush.xpose.msra.mxu0 0.0
        %956 = vmatpush.xpose.msra.mxu0 0.0
        %957 = vmatpush.xpose.msra.mxu0 0.0
        %958 = vmatpush.xpose.msra.mxu0 0.0
        %959 = vmatpush.xpose.msra.mxu0 0.0
        %960 = vmatpush.xpose.msra.mxu0 0.0
        %961 = vmatpush.xpose.msra.mxu0 0.0
        %962 = vmatpush.xpose.msra.mxu0 %v945
        %963 = vmatmul.f32.gmra.mxu0 %v942
        %v964 = vpop.f32.mrf.mxu0
        %v965 = vadd.f32 0.0, %v964
        %966 = vdwg.mxu0
        %v967 = vmul.f32 %v965, 0.25
        %vm968 = vcmask 64512
        %v969 = vsel %vm968, %v967, -inf
        %970 = vmax.xlane.f32.xlu0 %v969
        %v971 = vpop.xlane.xlu0 %970
        %v972 = vsub.f32 %v967, %v971
        %v973 = vmul.f32 %v972, 1.442695
        %v974 = vpow.pop %v973
        %v975 = vsel %vm968, %v974, 0.0
        %976 = vadd.xlane.f32.xlu0 %v975
        %v977 = vpop.xlane.xlu0 %976
        %v978 = vrcp.pop %v977
        %v979 = vmul.f32 %v977, %v978
        %v980 = vsub.f32 1.0, %v979
        %v981 = vmul.f32 %v978, %v980
        %v982 = vadd.f32 %v978, %v981
        %vm983 = vweird.f32 %v977
        %vm984 = vweird.f32 %v978
        %vm985 = vmor %vm983, %vm984
        %v986 = vsel %vm985, %v978, %v982
        %v987 = vand.u32 2147483647, %v977
        %vm988 = vcmp.eq.f32.partialorder %v987, 8.507059e+37
        %v989 = vand.u32 %v977, 2147483648
        %v990 = vor.u32 1.1754944e-38, %v989
        %v991 = vsel %vm988, %v990, %v986
        %v992 = vmul.f32 %v974, %v991
        %v994 = vsel %vm968, %v992, 0
        %996 = vmatpush.msra.mxu0 0.0
        %997 = vmatpush.msra.mxu0 0.0
        %998 = vmatpush.msra.mxu0 0.0
        %999 = vmatpush.msra.mxu0 0.0
        %1000 = vmatpush.msra.mxu0 0.0
        %1001 = vmatpush.msra.mxu0 0.0
        %1002 = vmatpush.msra.mxu0 0.0
        %1003 = vmatpush.msra.mxu0 0.0
        %1004 = vmatpush.msra.mxu0 0.0
        %1005 = vmatpush.msra.mxu0 0.0
        %1006 = vmatpush.msra.mxu0 0.0
        %1007 = vmatpush.msra.mxu0 0.0
        %1008 = vmatpush.msra.mxu0 0.0
        %1009 = vmatpush.msra.mxu0 0.0
        %1010 = vmatpush.msra.mxu0 0.0
        %1011 = vmatpush.msra.mxu0 %v938
        %1012 = vmatmul.f32.gmra.mxu0 %v994
        %v1013 = vpop.f32.mrf.mxu0
        %v1014 = vadd.f32 0.0, %v1013
        %1015 = vdwg.mxu0
        %v1016 = vld [vmem:[%s9] sm:$0xff]
        %v1017 = vld [vmem:[%s9 + $0x8] sm:$0xff]
        %v1019 = vsel %vm940, %v1014, 0
        %1021 = vmatpush.msra.mxu0 0.0
        %1022 = vmatpush.msra.mxu0 0.0
        %1023 = vmatpush.msra.mxu0 0.0
        %1024 = vmatpush.msra.mxu0 0.0
        %1025 = vmatpush.msra.mxu0 0.0
        %1026 = vmatpush.msra.mxu0 0.0
        %1027 = vmatpush.msra.mxu0 0.0
        %1028 = vmatpush.msra.mxu0 0.0
        %1029 = vmatpush.msra.mxu0 0.0
        %1030 = vmatpush.msra.mxu0 0.0
        %1031 = vmatpush.msra.mxu0 0.0
        %1032 = vmatpush.msra.mxu0 0.0
        %1033 = vmatpush.msra.mxu0 0.0
        %1034 = vmatpush.msra.mxu0 0.0
        %1035 = vmatpush.msra.mxu0 %v1017
        %1036 = vmatpush.msra.mxu0 %v1016
        %1037 = vmatmul.f32.gmra.mxu0 %v1019
        %v1038 = vpop.f32.mrf.mxu0
        %v1039 = vadd.f32 0.0, %v1038
        %1040 = vdwg.mxu0
        %v1042 = vperm.slane %v851, 0
        %v1044 = vadd.f32 %v1042, %v1039
        %s1045 = scalar_lea.vmem %s3, 32
        %v1046 = vld [vmem:[%s1045] sm:$0xff]
        %v1047 = vld [vmem:[%s1045 + $0x8] sm:$0xff]
        %v1048 = vld [vmem:[%s1045 + $0x10] sm:$0xff]
        %v1049 = vld [vmem:[%s1045 + $0x18] sm:$0xff]
        %s1050 = scalar_lea.vmem %s6, 1
        %v1051 = vld [vmem:[%s1050] sm:$0x1]
        %v1053 = vperm.slane %v1051, 0
        %1055 = vmatpush.msra.mxu0 0.0
        %1056 = vmatpush.msra.mxu0 0.0
        %1057 = vmatpush.msra.mxu0 0.0
        %1058 = vmatpush.msra.mxu0 0.0
        %1059 = vmatpush.msra.mxu0 0.0
        %1060 = vmatpush.msra.mxu0 0.0
        %1061 = vmatpush.msra.mxu0 0.0
        %1062 = vmatpush.msra.mxu0 0.0
        %1063 = vmatpush.msra.mxu0 0.0
        %1064 = vmatpush.msra.mxu0 0.0
        %1065 = vmatpush.msra.mxu0 0.0
        %1066 = vmatpush.msra.mxu0 0.0
        %1067 = vmatpush.msra.mxu0 %v1049
        %1068 = vmatpush.msra.mxu0 %v1048
        %1069 = vmatpush.msra.mxu0 %v1047
        %1070 = vmatpush.msra.mxu0 %v1046
        %1071 = vmatmul.f32.gmra.mxu0 %v862
        %v1072 = vpop.f32.mrf.mxu0
        %v1073 = vadd.f32 %v1053, %v1072
        %1074 = vdwg.mxu0
        %s1075 = scalar_lea.vmem %s4, 32
        %v1076 = vld [vmem:[%s1075] sm:$0xff]
        %v1077 = vld [vmem:[%s1075 + $0x8] sm:$0xff]
        %v1078 = vld [vmem:[%s1075 + $0x10] sm:$0xff]
        %v1079 = vld [vmem:[%s1075 + $0x18] sm:$0xff]
        %s1080 = scalar_lea.vmem %s7, 1
        %v1081 = vld [vmem:[%s1080] sm:$0x1]
        %v1083 = vperm.slane %v1081, 0
        %1085 = vmatpush.msra.mxu0 0.0
        %1086 = vmatpush.msra.mxu0 0.0
        %1087 = vmatpush.msra.mxu0 0.0
        %1088 = vmatpush.msra.mxu0 0.0
        %1089 = vmatpush.msra.mxu0 0.0
        %1090 = vmatpush.msra.mxu0 0.0
        %1091 = vmatpush.msra.mxu0 0.0
        %1092 = vmatpush.msra.mxu0 0.0
        %1093 = vmatpush.msra.mxu0 0.0
        %1094 = vmatpush.msra.mxu0 0.0
        %1095 = vmatpush.msra.mxu0 0.0
        %1096 = vmatpush.msra.mxu0 0.0
        %1097 = vmatpush.msra.mxu0 %v1079
        %1098 = vmatpush.msra.mxu0 %v1078
        %1099 = vmatpush.msra.mxu0 %v1077
        %1100 = vmatpush.msra.mxu0 %v1076
        %1101 = vmatmul.f32.gmra.mxu0 %v862
        %v1102 = vpop.f32.mrf.mxu0
        %v1103 = vadd.f32 %v1083, %v1102
        %1104 = vdwg.mxu0
        %s1105 = scalar_lea.vmem %s5, 32
        %v1106 = vld [vmem:[%s1105] sm:$0xff]
        %v1107 = vld [vmem:[%s1105 + $0x8] sm:$0xff]
        %v1108 = vld [vmem:[%s1105 + $0x10] sm:$0xff]
        %v1109 = vld [vmem:[%s1105 + $0x18] sm:$0xff]
        %s1110 = scalar_lea.vmem %s8, 1
        %v1111 = vld [vmem:[%s1110] sm:$0x1]
        %v1113 = vperm.slane %v1111, 0
        %1115 = vmatpush.msra.mxu0 0.0
        %1116 = vmatpush.msra.mxu0 0.0
        %1117 = vmatpush.msra.mxu0 0.0
        %1118 = vmatpush.msra.mxu0 0.0
        %1119 = vmatpush.msra.mxu0 0.0
        %1120 = vmatpush.msra.mxu0 0.0
        %1121 = vmatpush.msra.mxu0 0.0
        %1122 = vmatpush.msra.mxu0 0.0
        %1123 = vmatpush.msra.mxu0 0.0
        %1124 = vmatpush.msra.mxu0 0.0
        %1125 = vmatpush.msra.mxu0 0.0
        %1126 = vmatpush.msra.mxu0 0.0
        %1127 = vmatpush.msra.mxu0 %v1109
        %1128 = vmatpush.msra.mxu0 %v1108
        %1129 = vmatpush.msra.mxu0 %v1107
        %1130 = vmatpush.msra.mxu0 %v1106
        %1131 = vmatmul.f32.gmra.mxu0 %v862
        %v1132 = vpop.f32.mrf.mxu0
        %v1133 = vadd.f32 %v1113, %v1132
        %1134 = vdwg.mxu0
        %v1136 = vsel %vm940, %v1073, 0
        %v1139 = vsel %vm940, %v1103, 0
        %1141 = vmatpush.xpose.msra.mxu0 0.0
        %1142 = vmatpush.xpose.msra.mxu0 0.0
        %1143 = vmatpush.xpose.msra.mxu0 0.0
        %1144 = vmatpush.xpose.msra.mxu0 0.0
        %1145 = vmatpush.xpose.msra.mxu0 0.0
        %1146 = vmatpush.xpose.msra.mxu0 0.0
        %1147 = vmatpush.xpose.msra.mxu0 0.0
        %1148 = vmatpush.xpose.msra.mxu0 0.0
        %1149 = vmatpush.xpose.msra.mxu0 0.0
        %1150 = vmatpush.xpose.msra.mxu0 0.0
        %1151 = vmatpush.xpose.msra.mxu0 0.0
        %1152 = vmatpush.xpose.msra.mxu0 0.0
        %1153 = vmatpush.xpose.msra.mxu0 0.0
        %1154 = vmatpush.xpose.msra.mxu0 0.0
        %1155 = vmatpush.xpose.msra.mxu0 0.0
        %1156 = vmatpush.xpose.msra.mxu0 %v1139
        %1157 = vmatmul.f32.gmra.mxu0 %v1136
        %v1158 = vpop.f32.mrf.mxu0
        %v1159 = vadd.f32 0.0, %v1158
        %1160 = vdwg.mxu0
        %v1161 = vmul.f32 %v1159, 0.25
        %v1162 = vsel %vm968, %v1161, -inf
        %1163 = vmax.xlane.f32.xlu0 %v1162
        %v1164 = vpop.xlane.xlu0 %1163
        %v1165 = vsub.f32 %v1161, %v1164
        %v1166 = vmul.f32 %v1165, 1.442695
        %v1167 = vpow.pop %v1166
        %v1168 = vsel %vm968, %v1167, 0.0
        %1169 = vadd.xlane.f32.xlu0 %v1168
        %v1170 = vpop.xlane.xlu0 %1169
        %v1171 = vrcp.pop %v1170
        %v1172 = vmul.f32 %v1170, %v1171
        %v1173 = vsub.f32 1.0, %v1172
        %v1174 = vmul.f32 %v1171, %v1173
        %v1175 = vadd.f32 %v1171, %v1174
        %vm1176 = vweird.f32 %v1170
        %vm1177 = vweird.f32 %v1171
        %vm1178 = vmor %vm1176, %vm1177
        %v1179 = vsel %vm1178, %v1171, %v1175
        %v1180 = vand.u32 2147483647, %v1170
        %vm1181 = vcmp.eq.f32.partialorder %v1180, 8.507059e+37
        %v1182 = vand.u32 %v1170, 2147483648
        %v1183 = vor.u32 1.1754944e-38, %v1182
        %v1184 = vsel %vm1181, %v1183, %v1179
        %v1185 = vmul.f32 %v1167, %v1184
        %v1187 = vsel %vm968, %v1185, 0
        %1189 = vmatpush.msra.mxu0 0.0
        %1190 = vmatpush.msra.mxu0 0.0
        %1191 = vmatpush.msra.mxu0 0.0
        %1192 = vmatpush.msra.mxu0 0.0
        %1193 = vmatpush.msra.mxu0 0.0
        %1194 = vmatpush.msra.mxu0 0.0
        %1195 = vmatpush.msra.mxu0 0.0
        %1196 = vmatpush.msra.mxu0 0.0
        %1197 = vmatpush.msra.mxu0 0.0
        %1198 = vmatpush.msra.mxu0 0.0
        %1199 = vmatpush.msra.mxu0 0.0
        %1200 = vmatpush.msra.mxu0 0.0
        %1201 = vmatpush.msra.mxu0 0.0
        %1202 = vmatpush.msra.mxu0 0.0
        %1203 = vmatpush.msra.mxu0 0.0
        %1204 = vmatpush.msra.mxu0 %v1133
        %1205 = vmatmul.f32.gmra.mxu0 %v1187
        %v1206 = vpop.f32.mrf.mxu0
        %v1207 = vadd.f32 0.0, %v1206
        %1208 = vdwg.mxu0
        %s1209 = scalar_lea.vmem %s9, 16
        %v1210 = vld [vmem:[%s1209] sm:$0xff]
        %v1211 = vld [vmem:[%s1209 + $0x8] sm:$0xff]
        %v1213 = vsel %vm940, %v1207, 0
        %1215 = vmatpush.msra.mxu0 0.0
        %1216 = vmatpush.msra.mxu0 0.0
        %1217 = vmatpush.msra.mxu0 0.0
        %1218 = vmatpush.msra.mxu0 0.0
        %1219 = vmatpush.msra.mxu0 0.0
        %1220 = vmatpush.msra.mxu0 0.0
        %1221 = vmatpush.msra.mxu0 0.0
        %1222 = vmatpush.msra.mxu0 0.0
        %1223 = vmatpush.msra.mxu0 0.0
        %1224 = vmatpush.msra.mxu0 0.0
        %1225 = vmatpush.msra.mxu0 0.0
        %1226 = vmatpush.msra.mxu0 0.0
        %1227 = vmatpush.msra.mxu0 0.0
        %1228 = vmatpush.msra.mxu0 0.0
        %1229 = vmatpush.msra.mxu0 %v1211
        %1230 = vmatpush.msra.mxu0 %v1210
        %1231 = vmatmul.f32.gmra.mxu0 %v1213
        %v1232 = vpop.f32.mrf.mxu0
        %v1233 = vadd.f32 0.0, %v1232
        %1234 = vdwg.mxu0
        %v1235 = vadd.f32 %v1044, %v1233
        %v1236 = vadd.f32 %v847, %v1235
        %v1237 = vld [vmem:[%s13] sm:$0x1]
        %v1238 = vld [vmem:[%s14] sm:$0x1]
        %v1239 = vsel %vm860, %v1236, 0.0
        %1240 = vadd.xlane.f32.xlu0 %v1239
        %v1241 = vpop.xlane.xlu0 %1240
        %v1242 = vrcp.pop 32.0
        %v1243 = vmul.f32 32.0, %v1242
        %v1244 = vsub.f32 1.0, %v1243
        %v1245 = vmul.f32 %v1242, %v1244
        %v1246 = vadd.f32 %v1242, %v1245
        %vm1247 = vweird.f32 %v1242
        %v1248 = vsel %vm1247, %v1242, %v1246
        %v1249 = vmul.f32 %v1241, %v1248
        %v1250 = vsub.f32 %v1236, %v1249
        %v1251 = vmul.f32 %v1250, %v1250
        %v1252 = vsel %vm860, %v1251, 0.0
        %1253 = vadd.xlane.f32.xlu0 %v1252
        %v1254 = vpop.xlane.xlu0 %1253
        %v1255 = vmul.f32 %v1254, %v1248
        %v1256 = vadd.f32 %v1255, 1e-05
        %v1257 = vrsqrt.pop %v1256
        %v1258 = vmul.f32 %v1257, %v1256
        %v1259 = vmul.f32 %v1258, %v1257
        %v1260 = vmul.f32 0.5, %v1259
        %v1261 = vsub.f32 1.5, %v1260
        %v1262 = vmul.f32 %v1257, %v1261
        %vm1263 = vweird.f32 %v1256
        %vm1264 = vweird.f32 %v1257
        %vm1265 = vmor %vm1263, %vm1264
        %v1266 = vsel %vm1265, %v1257, %v1262
        %v1267 = vmul.f32 %v1250, %v1266
        %v1269 = vperm.slane %v1237, 0
        %v1271 = vmul.f32 %v1267, %v1269
        %v1273 = vperm.slane %v1238, 0
        %v1275 = vadd.f32 %v1271, %v1273
        %v1276 = vld [vmem:[%s11] sm:$0xff]
        %v1277 = vld [vmem:[%s11 + $0x8] sm:$0xff]
        %v1278 = vld [vmem:[%s11 + $0x10] sm:$0xff]
        %v1279 = vld [vmem:[%s11 + $0x18] sm:$0xff]
        %v1280 = vld [vmem:[%s12] sm:$0x1]
        %v1282 = vperm.slane %v1280, 0
        %v1284 = vsel %vm860, %v850, 0
        %1286 = vmatpush.msra.mxu0 0.0
        %1287 = vmatpush.msra.mxu0 0.0
        %1288 = vmatpush.msra.mxu0 0.0
        %1289 = vmatpush.msra.mxu0 0.0
        %1290 = vmatpush.msra.mxu0 0.0
        %1291 = vmatpush.msra.mxu0 0.0
        %1292 = vmatpush.msra.mxu0 0.0
        %1293 = vmatpush.msra.mxu0 0.0
        %1294 = vmatpush.msra.mxu0 0.0
        %1295 = vmatpush.msra.mxu0 0.0
        %1296 = vmatpush.msra.mxu0 0.0
        %1297 = vmatpush.msra.mxu0 0.0
        %1298 = vmatpush.msra.mxu0 %v1279
        %1299 = vmatpush.msra.mxu0 %v1278
        %1300 = vmatpush.msra.mxu0 %v1277
        %1301 = vmatpush.msra.mxu0 %v1276
        %1302 = vmatmul.f32.gmra.mxu0 %v1284
        %v1303 = vpop.f32.mrf.mxu0
        %v1304 = vadd.f32 %v1282, %v1303
        %1305 = vdwg.mxu0
        %v1306 = vadd.f32 %v1275, %v1304
        %v1307 = vld [vmem:[%s15] sm:$0x1]
        %v1308 = vld [vmem:[%s16] sm:$0x1]
        %v1309 = vsel %vm860, %v1306, 0.0
        %1310 = vadd.xlane.f32.xlu0 %v1309
        %v1311 = vpop.xlane.xlu0 %1310
        %v1312 = vmul.f32 %v1311, %v1248
        %v1313 = vsub.f32 %v1306, %v1312
        %v1314 = vmul.f32 %v1313, %v1313
        %v1315 = vsel %vm860, %v1314, 0.0
        %1316 = vadd.xlane.f32.xlu0 %v1315
        %v1317 = vpop.xlane.xlu0 %1316
        %v1318 = vmul.f32 %v1317, %v1248
        %v1319 = vadd.f32 %v1318, 1e-05
        %v1320 = vrsqrt.pop %v1319
        %v1321 = vmul.f32 %v1320, %v1319
        %v1322 = vmul.f32 %v1321, %v1320
        %v1323 = vmul.f32 0.5, %v1322
        %v1324 = vsub.f32 1.5, %v1323
        %v1325 = vmul.f32 %v1320, %v1324
        %vm1326 = vweird.f32 %v1319
        %vm1327 = vweird.f32 %v1320
        %vm1328 = vmor %vm1326, %vm1327
        %v1329 = vsel %vm1328, %v1320, %v1325
        %v1330 = vmul.f32 %v1313, %v1329
        %v1332 = vperm.slane %v1307, 0
        %v1334 = vmul.f32 %v1330, %v1332
        %v1336 = vperm.slane %v1308, 0
        %v1338 = vadd.f32 %v1334, %v1336
        %v1339 = vld [vmem:[%s19] sm:$0xff]
        %v1340 = vld [vmem:[%s19 + $0x8] sm:$0xff]
        %v1341 = vld [vmem:[%s19 + $0x10] sm:$0xff]
        %v1342 = vld [vmem:[%s19 + $0x18] sm:$0xff]
        %v1343 = vld [vmem:[%s19 + $0x20] sm:$0xff]
        %v1344 = vld [vmem:[%s19 + $0x28] sm:$0xff]
        %v1345 = vld [vmem:[%s19 + $0x30] sm:$0xff]
        %v1346 = vld [vmem:[%s19 + $0x38] sm:$0xff]
        %v1347 = vld [vmem:[%s19 + $0x40] sm:$0xff]
        %v1348 = vld [vmem:[%s19 + $0x48] sm:$0xff]
        %v1349 = vld [vmem:[%s19 + $0x50] sm:$0xff]
        %v1350 = vld [vmem:[%s19 + $0x58] sm:$0xff]
        %v1351 = vld [vmem:[%s19 + $0x60] sm:$0xff]
        %v1352 = vld [vmem:[%s19 + $0x68] sm:$0xff]
        %v1353 = vld [vmem:[%s19 + $0x70] sm:$0xff]
        %v1354 = vld [vmem:[%s19 + $0x78] sm:$0xff]
        %v1355 = vld [vmem:[%s19 + $0x80] sm:$0xff]
        %v1356 = vld [vmem:[%s19 + $0x88] sm:$0xff]
        %v1357 = vld [vmem:[%s19 + $0x90] sm:$0xff]
        %v1358 = vld [vmem:[%s19 + $0x98] sm:$0xff]
        %v1359 = vld [vmem:[%s19 + $0xa0] sm:$0xff]
        %v1360 = vld [vmem:[%s19 + $0xa8] sm:$0xff]
        %v1361 = vld [vmem:[%s19 + $0xb0] sm:$0xff]
        %v1362 = vld [vmem:[%s19 + $0xb8] sm:$0xff]
        %v1363 = vld [vmem:[%s19 + $0xc0] sm:$0xff]
        %v1364 = vld [vmem:[%s19 + $0xc8] sm:$0xff]
        %v1365 = vld [vmem:[%s19 + $0xd0] sm:$0xff]
        %v1366 = vld [vmem:[%s19 + $0xd8] sm:$0xff]
        %v1367 = vld [vmem:[%s19 + $0xe0] sm:$0xff]
        %v1368 = vld [vmem:[%s19 + $0xe8] sm:$0xff]
        %v1369 = vld [vmem:[%s19 + $0xf0] sm:$0xff]
        %v1370 = vld [vmem:[%s19 + $0xf8] sm:$0xff]
        %v1371 = vld [vmem:[%s19 + $0x100] sm:$0xff]
        %v1372 = vld [vmem:[%s19 + $0x108] sm:$0xff]
        %v1373 = vld [vmem:[%s19 + $0x110] sm:$0xff]
        %v1374 = vld [vmem:[%s19 + $0x118] sm:$0xff]
        %v1375 = vld [vmem:[%s19 + $0x120] sm:$0xff]
        %v1376 = vld [vmem:[%s19 + $0x128] sm:$0xff]
        %v1377 = vld [vmem:[%s19 + $0x130] sm:$0xff]
        %v1378 = vld [vmem:[%s19 + $0x138] sm:$0xff]
        %v1379 = vld [vmem:[%s19 + $0x140] sm:$0xff]
        %v1380 = vld [vmem:[%s19 + $0x148] sm:$0xff]
        %v1381 = vld [vmem:[%s19 + $0x150] sm:$0xff]
        %v1382 = vld [vmem:[%s19 + $0x158] sm:$0xff]
        %v1383 = vld [vmem:[%s19 + $0x160] sm:$0xff]
        %v1384 = vld [vmem:[%s19 + $0x168] sm:$0xff]
        %v1385 = vld [vmem:[%s19 + $0x170] sm:$0xff]
        %v1386 = vld [vmem:[%s19 + $0x178] sm:$0xff]
        %v1387 = vld [vmem:[%s19 + $0x180] sm:$0xff]
        %v1388 = vld [vmem:[%s19 + $0x188] sm:$0xff]
        %v1389 = vld [vmem:[%s19 + $0x190] sm:$0xff]
        %v1390 = vld [vmem:[%s19 + $0x198] sm:$0xff]
        %v1391 = vld [vmem:[%s19 + $0x1a0] sm:$0xff]
        %v1392 = vld [vmem:[%s19 + $0x1a8] sm:$0xff]
        %v1393 = vld [vmem:[%s19 + $0x1b0] sm:$0xff]
        %v1394 = vld [vmem:[%s19 + $0x1b8] sm:$0xff]
        %v1395 = vld [vmem:[%s19 + $0x1c0] sm:$0xff]
        %v1396 = vld [vmem:[%s19 + $0x1c8] sm:$0xff]
        %v1397 = vld [vmem:[%s19 + $0x1d0] sm:$0xff]
        %v1398 = vld [vmem:[%s19 + $0x1d8] sm:$0xff]
        %v1399 = vld [vmem:[%s19 + $0x1e0] sm:$0xff]
        %v1400 = vld [vmem:[%s19 + $0x1e8] sm:$0xff]
        %v1401 = vld [vmem:[%s19 + $0x1f0] sm:$0xff]
        %v1402 = vld [vmem:[%s19 + $0x1f8] sm:$0xff]
        %v1403 = vld [vmem:[%s20] sm:$0xff]
        %v1404 = vld [vmem:[%s20 + $0x8] sm:$0xff]
        %v1407 = vperm.slane %v1403, 0
        %v1408 = vperm.slane %v1403, 1
        %v1409 = vperm.slane %v1403, 2
        %v1410 = vperm.slane %v1403, 3
        %v1411 = vperm.slane %v1403, 4
        %v1412 = vperm.slane %v1403, 5
        %v1413 = vperm.slane %v1403, 6
        %v1414 = vperm.slane %v1403, 7
        %v1415 = vperm.slane %v1404, 0
        %v1416 = vperm.slane %v1404, 1
        %v1417 = vperm.slane %v1404, 2
        %v1418 = vperm.slane %v1404, 3
        %v1419 = vperm.slane %v1404, 4
        %v1420 = vperm.slane %v1404, 5
        %v1421 = vperm.slane %v1404, 6
        %v1422 = vperm.slane %v1404, 7
        %v1440 = vsel %vm860, %v1338, 0
        %1442 = vmatpush.msra.mxu0 0.0
        %1443 = vmatpush.msra.mxu0 0.0
        %1444 = vmatpush.msra.mxu0 0.0
        %1445 = vmatpush.msra.mxu0 0.0
        %1446 = vmatpush.msra.mxu0 0.0
        %1447 = vmatpush.msra.mxu0 0.0
        %1448 = vmatpush.msra.mxu0 0.0
        %1449 = vmatpush.msra.mxu0 0.0
        %1450 = vmatpush.msra.mxu0 0.0
        %1451 = vmatpush.msra.mxu0 0.0
        %1452 = vmatpush.msra.mxu0 0.0
        %1453 = vmatpush.msra.mxu0 0.0
        %1454 = vmatpush.msra.mxu0 %v1387
        %1455 = vmatpush.msra.mxu0 %v1371
        %1456 = vmatpush.msra.mxu0 %v1355
        %1457 = vmatpush.msra.mxu0 %v1339
        %1458 = vmatmul.f32.gmra.mxu0 %v1440
        %v1459 = vpop.f32.mrf.mxu0
        %v1460 = vadd.f32 %v1407, %v1459
        %1461 = vdwg.mxu0
        %1462 = vmatpush.msra.mxu0 0.0
        %1463 = vmatpush.msra.mxu0 0.0
        %1464 = vmatpush.msra.mxu0 0.0
        %1465 = vmatpush.msra.mxu0 0.0
        %1466 = vmatpush.msra.mxu0 0.0
        %1467 = vmatpush.msra.mxu0 0.0
        %1468 = vmatpush.msra.mxu0 0.0
        %1469 = vmatpush.msra.mxu0 0.0
        %1470 = vmatpush.msra.mxu0 0.0
        %1471 = vmatpush.msra.mxu0 0.0
        %1472 = vmatpush.msra.mxu0 0.0
        %1473 = vmatpush.msra.mxu0 0.0
        %1474 = vmatpush.msra.mxu0 %v1388
        %1475 = vmatpush.msra.mxu0 %v1372
        %1476 = vmatpush.msra.mxu0 %v1356
        %1477 = vmatpush.msra.mxu0 %v1340
        %1478 = vmatmul.f32.gmra.mxu0 %v1440
        %v1479 = vpop.f32.mrf.mxu0
        %v1480 = vadd.f32 %v1408, %v1479
        %1481 = vdwg.mxu0
        %1482 = vmatpush.msra.mxu0 0.0
        %1483 = vmatpush.msra.mxu0 0.0
        %1484 = vmatpush.msra.mxu0 0.0
        %1485 = vmatpush.msra.mxu0 0.0
        %1486 = vmatpush.msra.mxu0 0.0
        %1487 = vmatpush.msra.mxu0 0.0
        %1488 = vmatpush.msra.mxu0 0.0
        %1489 = vmatpush.msra.mxu0 0.0
        %1490 = vmatpush.msra.mxu0 0.0
        %1491 = vmatpush.msra.mxu0 0.0
        %1492 = vmatpush.msra.mxu0 0.0
        %1493 = vmatpush.msra.mxu0 0.0
        %1494 = vmatpush.msra.mxu0 %v1389
        %1495 = vmatpush.msra.mxu0 %v1373
        %1496 = vmatpush.msra.mxu0 %v1357
        %1497 = vmatpush.msra.mxu0 %v1341
        %1498 = vmatmul.f32.gmra.mxu0 %v1440
        %v1499 = vpop.f32.mrf.mxu0
        %v1500 = vadd.f32 %v1409, %v1499
        %1501 = vdwg.mxu0
        %1502 = vmatpush.msra.mxu0 0.0
        %1503 = vmatpush.msra.mxu0 0.0
        %1504 = vmatpush.msra.mxu0 0.0
        %1505 = vmatpush.msra.mxu0 0.0
        %1506 = vmatpush.msra.mxu0 0.0
        %1507 = vmatpush.msra.mxu0 0.0
        %1508 = vmatpush.msra.mxu0 0.0
        %1509 = vmatpush.msra.mxu0 0.0
        %1510 = vmatpush.msra.mxu0 0.0
        %1511 = vmatpush.msra.mxu0 0.0
        %1512 = vmatpush.msra.mxu0 0.0
        %1513 = vmatpush.msra.mxu0 0.0
        %1514 = vmatpush.msra.mxu0 %v1390
        %1515 = vmatpush.msra.mxu0 %v1374
        %1516 = vmatpush.msra.mxu0 %v1358
        %1517 = vmatpush.msra.mxu0 %v1342
        %1518 = vmatmul.f32.gmra.mxu0 %v1440
        %v1519 = vpop.f32.mrf.mxu0
        %v1520 = vadd.f32 %v1410, %v1519
        %1521 = vdwg.mxu0
        %1522 = vmatpush.msra.mxu0 0.0
        %1523 = vmatpush.msra.mxu0 0.0
        %1524 = vmatpush.msra.mxu0 0.0
        %1525 = vmatpush.msra.mxu0 0.0
        %1526 = vmatpush.msra.mxu0 0.0
        %1527 = vmatpush.msra.mxu0 0.0
        %1528 = vmatpush.msra.mxu0 0.0
        %1529 = vmatpush.msra.mxu0 0.0
        %1530 = vmatpush.msra.mxu0 0.0
        %1531 = vmatpush.msra.mxu0 0.0
        %1532 = vmatpush.msra.mxu0 0.0
        %1533 = vmatpush.msra.mxu0 0.0
        %1534 = vmatpush.msra.mxu0 %v1391
        %1535 = vmatpush.msra.mxu0 %v1375
        %1536 = vmatpush.msra.mxu0 %v1359
        %1537 = vmatpush.msra.mxu0 %v1343
        %1538 = vmatmul.f32.gmra.mxu0 %v1440
        %v1539 = vpop.f32.mrf.mxu0
        %v1540 = vadd.f32 %v1411, %v1539
        %1541 = vdwg.mxu0
        %1542 = vmatpush.msra.mxu0 0.0
        %1543 = vmatpush.msra.mxu0 0.0
        %1544 = vmatpush.msra.mxu0 0.0
        %1545 = vmatpush.msra.mxu0 0.0
        %1546 = vmatpush.msra.mxu0 0.0
        %1547 = vmatpush.msra.mxu0 0.0
        %1548 = vmatpush.msra.mxu0 0.0
        %1549 = vmatpush.msra.mxu0 0.0
        %1550 = vmatpush.msra.mxu0 0.0
        %1551 = vmatpush.msra.mxu0 0.0
        %1552 = vmatpush.msra.mxu0 0.0
        %1553 = vmatpush.msra.mxu0 0.0
        %1554 = vmatpush.msra.mxu0 %v1392
        %1555 = vmatpush.msra.mxu0 %v1376
        %1556 = vmatpush.msra.mxu0 %v1360
        %1557 = vmatpush.msra.mxu0 %v1344
        %1558 = vmatmul.f32.gmra.mxu0 %v1440
        %v1559 = vpop.f32.mrf.mxu0
        %v1560 = vadd.f32 %v1412, %v1559
        %1561 = vdwg.mxu0
        %1562 = vmatpush.msra.mxu0 0.0
        %1563 = vmatpush.msra.mxu0 0.0
        %1564 = vmatpush.msra.mxu0 0.0
        %1565 = vmatpush.msra.mxu0 0.0
        %1566 = vmatpush.msra.mxu0 0.0
        %1567 = vmatpush.msra.mxu0 0.0
        %1568 = vmatpush.msra.mxu0 0.0
        %1569 = vmatpush.msra.mxu0 0.0
        %1570 = vmatpush.msra.mxu0 0.0
        %1571 = vmatpush.msra.mxu0 0.0
        %1572 = vmatpush.msra.mxu0 0.0
        %1573 = vmatpush.msra.mxu0 0.0
        %1574 = vmatpush.msra.mxu0 %v1393
        %1575 = vmatpush.msra.mxu0 %v1377
        %1576 = vmatpush.msra.mxu0 %v1361
        %1577 = vmatpush.msra.mxu0 %v1345
        %1578 = vmatmul.f32.gmra.mxu0 %v1440
        %v1579 = vpop.f32.mrf.mxu0
        %v1580 = vadd.f32 %v1413, %v1579
        %1581 = vdwg.mxu0
        %1582 = vmatpush.msra.mxu0 0.0
        %1583 = vmatpush.msra.mxu0 0.0
        %1584 = vmatpush.msra.mxu0 0.0
        %1585 = vmatpush.msra.mxu0 0.0
        %1586 = vmatpush.msra.mxu0 0.0
        %1587 = vmatpush.msra.mxu0 0.0
        %1588 = vmatpush.msra.mxu0 0.0
        %1589 = vmatpush.msra.mxu0 0.0
        %1590 = vmatpush.msra.mxu0 0.0
        %1591 = vmatpush.msra.mxu0 0.0
        %1592 = vmatpush.msra.mxu0 0.0
        %1593 = vmatpush.msra.mxu0 0.0
        %1594 = vmatpush.msra.mxu0 %v1394
        %1595 = vmatpush.msra.mxu0 %v1378
        %1596 = vmatpush.msra.mxu0 %v1362
        %1597 = vmatpush.msra.mxu0 %v1346
        %1598 = vmatmul.f32.gmra.mxu0 %v1440
        %v1599 = vpop.f32.mrf.mxu0
        %v1600 = vadd.f32 %v1414, %v1599
        %1601 = vdwg.mxu0
        %1602 = vmatpush.msra.mxu0 0.0
        %1603 = vmatpush.msra.mxu0 0.0
        %1604 = vmatpush.msra.mxu0 0.0
        %1605 = vmatpush.msra.mxu0 0.0
        %1606 = vmatpush.msra.mxu0 0.0
        %1607 = vmatpush.msra.mxu0 0.0
        %1608 = vmatpush.msra.mxu0 0.0
        %1609 = vmatpush.msra.mxu0 0.0
        %1610 = vmatpush.msra.mxu0 0.0
        %1611 = vmatpush.msra.mxu0 0.0
        %1612 = vmatpush.msra.mxu0 0.0
        %1613 = vmatpush.msra.mxu0 0.0
        %1614 = vmatpush.msra.mxu0 %v1395
        %1615 = vmatpush.msra.mxu0 %v1379
        %1616 = vmatpush.msra.mxu0 %v1363
        %1617 = vmatpush.msra.mxu0 %v1347
        %1618 = vmatmul.f32.gmra.mxu0 %v1440
        %v1619 = vpop.f32.mrf.mxu0
        %v1620 = vadd.f32 %v1415, %v1619
        %1621 = vdwg.mxu0
        %1622 = vmatpush.msra.mxu0 0.0
        %1623 = vmatpush.msra.mxu0 0.0
        %1624 = vmatpush.msra.mxu0 0.0
        %1625 = vmatpush.msra.mxu0 0.0
        %1626 = vmatpush.msra.mxu0 0.0
        %1627 = vmatpush.msra.mxu0 0.0
        %1628 = vmatpush.msra.mxu0 0.0
        %1629 = vmatpush.msra.mxu0 0.0
        %1630 = vmatpush.msra.mxu0 0.0
        %1631 = vmatpush.msra.mxu0 0.0
        %1632 = vmatpush.msra.mxu0 0.0
        %1633 = vmatpush.msra.mxu0 0.0
        %1634 = vmatpush.msra.mxu0 %v1396
        %1635 = vmatpush.msra.mxu0 %v1380
        %1636 = vmatpush.msra.mxu0 %v1364
        %1637 = vmatpush.msra.mxu0 %v1348
        %1638 = vmatmul.f32.gmra.mxu0 %v1440
        %v1639 = vpop.f32.mrf.mxu0
        %v1640 = vadd.f32 %v1416, %v1639
        %1641 = vdwg.mxu0
        %1642 = vmatpush.msra.mxu0 0.0
        %1643 = vmatpush.msra.mxu0 0.0
        %1644 = vmatpush.msra.mxu0 0.0
        %1645 = vmatpush.msra.mxu0 0.0
        %1646 = vmatpush.msra.mxu0 0.0
        %1647 = vmatpush.msra.mxu0 0.0
        %1648 = vmatpush.msra.mxu0 0.0
        %1649 = vmatpush.msra.mxu0 0.0
        %1650 = vmatpush.msra.mxu0 0.0
        %1651 = vmatpush.msra.mxu0 0.0
        %1652 = vmatpush.msra.mxu0 0.0
        %1653 = vmatpush.msra.mxu0 0.0
        %1654 = vmatpush.msra.mxu0 %v1397
        %1655 = vmatpush.msra.mxu0 %v1381
        %1656 = vmatpush.msra.mxu0 %v1365
        %1657 = vmatpush.msra.mxu0 %v1349
        %1658 = vmatmul.f32.gmra.mxu0 %v1440
        %v1659 = vpop.f32.mrf.mxu0
        %v1660 = vadd.f32 %v1417, %v1659
        %1661 = vdwg.mxu0
        %1662 = vmatpush.msra.mxu0 0.0
        %1663 = vmatpush.msra.mxu0 0.0
        %1664 = vmatpush.msra.mxu0 0.0
        %1665 = vmatpush.msra.mxu0 0.0
        %1666 = vmatpush.msra.mxu0 0.0
        %1667 = vmatpush.msra.mxu0 0.0
        %1668 = vmatpush.msra.mxu0 0.0
        %1669 = vmatpush.msra.mxu0 0.0
        %1670 = vmatpush.msra.mxu0 0.0
        %1671 = vmatpush.msra.mxu0 0.0
        %1672 = vmatpush.msra.mxu0 0.0
        %1673 = vmatpush.msra.mxu0 0.0
        %1674 = vmatpush.msra.mxu0 %v1398
        %1675 = vmatpush.msra.mxu0 %v1382
        %1676 = vmatpush.msra.mxu0 %v1366
        %1677 = vmatpush.msra.mxu0 %v1350
        %1678 = vmatmul.f32.gmra.mxu0 %v1440
        %v1679 = vpop.f32.mrf.mxu0
        %v1680 = vadd.f32 %v1418, %v1679
        %1681 = vdwg.mxu0
        %1682 = vmatpush.msra.mxu0 0.0
        %1683 = vmatpush.msra.mxu0 0.0
        %1684 = vmatpush.msra.mxu0 0.0
        %1685 = vmatpush.msra.mxu0 0.0
        %1686 = vmatpush.msra.mxu0 0.0
        %1687 = vmatpush.msra.mxu0 0.0
        %1688 = vmatpush.msra.mxu0 0.0
        %1689 = vmatpush.msra.mxu0 0.0
        %1690 = vmatpush.msra.mxu0 0.0
        %1691 = vmatpush.msra.mxu0 0.0
        %1692 = vmatpush.msra.mxu0 0.0
        %1693 = vmatpush.msra.mxu0 0.0
        %1694 = vmatpush.msra.mxu0 %v1399
        %1695 = vmatpush.msra.mxu0 %v1383
        %1696 = vmatpush.msra.mxu0 %v1367
        %1697 = vmatpush.msra.mxu0 %v1351
        %1698 = vmatmul.f32.gmra.mxu0 %v1440
        %v1699 = vpop.f32.mrf.mxu0
        %v1700 = vadd.f32 %v1419, %v1699
        %1701 = vdwg.mxu0
        %1702 = vmatpush.msra.mxu0 0.0
        %1703 = vmatpush.msra.mxu0 0.0
        %1704 = vmatpush.msra.mxu0 0.0
        %1705 = vmatpush.msra.mxu0 0.0
        %1706 = vmatpush.msra.mxu0 0.0
        %1707 = vmatpush.msra.mxu0 0.0
        %1708 = vmatpush.msra.mxu0 0.0
        %1709 = vmatpush.msra.mxu0 0.0
        %1710 = vmatpush.msra.mxu0 0.0
        %1711 = vmatpush.msra.mxu0 0.0
        %1712 = vmatpush.msra.mxu0 0.0
        %1713 = vmatpush.msra.mxu0 0.0
        %1714 = vmatpush.msra.mxu0 %v1400
        %1715 = vmatpush.msra.mxu0 %v1384
        %1716 = vmatpush.msra.mxu0 %v1368
        %1717 = vmatpush.msra.mxu0 %v1352
        %1718 = vmatmul.f32.gmra.mxu0 %v1440
        %v1719 = vpop.f32.mrf.mxu0
        %v1720 = vadd.f32 %v1420, %v1719
        %1721 = vdwg.mxu0
        %1722 = vmatpush.msra.mxu0 0.0
        %1723 = vmatpush.msra.mxu0 0.0
        %1724 = vmatpush.msra.mxu0 0.0
        %1725 = vmatpush.msra.mxu0 0.0
        %1726 = vmatpush.msra.mxu0 0.0
        %1727 = vmatpush.msra.mxu0 0.0
        %1728 = vmatpush.msra.mxu0 0.0
        %1729 = vmatpush.msra.mxu0 0.0
        %1730 = vmatpush.msra.mxu0 0.0
        %1731 = vmatpush.msra.mxu0 0.0
        %1732 = vmatpush.msra.mxu0 0.0
        %1733 = vmatpush.msra.mxu0 0.0
        %1734 = vmatpush.msra.mxu0 %v1401
        %1735 = vmatpush.msra.mxu0 %v1385
        %1736 = vmatpush.msra.mxu0 %v1369
        %1737 = vmatpush.msra.mxu0 %v1353
        %1738 = vmatmul.f32.gmra.mxu0 %v1440
        %v1739 = vpop.f32.mrf.mxu0
        %v1740 = vadd.f32 %v1421, %v1739
        %1741 = vdwg.mxu0
        %1742 = vmatpush.msra.mxu0 0.0
        %1743 = vmatpush.msra.mxu0 0.0
        %1744 = vmatpush.msra.mxu0 0.0
        %1745 = vmatpush.msra.mxu0 0.0
        %1746 = vmatpush.msra.mxu0 0.0
        %1747 = vmatpush.msra.mxu0 0.0
        %1748 = vmatpush.msra.mxu0 0.0
        %1749 = vmatpush.msra.mxu0 0.0
        %1750 = vmatpush.msra.mxu0 0.0
        %1751 = vmatpush.msra.mxu0 0.0
        %1752 = vmatpush.msra.mxu0 0.0
        %1753 = vmatpush.msra.mxu0 0.0
        %1754 = vmatpush.msra.mxu0 %v1402
        %1755 = vmatpush.msra.mxu0 %v1386
        %1756 = vmatpush.msra.mxu0 %v1370
        %1757 = vmatpush.msra.mxu0 %v1354
        %1758 = vmatmul.f32.gmra.mxu0 %v1440
        %v1759 = vpop.f32.mrf.mxu0
        %v1760 = vadd.f32 %v1422, %v1759
        %1761 = vdwg.mxu0
        %v1762 = vmax.f32 %v1460, 0.0
        %v1763 = vmax.f32 %v1480, 0.0
        %v1764 = vmax.f32 %v1500, 0.0
        %v1765 = vmax.f32 %v1520, 0.0
        %v1766 = vmax.f32 %v1540, 0.0
        %v1767 = vmax.f32 %v1560, 0.0
        %v1768 = vmax.f32 %v1580, 0.0
        %v1769 = vmax.f32 %v1600, 0.0
        %v1770 = vmax.f32 %v1620, 0.0
        %v1771 = vmax.f32 %v1640, 0.0
        %v1772 = vmax.f32 %v1660, 0.0
        %v1773 = vmax.f32 %v1680, 0.0
        %v1774 = vmax.f32 %v1700, 0.0
        %v1775 = vmax.f32 %v1720, 0.0
        %v1776 = vmax.f32 %v1740, 0.0
        %v1777 = vmax.f32 %v1760, 0.0
        %v1778 = vld [vmem:[%s21] sm:$0xff]
        %v1779 = vld [vmem:[%s21 + $0x8] sm:$0xff]
        %v1780 = vld [vmem:[%s21 + $0x10] sm:$0xff]
        %v1781 = vld [vmem:[%s21 + $0x18] sm:$0xff]
        %v1782 = vld [vmem:[%s21 + $0x20] sm:$0xff]
        %v1783 = vld [vmem:[%s21 + $0x28] sm:$0xff]
        %v1784 = vld [vmem:[%s21 + $0x30] sm:$0xff]
        %v1785 = vld [vmem:[%s21 + $0x38] sm:$0xff]
        %v1786 = vld [vmem:[%s21 + $0x40] sm:$0xff]
        %v1787 = vld [vmem:[%s21 + $0x48] sm:$0xff]
        %v1788 = vld [vmem:[%s21 + $0x50] sm:$0xff]
        %v1789 = vld [vmem:[%s21 + $0x58] sm:$0xff]
        %v1790 = vld [vmem:[%s21 + $0x60] sm:$0xff]
        %v1791 = vld [vmem:[%s21 + $0x68] sm:$0xff]
        %v1792 = vld [vmem:[%s21 + $0x70] sm:$0xff]
        %v1793 = vld [vmem:[%s21 + $0x78] sm:$0xff]
        %v1794 = vld [vmem:[%s21 + $0x80] sm:$0xff]
        %v1795 = vld [vmem:[%s21 + $0x88] sm:$0xff]
        %v1796 = vld [vmem:[%s21 + $0x90] sm:$0xff]
        %v1797 = vld [vmem:[%s21 + $0x98] sm:$0xff]
        %v1798 = vld [vmem:[%s21 + $0xa0] sm:$0xff]
        %v1799 = vld [vmem:[%s21 + $0xa8] sm:$0xff]
        %v1800 = vld [vmem:[%s21 + $0xb0] sm:$0xff]
        %v1801 = vld [vmem:[%s21 + $0xb8] sm:$0xff]
        %v1802 = vld [vmem:[%s21 + $0xc0] sm:$0xff]
        %v1803 = vld [vmem:[%s21 + $0xc8] sm:$0xff]
        %v1804 = vld [vmem:[%s21 + $0xd0] sm:$0xff]
        %v1805 = vld [vmem:[%s21 + $0xd8] sm:$0xff]
        %v1806 = vld [vmem:[%s21 + $0xe0] sm:$0xff]
        %v1807 = vld [vmem:[%s21 + $0xe8] sm:$0xff]
        %v1808 = vld [vmem:[%s21 + $0xf0] sm:$0xff]
        %v1809 = vld [vmem:[%s21 + $0xf8] sm:$0xff]
        %v1810 = vld [vmem:[%s21 + $0x100] sm:$0xff]
        %v1811 = vld [vmem:[%s21 + $0x108] sm:$0xff]
        %v1812 = vld [vmem:[%s21 + $0x110] sm:$0xff]
        %v1813 = vld [vmem:[%s21 + $0x118] sm:$0xff]
        %v1814 = vld [vmem:[%s21 + $0x120] sm:$0xff]
        %v1815 = vld [vmem:[%s21 + $0x128] sm:$0xff]
        %v1816 = vld [vmem:[%s21 + $0x130] sm:$0xff]
        %v1817 = vld [vmem:[%s21 + $0x138] sm:$0xff]
        %v1818 = vld [vmem:[%s21 + $0x140] sm:$0xff]
        %v1819 = vld [vmem:[%s21 + $0x148] sm:$0xff]
        %v1820 = vld [vmem:[%s21 + $0x150] sm:$0xff]
        %v1821 = vld [vmem:[%s21 + $0x158] sm:$0xff]
        %v1822 = vld [vmem:[%s21 + $0x160] sm:$0xff]
        %v1823 = vld [vmem:[%s21 + $0x168] sm:$0xff]
        %v1824 = vld [vmem:[%s21 + $0x170] sm:$0xff]
        %v1825 = vld [vmem:[%s21 + $0x178] sm:$0xff]
        %v1826 = vld [vmem:[%s21 + $0x180] sm:$0xff]
        %v1827 = vld [vmem:[%s21 + $0x188] sm:$0xff]
        %v1828 = vld [vmem:[%s21 + $0x190] sm:$0xff]
        %v1829 = vld [vmem:[%s21 + $0x198] sm:$0xff]
        %v1830 = vld [vmem:[%s21 + $0x1a0] sm:$0xff]
        %v1831 = vld [vmem:[%s21 + $0x1a8] sm:$0xff]
        %v1832 = vld [vmem:[%s21 + $0x1b0] sm:$0xff]
        %v1833 = vld [vmem:[%s21 + $0x1b8] sm:$0xff]
        %v1834 = vld [vmem:[%s21 + $0x1c0] sm:$0xff]
        %v1835 = vld [vmem:[%s21 + $0x1c8] sm:$0xff]
        %v1836 = vld [vmem:[%s21 + $0x1d0] sm:$0xff]
        %v1837 = vld [vmem:[%s21 + $0x1d8] sm:$0xff]
        %v1838 = vld [vmem:[%s21 + $0x1e0] sm:$0xff]
        %v1839 = vld [vmem:[%s21 + $0x1e8] sm:$0xff]
        %v1840 = vld [vmem:[%s21 + $0x1f0] sm:$0xff]
        %v1841 = vld [vmem:[%s21 + $0x1f8] sm:$0xff]
        %v1842 = vld [vmem:[%s21 + $0x200] sm:$0xff]
        %v1843 = vld [vmem:[%s21 + $0x208] sm:$0xff]
        %v1844 = vld [vmem:[%s21 + $0x210] sm:$0xff]
        %v1845 = vld [vmem:[%s21 + $0x218] sm:$0xff]
        %v1846 = vld [vmem:[%s21 + $0x220] sm:$0xff]
        %v1847 = vld [vmem:[%s21 + $0x228] sm:$0xff]
        %v1848 = vld [vmem:[%s21 + $0x230] sm:$0xff]
        %v1849 = vld [vmem:[%s21 + $0x238] sm:$0xff]
        %v1850 = vld [vmem:[%s21 + $0x240] sm:$0xff]
        %v1851 = vld [vmem:[%s21 + $0x248] sm:$0xff]
        %v1852 = vld [vmem:[%s21 + $0x250] sm:$0xff]
        %v1853 = vld [vmem:[%s21 + $0x258] sm:$0xff]
        %v1854 = vld [vmem:[%s21 + $0x260] sm:$0xff]
        %v1855 = vld [vmem:[%s21 + $0x268] sm:$0xff]
        %v1856 = vld [vmem:[%s21 + $0x270] sm:$0xff]
        %v1857 = vld [vmem:[%s21 + $0x278] sm:$0xff]
        %v1858 = vld [vmem:[%s21 + $0x280] sm:$0xff]
        %v1859 = vld [vmem:[%s21 + $0x288] sm:$0xff]
        %v1860 = vld [vmem:[%s21 + $0x290] sm:$0xff]
        %v1861 = vld [vmem:[%s21 + $0x298] sm:$0xff]
        %v1862 = vld [vmem:[%s21 + $0x2a0] sm:$0xff]
        %v1863 = vld [vmem:[%s21 + $0x2a8] sm:$0xff]
        %v1864 = vld [vmem:[%s21 + $0x2b0] sm:$0xff]
        %v1865 = vld [vmem:[%s21 + $0x2b8] sm:$0xff]
        %v1866 = vld [vmem:[%s21 + $0x2c0] sm:$0xff]
        %v1867 = vld [vmem:[%s21 + $0x2c8] sm:$0xff]
        %v1868 = vld [vmem:[%s21 + $0x2d0] sm:$0xff]
        %v1869 = vld [vmem:[%s21 + $0x2d8] sm:$0xff]
        %v1870 = vld [vmem:[%s21 + $0x2e0] sm:$0xff]
        %v1871 = vld [vmem:[%s21 + $0x2e8] sm:$0xff]
        %v1872 = vld [vmem:[%s21 + $0x2f0] sm:$0xff]
        %v1873 = vld [vmem:[%s21 + $0x2f8] sm:$0xff]
        %v1874 = vld [vmem:[%s21 + $0x300] sm:$0xff]
        %v1875 = vld [vmem:[%s21 + $0x308] sm:$0xff]
        %v1876 = vld [vmem:[%s21 + $0x310] sm:$0xff]
        %v1877 = vld [vmem:[%s21 + $0x318] sm:$0xff]
        %v1878 = vld [vmem:[%s21 + $0x320] sm:$0xff]
        %v1879 = vld [vmem:[%s21 + $0x328] sm:$0xff]
        %v1880 = vld [vmem:[%s21 + $0x330] sm:$0xff]
        %v1881 = vld [vmem:[%s21 + $0x338] sm:$0xff]
        %v1882 = vld [vmem:[%s21 + $0x340] sm:$0xff]
        %v1883 = vld [vmem:[%s21 + $0x348] sm:$0xff]
        %v1884 = vld [vmem:[%s21 + $0x350] sm:$0xff]
        %v1885 = vld [vmem:[%s21 + $0x358] sm:$0xff]
        %v1886 = vld [vmem:[%s21 + $0x360] sm:$0xff]
        %v1887 = vld [vmem:[%s21 + $0x368] sm:$0xff]
        %v1888 = vld [vmem:[%s21 + $0x370] sm:$0xff]
        %v1889 = vld [vmem:[%s21 + $0x378] sm:$0xff]
        %v1890 = vld [vmem:[%s21 + $0x380] sm:$0xff]
        %v1891 = vld [vmem:[%s21 + $0x388] sm:$0xff]
        %v1892 = vld [vmem:[%s21 + $0x390] sm:$0xff]
        %v1893 = vld [vmem:[%s21 + $0x398] sm:$0xff]
        %v1894 = vld [vmem:[%s21 + $0x3a0] sm:$0xff]
        %v1895 = vld [vmem:[%s21 + $0x3a8] sm:$0xff]
        %v1896 = vld [vmem:[%s21 + $0x3b0] sm:$0xff]
        %v1897 = vld [vmem:[%s21 + $0x3b8] sm:$0xff]
        %v1898 = vld [vmem:[%s21 + $0x3c0] sm:$0xff]
        %v1899 = vld [vmem:[%s21 + $0x3c8] sm:$0xff]
        %v1900 = vld [vmem:[%s21 + $0x3d0] sm:$0xff]
        %v1901 = vld [vmem:[%s21 + $0x3d8] sm:$0xff]
        %v1902 = vld [vmem:[%s21 + $0x3e0] sm:$0xff]
        %v1903 = vld [vmem:[%s21 + $0x3e8] sm:$0xff]
        %v1904 = vld [vmem:[%s21 + $0x3f0] sm:$0xff]
        %v1905 = vld [vmem:[%s21 + $0x3f8] sm:$0xff]
        %v1906 = vld [vmem:[%s21 + $0x400] sm:$0xff]
        %v1907 = vld [vmem:[%s21 + $0x408] sm:$0xff]
        %v1908 = vld [vmem:[%s21 + $0x410] sm:$0xff]
        %v1909 = vld [vmem:[%s21 + $0x418] sm:$0xff]
        %v1910 = vld [vmem:[%s21 + $0x420] sm:$0xff]
        %v1911 = vld [vmem:[%s21 + $0x428] sm:$0xff]
        %v1912 = vld [vmem:[%s21 + $0x430] sm:$0xff]
        %v1913 = vld [vmem:[%s21 + $0x438] sm:$0xff]
        %v1914 = vld [vmem:[%s21 + $0x440] sm:$0xff]
        %v1915 = vld [vmem:[%s21 + $0x448] sm:$0xff]
        %v1916 = vld [vmem:[%s21 + $0x450] sm:$0xff]
        %v1917 = vld [vmem:[%s21 + $0x458] sm:$0xff]
        %v1918 = vld [vmem:[%s21 + $0x460] sm:$0xff]
        %v1919 = vld [vmem:[%s21 + $0x468] sm:$0xff]
        %v1920 = vld [vmem:[%s21 + $0x470] sm:$0xff]
        %v1921 = vld [vmem:[%s21 + $0x478] sm:$0xff]
        %v1922 = vld [vmem:[%s21 + $0x480] sm:$0xff]
        %v1923 = vld [vmem:[%s21 + $0x488] sm:$0xff]
        %v1924 = vld [vmem:[%s21 + $0x490] sm:$0xff]
        %v1925 = vld [vmem:[%s21 + $0x498] sm:$0xff]
        %v1926 = vld [vmem:[%s21 + $0x4a0] sm:$0xff]
        %v1927 = vld [vmem:[%s21 + $0x4a8] sm:$0xff]
        %v1928 = vld [vmem:[%s21 + $0x4b0] sm:$0xff]
        %v1929 = vld [vmem:[%s21 + $0x4b8] sm:$0xff]
        %v1930 = vld [vmem:[%s21 + $0x4c0] sm:$0xff]
        %v1931 = vld [vmem:[%s21 + $0x4c8] sm:$0xff]
        %v1932 = vld [vmem:[%s21 + $0x4d0] sm:$0xff]
        %v1933 = vld [vmem:[%s21 + $0x4d8] sm:$0xff]
        %v1934 = vld [vmem:[%s21 + $0x4e0] sm:$0xff]
        %v1935 = vld [vmem:[%s21 + $0x4e8] sm:$0xff]
        %v1936 = vld [vmem:[%s21 + $0x4f0] sm:$0xff]
        %v1937 = vld [vmem:[%s21 + $0x4f8] sm:$0xff]
        %v1938 = vld [vmem:[%s21 + $0x500] sm:$0xff]
        %v1939 = vld [vmem:[%s21 + $0x508] sm:$0xff]
        %v1940 = vld [vmem:[%s21 + $0x510] sm:$0xff]
        %v1941 = vld [vmem:[%s21 + $0x518] sm:$0xff]
        %v1942 = vld [vmem:[%s21 + $0x520] sm:$0xff]
        %v1943 = vld [vmem:[%s21 + $0x528] sm:$0xff]
        %v1944 = vld [vmem:[%s21 + $0x530] sm:$0xff]
        %v1945 = vld [vmem:[%s21 + $0x538] sm:$0xff]
        %v1946 = vld [vmem:[%s21 + $0x540] sm:$0xff]
        %v1947 = vld [vmem:[%s21 + $0x548] sm:$0xff]
        %v1948 = vld [vmem:[%s21 + $0x550] sm:$0xff]
        %v1949 = vld [vmem:[%s21 + $0x558] sm:$0xff]
        %v1950 = vld [vmem:[%s21 + $0x560] sm:$0xff]
        %v1951 = vld [vmem:[%s21 + $0x568] sm:$0xff]
        %v1952 = vld [vmem:[%s21 + $0x570] sm:$0xff]
        %v1953 = vld [vmem:[%s21 + $0x578] sm:$0xff]
        %v1954 = vld [vmem:[%s21 + $0x580] sm:$0xff]
        %v1955 = vld [vmem:[%s21 + $0x588] sm:$0xff]
        %v1956 = vld [vmem:[%s21 + $0x590] sm:$0xff]
        %v1957 = vld [vmem:[%s21 + $0x598] sm:$0xff]
        %v1958 = vld [vmem:[%s21 + $0x5a0] sm:$0xff]
        %v1959 = vld [vmem:[%s21 + $0x5a8] sm:$0xff]
        %v1960 = vld [vmem:[%s21 + $0x5b0] sm:$0xff]
        %v1961 = vld [vmem:[%s21 + $0x5b8] sm:$0xff]
        %v1962 = vld [vmem:[%s21 + $0x5c0] sm:$0xff]
        %v1963 = vld [vmem:[%s21 + $0x5c8] sm:$0xff]
        %v1964 = vld [vmem:[%s21 + $0x5d0] sm:$0xff]
        %v1965 = vld [vmem:[%s21 + $0x5d8] sm:$0xff]
        %v1966 = vld [vmem:[%s21 + $0x5e0] sm:$0xff]
        %v1967 = vld [vmem:[%s21 + $0x5e8] sm:$0xff]
        %v1968 = vld [vmem:[%s21 + $0x5f0] sm:$0xff]
        %v1969 = vld [vmem:[%s21 + $0x5f8] sm:$0xff]
        %v1970 = vld [vmem:[%s21 + $0x600] sm:$0xff]
        %v1971 = vld [vmem:[%s21 + $0x608] sm:$0xff]
        %v1972 = vld [vmem:[%s21 + $0x610] sm:$0xff]
        %v1973 = vld [vmem:[%s21 + $0x618] sm:$0xff]
        %v1974 = vld [vmem:[%s21 + $0x620] sm:$0xff]
        %v1975 = vld [vmem:[%s21 + $0x628] sm:$0xff]
        %v1976 = vld [vmem:[%s21 + $0x630] sm:$0xff]
        %v1977 = vld [vmem:[%s21 + $0x638] sm:$0xff]
        %v1978 = vld [vmem:[%s21 + $0x640] sm:$0xff]
        %v1979 = vld [vmem:[%s21 + $0x648] sm:$0xff]
        %v1980 = vld [vmem:[%s21 + $0x650] sm:$0xff]
        %v1981 = vld [vmem:[%s21 + $0x658] sm:$0xff]
        %v1982 = vld [vmem:[%s21 + $0x660] sm:$0xff]
        %v1983 = vld [vmem:[%s21 + $0x668] sm:$0xff]
        %v1984 = vld [vmem:[%s21 + $0x670] sm:$0xff]
        %v1985 = vld [vmem:[%s21 + $0x678] sm:$0xff]
        %v1986 = vld [vmem:[%s21 + $0x680] sm:$0xff]
        %v1987 = vld [vmem:[%s21 + $0x688] sm:$0xff]
        %v1988 = vld [vmem:[%s21 + $0x690] sm:$0xff]
        %v1989 = vld [vmem:[%s21 + $0x698] sm:$0xff]
        %v1990 = vld [vmem:[%s21 + $0x6a0] sm:$0xff]
        %v1991 = vld [vmem:[%s21 + $0x6a8] sm:$0xff]
        %v1992 = vld [vmem:[%s21 + $0x6b0] sm:$0xff]
        %v1993 = vld [vmem:[%s21 + $0x6b8] sm:$0xff]
        %v1994 = vld [vmem:[%s21 + $0x6c0] sm:$0xff]
        %v1995 = vld [vmem:[%s21 + $0x6c8] sm:$0xff]
        %v1996 = vld [vmem:[%s21 + $0x6d0] sm:$0xff]
        %v1997 = vld [vmem:[%s21 + $0x6d8] sm:$0xff]
        %v1998 = vld [vmem:[%s21 + $0x6e0] sm:$0xff]
        %v1999 = vld [vmem:[%s21 + $0x6e8] sm:$0xff]
        %v2000 = vld [vmem:[%s21 + $0x6f0] sm:$0xff]
        %v2001 = vld [vmem:[%s21 + $0x6f8] sm:$0xff]
        %v2002 = vld [vmem:[%s21 + $0x700] sm:$0xff]
        %v2003 = vld [vmem:[%s21 + $0x708] sm:$0xff]
        %v2004 = vld [vmem:[%s21 + $0x710] sm:$0xff]
        %v2005 = vld [vmem:[%s21 + $0x718] sm:$0xff]
        %v2006 = vld [vmem:[%s21 + $0x720] sm:$0xff]
        %v2007 = vld [vmem:[%s21 + $0x728] sm:$0xff]
        %v2008 = vld [vmem:[%s21 + $0x730] sm:$0xff]
        %v2009 = vld [vmem:[%s21 + $0x738] sm:$0xff]
        %v2010 = vld [vmem:[%s21 + $0x740] sm:$0xff]
        %v2011 = vld [vmem:[%s21 + $0x748] sm:$0xff]
        %v2012 = vld [vmem:[%s21 + $0x750] sm:$0xff]
        %v2013 = vld [vmem:[%s21 + $0x758] sm:$0xff]
        %v2014 = vld [vmem:[%s21 + $0x760] sm:$0xff]
        %v2015 = vld [vmem:[%s21 + $0x768] sm:$0xff]
        %v2016 = vld [vmem:[%s21 + $0x770] sm:$0xff]
        %v2017 = vld [vmem:[%s21 + $0x778] sm:$0xff]
        %v2018 = vld [vmem:[%s21 + $0x780] sm:$0xff]
        %v2019 = vld [vmem:[%s21 + $0x788] sm:$0xff]
        %v2020 = vld [vmem:[%s21 + $0x790] sm:$0xff]
        %v2021 = vld [vmem:[%s21 + $0x798] sm:$0xff]
        %v2022 = vld [vmem:[%s21 + $0x7a0] sm:$0xff]
        %v2023 = vld [vmem:[%s21 + $0x7a8] sm:$0xff]
        %v2024 = vld [vmem:[%s21 + $0x7b0] sm:$0xff]
        %v2025 = vld [vmem:[%s21 + $0x7b8] sm:$0xff]
        %v2026 = vld [vmem:[%s21 + $0x7c0] sm:$0xff]
        %v2027 = vld [vmem:[%s21 + $0x7c8] sm:$0xff]
        %v2028 = vld [vmem:[%s21 + $0x7d0] sm:$0xff]
        %v2029 = vld [vmem:[%s21 + $0x7d8] sm:$0xff]
        %v2030 = vld [vmem:[%s21 + $0x7e0] sm:$0xff]
        %v2031 = vld [vmem:[%s21 + $0x7e8] sm:$0xff]
        %v2032 = vld [vmem:[%s21 + $0x7f0] sm:$0xff]
        %v2033 = vld [vmem:[%s21 + $0x7f8] sm:$0xff]
        %v2034 = vld [vmem:[%s22] sm:$0x1]
        %v2036 = vperm.slane %v2034, 0
        %2038 = vmatpush.msra.mxu0 %v1793
        %2039 = vmatpush.msra.mxu0 %v1792
        %2040 = vmatpush.msra.mxu0 %v1791
        %2041 = vmatpush.msra.mxu0 %v1790
        %2042 = vmatpush.msra.mxu0 %v1789
        %2043 = vmatpush.msra.mxu0 %v1788
        %2044 = vmatpush.msra.mxu0 %v1787
        %2045 = vmatpush.msra.mxu0 %v1786
        %2046 = vmatpush.msra.mxu0 %v1785
        %2047 = vmatpush.msra.mxu0 %v1784
        %2048 = vmatpush.msra.mxu0 %v1783
        %2049 = vmatpush.msra.mxu0 %v1782
        %2050 = vmatpush.msra.mxu0 %v1781
        %2051 = vmatpush.msra.mxu0 %v1780
        %2052 = vmatpush.msra.mxu0 %v1779
        %2053 = vmatpush.msra.mxu0 %v1778
        %2054 = vmatmul.f32.gmra.mxu0 %v1762
        %v2055 = vpop.f32.mrf.mxu0
        %v2056 = vadd.f32 %v2036, %v2055
        %2057 = vdwg.mxu0
        %2058 = vmatpush.msra.mxu0 %v1809
        %2059 = vmatpush.msra.mxu0 %v1808
        %2060 = vmatpush.msra.mxu0 %v1807
        %2061 = vmatpush.msra.mxu0 %v1806
        %2062 = vmatpush.msra.mxu0 %v1805
        %2063 = vmatpush.msra.mxu0 %v1804
        %2064 = vmatpush.msra.mxu0 %v1803
        %2065 = vmatpush.msra.mxu0 %v1802
        %2066 = vmatpush.msra.mxu0 %v1801
        %2067 = vmatpush.msra.mxu0 %v1800
        %2068 = vmatpush.msra.mxu0 %v1799
        %2069 = vmatpush.msra.mxu0 %v1798
        %2070 = vmatpush.msra.mxu0 %v1797
        %2071 = vmatpush.msra.mxu0 %v1796
        %2072 = vmatpush.msra.mxu0 %v1795
        %2073 = vmatpush.msra.mxu0 %v1794
        %2074 = vmatmul.f32.gmra.mxu0 %v1763
        %v2075 = vpop.f32.mrf.mxu0
        %v2076 = vadd.f32 %v2056, %v2075
        %2077 = vdwg.mxu0
        %2078 = vmatpush.msra.mxu0 %v1825
        %2079 = vmatpush.msra.mxu0 %v1824
        %2080 = vmatpush.msra.mxu0 %v1823
        %2081 = vmatpush.msra.mxu0 %v1822
        %2082 = vmatpush.msra.mxu0 %v1821
        %2083 = vmatpush.msra.mxu0 %v1820
        %2084 = vmatpush.msra.mxu0 %v1819
        %2085 = vmatpush.msra.mxu0 %v1818
        %2086 = vmatpush.msra.mxu0 %v1817
        %2087 = vmatpush.msra.mxu0 %v1816
        %2088 = vmatpush.msra.mxu0 %v1815
        %2089 = vmatpush.msra.mxu0 %v1814
        %2090 = vmatpush.msra.mxu0 %v1813
        %2091 = vmatpush.msra.mxu0 %v1812
        %2092 = vmatpush.msra.mxu0 %v1811
        %2093 = vmatpush.msra.mxu0 %v1810
        %2094 = vmatmul.f32.gmra.mxu0 %v1764
        %v2095 = vpop.f32.mrf.mxu0
        %v2096 = vadd.f32 %v2076, %v2095
        %2097 = vdwg.mxu0
        %2098 = vmatpush.msra.mxu0 %v1841
        %2099 = vmatpush.msra.mxu0 %v1840
        %2100 = vmatpush.msra.mxu0 %v1839
        %2101 = vmatpush.msra.mxu0 %v1838
        %2102 = vmatpush.msra.mxu0 %v1837
        %2103 = vmatpush.msra.mxu0 %v1836
        %2104 = vmatpush.msra.mxu0 %v1835
        %2105 = vmatpush.msra.mxu0 %v1834
        %2106 = vmatpush.msra.mxu0 %v1833
        %2107 = vmatpush.msra.mxu0 %v1832
        %2108 = vmatpush.msra.mxu0 %v1831
        %2109 = vmatpush.msra.mxu0 %v1830
        %2110 = vmatpush.msra.mxu0 %v1829
        %2111 = vmatpush.msra.mxu0 %v1828
        %2112 = vmatpush.msra.mxu0 %v1827
        %2113 = vmatpush.msra.mxu0 %v1826
        %2114 = vmatmul.f32.gmra.mxu0 %v1765
        %v2115 = vpop.f32.mrf.mxu0
        %v2116 = vadd.f32 %v2096, %v2115
        %2117 = vdwg.mxu0
        %2118 = vmatpush.msra.mxu0 %v1857
        %2119 = vmatpush.msra.mxu0 %v1856
        %2120 = vmatpush.msra.mxu0 %v1855
        %2121 = vmatpush.msra.mxu0 %v1854
        %2122 = vmatpush.msra.mxu0 %v1853
        %2123 = vmatpush.msra.mxu0 %v1852
        %2124 = vmatpush.msra.mxu0 %v1851
        %2125 = vmatpush.msra.mxu0 %v1850
        %2126 = vmatpush.msra.mxu0 %v1849
        %2127 = vmatpush.msra.mxu0 %v1848
        %2128 = vmatpush.msra.mxu0 %v1847
        %2129 = vmatpush.msra.mxu0 %v1846
        %2130 = vmatpush.msra.mxu0 %v1845
        %2131 = vmatpush.msra.mxu0 %v1844
        %2132 = vmatpush.msra.mxu0 %v1843
        %2133 = vmatpush.msra.mxu0 %v1842
        %2134 = vmatmul.f32.gmra.mxu0 %v1766
        %v2135 = vpop.f32.mrf.mxu0
        %v2136 = vadd.f32 %v2116, %v2135
        %2137 = vdwg.mxu0
        %2138 = vmatpush.msra.mxu0 %v1873
        %2139 = vmatpush.msra.mxu0 %v1872
        %2140 = vmatpush.msra.mxu0 %v1871
        %2141 = vmatpush.msra.mxu0 %v1870
        %2142 = vmatpush.msra.mxu0 %v1869
        %2143 = vmatpush.msra.mxu0 %v1868
        %2144 = vmatpush.msra.mxu0 %v1867
        %2145 = vmatpush.msra.mxu0 %v1866
        %2146 = vmatpush.msra.mxu0 %v1865
        %2147 = vmatpush.msra.mxu0 %v1864
        %2148 = vmatpush.msra.mxu0 %v1863
        %2149 = vmatpush.msra.mxu0 %v1862
        %2150 = vmatpush.msra.mxu0 %v1861
        %2151 = vmatpush.msra.mxu0 %v1860
        %2152 = vmatpush.msra.mxu0 %v1859
        %2153 = vmatpush.msra.mxu0 %v1858
        %2154 = vmatmul.f32.gmra.mxu0 %v1767
        %v2155 = vpop.f32.mrf.mxu0
        %v2156 = vadd.f32 %v2136, %v2155
        %2157 = vdwg.mxu0
        %2158 = vmatpush.msra.mxu0 %v1889
        %2159 = vmatpush.msra.mxu0 %v1888
        %2160 = vmatpush.msra.mxu0 %v1887
        %2161 = vmatpush.msra.mxu0 %v1886
        %2162 = vmatpush.msra.mxu0 %v1885
        %2163 = vmatpush.msra.mxu0 %v1884
        %2164 = vmatpush.msra.mxu0 %v1883
        %2165 = vmatpush.msra.mxu0 %v1882
        %2166 = vmatpush.msra.mxu0 %v1881
        %2167 = vmatpush.msra.mxu0 %v1880
        %2168 = vmatpush.msra.mxu0 %v1879
        %2169 = vmatpush.msra.mxu0 %v1878
        %2170 = vmatpush.msra.mxu0 %v1877
        %2171 = vmatpush.msra.mxu0 %v1876
        %2172 = vmatpush.msra.mxu0 %v1875
        %2173 = vmatpush.msra.mxu0 %v1874
        %2174 = vmatmul.f32.gmra.mxu0 %v1768
        %v2175 = vpop.f32.mrf.mxu0
        %v2176 = vadd.f32 %v2156, %v2175
        %2177 = vdwg.mxu0
        %2178 = vmatpush.msra.mxu0 %v1905
        %2179 = vmatpush.msra.mxu0 %v1904
        %2180 = vmatpush.msra.mxu0 %v1903
        %2181 = vmatpush.msra.mxu0 %v1902
        %2182 = vmatpush.msra.mxu0 %v1901
        %2183 = vmatpush.msra.mxu0 %v1900
        %2184 = vmatpush.msra.mxu0 %v1899
        %2185 = vmatpush.msra.mxu0 %v1898
        %2186 = vmatpush.msra.mxu0 %v1897
        %2187 = vmatpush.msra.mxu0 %v1896
        %2188 = vmatpush.msra.mxu0 %v1895
        %2189 = vmatpush.msra.mxu0 %v1894
        %2190 = vmatpush.msra.mxu0 %v1893
        %2191 = vmatpush.msra.mxu0 %v1892
        %2192 = vmatpush.msra.mxu0 %v1891
        %2193 = vmatpush.msra.mxu0 %v1890
        %2194 = vmatmul.f32.gmra.mxu0 %v1769
        %v2195 = vpop.f32.mrf.mxu0
        %v2196 = vadd.f32 %v2176, %v2195
        %2197 = vdwg.mxu0
        %2198 = vmatpush.msra.mxu0 %v1921
        %2199 = vmatpush.msra.mxu0 %v1920
        %2200 = vmatpush.msra.mxu0 %v1919
        %2201 = vmatpush.msra.mxu0 %v1918
        %2202 = vmatpush.msra.mxu0 %v1917
        %2203 = vmatpush.msra.mxu0 %v1916
        %2204 = vmatpush.msra.mxu0 %v1915
        %2205 = vmatpush.msra.mxu0 %v1914
        %2206 = vmatpush.msra.mxu0 %v1913
        %2207 = vmatpush.msra.mxu0 %v1912
        %2208 = vmatpush.msra.mxu0 %v1911
        %2209 = vmatpush.msra.mxu0 %v1910
        %2210 = vmatpush.msra.mxu0 %v1909
        %2211 = vmatpush.msra.mxu0 %v1908
        %2212 = vmatpush.msra.mxu0 %v1907
        %2213 = vmatpush.msra.mxu0 %v1906
        %2214 = vmatmul.f32.gmra.mxu0 %v1770
        %v2215 = vpop.f32.mrf.mxu0
        %v2216 = vadd.f32 %v2196, %v2215
        %2217 = vdwg.mxu0
        %2218 = vmatpush.msra.mxu0 %v1937
        %2219 = vmatpush.msra.mxu0 %v1936
        %2220 = vmatpush.msra.mxu0 %v1935
        %2221 = vmatpush.msra.mxu0 %v1934
        %2222 = vmatpush.msra.mxu0 %v1933
        %2223 = vmatpush.msra.mxu0 %v1932
        %2224 = vmatpush.msra.mxu0 %v1931
        %2225 = vmatpush.msra.mxu0 %v1930
        %2226 = vmatpush.msra.mxu0 %v1929
        %2227 = vmatpush.msra.mxu0 %v1928
        %2228 = vmatpush.msra.mxu0 %v1927
        %2229 = vmatpush.msra.mxu0 %v1926
        %2230 = vmatpush.msra.mxu0 %v1925
        %2231 = vmatpush.msra.mxu0 %v1924
        %2232 = vmatpush.msra.mxu0 %v1923
        %2233 = vmatpush.msra.mxu0 %v1922
        %2234 = vmatmul.f32.gmra.mxu0 %v1771
        %v2235 = vpop.f32.mrf.mxu0
        %v2236 = vadd.f32 %v2216, %v2235
        %2237 = vdwg.mxu0
        %2238 = vmatpush.msra.mxu0 %v1953
        %2239 = vmatpush.msra.mxu0 %v1952
        %2240 = vmatpush.msra.mxu0 %v1951
        %2241 = vmatpush.msra.mxu0 %v1950
        %2242 = vmatpush.msra.mxu0 %v1949
        %2243 = vmatpush.msra.mxu0 %v1948
        %2244 = vmatpush.msra.mxu0 %v1947
        %2245 = vmatpush.msra.mxu0 %v1946
        %2246 = vmatpush.msra.mxu0 %v1945
        %2247 = vmatpush.msra.mxu0 %v1944
        %2248 = vmatpush.msra.mxu0 %v1943
        %2249 = vmatpush.msra.mxu0 %v1942
        %2250 = vmatpush.msra.mxu0 %v1941
        %2251 = vmatpush.msra.mxu0 %v1940
        %2252 = vmatpush.msra.mxu0 %v1939
        %2253 = vmatpush.msra.mxu0 %v1938
        %2254 = vmatmul.f32.gmra.mxu0 %v1772
        %v2255 = vpop.f32.mrf.mxu0
        %v2256 = vadd.f32 %v2236, %v2255
        %2257 = vdwg.mxu0
        %2258 = vmatpush.msra.mxu0 %v1969
        %2259 = vmatpush.msra.mxu0 %v1968
        %2260 = vmatpush.msra.mxu0 %v1967
        %2261 = vmatpush.msra.mxu0 %v1966
        %2262 = vmatpush.msra.mxu0 %v1965
        %2263 = vmatpush.msra.mxu0 %v1964
        %2264 = vmatpush.msra.mxu0 %v1963
        %2265 = vmatpush.msra.mxu0 %v1962
        %2266 = vmatpush.msra.mxu0 %v1961
        %2267 = vmatpush.msra.mxu0 %v1960
        %2268 = vmatpush.msra.mxu0 %v1959
        %2269 = vmatpush.msra.mxu0 %v1958
        %2270 = vmatpush.msra.mxu0 %v1957
        %2271 = vmatpush.msra.mxu0 %v1956
        %2272 = vmatpush.msra.mxu0 %v1955
        %2273 = vmatpush.msra.mxu0 %v1954
        %2274 = vmatmul.f32.gmra.mxu0 %v1773
        %v2275 = vpop.f32.mrf.mxu0
        %v2276 = vadd.f32 %v2256, %v2275
        %2277 = vdwg.mxu0
        %2278 = vmatpush.msra.mxu0 %v1985
        %2279 = vmatpush.msra.mxu0 %v1984
        %2280 = vmatpush.msra.mxu0 %v1983
        %2281 = vmatpush.msra.mxu0 %v1982
        %2282 = vmatpush.msra.mxu0 %v1981
        %2283 = vmatpush.msra.mxu0 %v1980
        %2284 = vmatpush.msra.mxu0 %v1979
        %2285 = vmatpush.msra.mxu0 %v1978
        %2286 = vmatpush.msra.mxu0 %v1977
        %2287 = vmatpush.msra.mxu0 %v1976
        %2288 = vmatpush.msra.mxu0 %v1975
        %2289 = vmatpush.msra.mxu0 %v1974
        %2290 = vmatpush.msra.mxu0 %v1973
        %2291 = vmatpush.msra.mxu0 %v1972
        %2292 = vmatpush.msra.mxu0 %v1971
        %2293 = vmatpush.msra.mxu0 %v1970
        %2294 = vmatmul.f32.gmra.mxu0 %v1774
        %v2295 = vpop.f32.mrf.mxu0
        %v2296 = vadd.f32 %v2276, %v2295
        %2297 = vdwg.mxu0
        %2298 = vmatpush.msra.mxu0 %v2001
        %2299 = vmatpush.msra.mxu0 %v2000
        %2300 = vmatpush.msra.mxu0 %v1999
        %2301 = vmatpush.msra.mxu0 %v1998
        %2302 = vmatpush.msra.mxu0 %v1997
        %2303 = vmatpush.msra.mxu0 %v1996
        %2304 = vmatpush.msra.mxu0 %v1995
        %2305 = vmatpush.msra.mxu0 %v1994
        %2306 = vmatpush.msra.mxu0 %v1993
        %2307 = vmatpush.msra.mxu0 %v1992
        %2308 = vmatpush.msra.mxu0 %v1991
        %2309 = vmatpush.msra.mxu0 %v1990
        %2310 = vmatpush.msra.mxu0 %v1989
        %2311 = vmatpush.msra.mxu0 %v1988
        %2312 = vmatpush.msra.mxu0 %v1987
        %2313 = vmatpush.msra.mxu0 %v1986
        %2314 = vmatmul.f32.gmra.mxu0 %v1775
        %v2315 = vpop.f32.mrf.mxu0
        %v2316 = vadd.f32 %v2296, %v2315
        %2317 = vdwg.mxu0
        %2318 = vmatpush.msra.mxu0 %v2017
        %2319 = vmatpush.msra.mxu0 %v2016
        %2320 = vmatpush.msra.mxu0 %v2015
        %2321 = vmatpush.msra.mxu0 %v2014
        %2322 = vmatpush.msra.mxu0 %v2013
        %2323 = vmatpush.msra.mxu0 %v2012
        %2324 = vmatpush.msra.mxu0 %v2011
        %2325 = vmatpush.msra.mxu0 %v2010
        %2326 = vmatpush.msra.mxu0 %v2009
        %2327 = vmatpush.msra.mxu0 %v2008
        %2328 = vmatpush.msra.mxu0 %v2007
        %2329 = vmatpush.msra.mxu0 %v2006
        %2330 = vmatpush.msra.mxu0 %v2005
        %2331 = vmatpush.msra.mxu0 %v2004
        %2332 = vmatpush.msra.mxu0 %v2003
        %2333 = vmatpush.msra.mxu0 %v2002
        %2334 = vmatmul.f32.gmra.mxu0 %v1776
        %v2335 = vpop.f32.mrf.mxu0
        %v2336 = vadd.f32 %v2316, %v2335
        %2337 = vdwg.mxu0
        %2338 = vmatpush.msra.mxu0 %v2033
        %2339 = vmatpush.msra.mxu0 %v2032
        %2340 = vmatpush.msra.mxu0 %v2031
        %2341 = vmatpush.msra.mxu0 %v2030
        %2342 = vmatpush.msra.mxu0 %v2029
        %2343 = vmatpush.msra.mxu0 %v2028
        %2344 = vmatpush.msra.mxu0 %v2027
        %2345 = vmatpush.msra.mxu0 %v2026
        %2346 = vmatpush.msra.mxu0 %v2025
        %2347 = vmatpush.msra.mxu0 %v2024
        %2348 = vmatpush.msra.mxu0 %v2023
        %2349 = vmatpush.msra.mxu0 %v2022
        %2350 = vmatpush.msra.mxu0 %v2021
        %2351 = vmatpush.msra.mxu0 %v2020
        %2352 = vmatpush.msra.mxu0 %v2019
        %2353 = vmatpush.msra.mxu0 %v2018
        %2354 = vmatmul.f32.gmra.mxu0 %v1777
        %v2355 = vpop.f32.mrf.mxu0
        %v2356 = vadd.f32 %v2336, %v2355
        %2357 = vdwg.mxu0
        %v2358 = vadd.f32 %v1338, %v2356
        %v2359 = vld [vmem:[%s17] sm:$0x1]
        %v2360 = vld [vmem:[%s18] sm:$0x1]
        %v2361 = vsel %vm860, %v2358, 0.0
        %2362 = vadd.xlane.f32.xlu0 %v2361
        %v2363 = vpop.xlane.xlu0 %2362
        %v2364 = vmul.f32 %v2363, %v1248
        %v2365 = vsub.f32 %v2358, %v2364
        %v2366 = vmul.f32 %v2365, %v2365
        %v2367 = vsel %vm860, %v2366, 0.0
        %2368 = vadd.xlane.f32.xlu0 %v2367
        %v2369 = vpop.xlane.xlu0 %2368
        %v2370 = vmul.f32 %v2369, %v1248
        %v2371 = vadd.f32 %v2370, 1e-05
        %v2372 = vrsqrt.pop %v2371
        %v2373 = vmul.f32 %v2372, %v2371
        %v2374 = vmul.f32 %v2373, %v2372
        %v2375 = vmul.f32 0.5, %v2374
        %v2376 = vsub.f32 1.5, %v2375
        %v2377 = vmul.f32 %v2372, %v2376
        %vm2378 = vweird.f32 %v2371
        %vm2379 = vweird.f32 %v2372
        %vm2380 = vmor %vm2378, %vm2379
        %v2381 = vsel %vm2380, %v2372, %v2377
        %v2382 = vmul.f32 %v2365, %v2381
        %v2384 = vperm.slane %v2359, 0
        %v2386 = vmul.f32 %v2382, %v2384
        %v2388 = vperm.slane %v2360, 0
        %v2390 = vadd.f32 %v2386, %v2388
        %s2391 = scalar_lea.vmem %s10, 1
        %v2392 = vld [vmem:[%s2391] sm:$0x1]
        %s2393 = scalar_lea.vmem %s3, 64
        %v2394 = vld [vmem:[%s2393] sm:$0xff]
        %v2395 = vld [vmem:[%s2393 + $0x8] sm:$0xff]
        %v2396 = vld [vmem:[%s2393 + $0x10] sm:$0xff]
        %v2397 = vld [vmem:[%s2393 + $0x18] sm:$0xff]
        %s2398 = scalar_lea.vmem %s6, 2
        %v2399 = vld [vmem:[%s2398] sm:$0x1]
        %v2401 = vperm.slane %v2399, 0
        %v2404 = vsel %vm860, %v2390, 0
        %2406 = vmatpush.msra.mxu0 0.0
        %2407 = vmatpush.msra.mxu0 0.0
        %2408 = vmatpush.msra.mxu0 0.0
        %2409 = vmatpush.msra.mxu0 0.0
        %2410 = vmatpush.msra.mxu0 0.0
        %2411 = vmatpush.msra.mxu0 0.0
        %2412 = vmatpush.msra.mxu0 0.0
        %2413 = vmatpush.msra.mxu0 0.0
        %2414 = vmatpush.msra.mxu0 0.0
        %2415 = vmatpush.msra.mxu0 0.0
        %2416 = vmatpush.msra.mxu0 0.0
        %2417 = vmatpush.msra.mxu0 0.0
        %2418 = vmatpush.msra.mxu0 %v2397
        %2419 = vmatpush.msra.mxu0 %v2396
        %2420 = vmatpush.msra.mxu0 %v2395
        %2421 = vmatpush.msra.mxu0 %v2394
        %2422 = vmatmul.f32.gmra.mxu0 %v2404
        %v2423 = vpop.f32.mrf.mxu0
        %v2424 = vadd.f32 %v2401, %v2423
        %2425 = vdwg.mxu0
        %s2426 = scalar_lea.vmem %s4, 64
        %v2427 = vld [vmem:[%s2426] sm:$0xff]
        %v2428 = vld [vmem:[%s2426 + $0x8] sm:$0xff]
        %v2429 = vld [vmem:[%s2426 + $0x10] sm:$0xff]
        %v2430 = vld [vmem:[%s2426 + $0x18] sm:$0xff]
        %s2431 = scalar_lea.vmem %s7, 2
        %v2432 = vld [vmem:[%s2431] sm:$0x1]
        %v2434 = vperm.slane %v2432, 0
        %2436 = vmatpush.msra.mxu0 0.0
        %2437 = vmatpush.msra.mxu0 0.0
        %2438 = vmatpush.msra.mxu0 0.0
        %2439 = vmatpush.msra.mxu0 0.0
        %2440 = vmatpush.msra.mxu0 0.0
        %2441 = vmatpush.msra.mxu0 0.0
        %2442 = vmatpush.msra.mxu0 0.0
        %2443 = vmatpush.msra.mxu0 0.0
        %2444 = vmatpush.msra.mxu0 0.0
        %2445 = vmatpush.msra.mxu0 0.0
        %2446 = vmatpush.msra.mxu0 0.0
        %2447 = vmatpush.msra.mxu0 0.0
        %2448 = vmatpush.msra.mxu0 %v2430
        %2449 = vmatpush.msra.mxu0 %v2429
        %2450 = vmatpush.msra.mxu0 %v2428
        %2451 = vmatpush.msra.mxu0 %v2427
        %2452 = vmatmul.f32.gmra.mxu0 %v2404
        %v2453 = vpop.f32.mrf.mxu0
        %v2454 = vadd.f32 %v2434, %v2453
        %2455 = vdwg.mxu0
        %s2456 = scalar_lea.vmem %s5, 64
        %v2457 = vld [vmem:[%s2456] sm:$0xff]
        %v2458 = vld [vmem:[%s2456 + $0x8] sm:$0xff]
        %v2459 = vld [vmem:[%s2456 + $0x10] sm:$0xff]
        %v2460 = vld [vmem:[%s2456 + $0x18] sm:$0xff]
        %s2461 = scalar_lea.vmem %s8, 2
        %v2462 = vld [vmem:[%s2461] sm:$0x1]
        %v2464 = vperm.slane %v2462, 0
        %2466 = vmatpush.msra.mxu0 0.0
        %2467 = vmatpush.msra.mxu0 0.0
        %2468 = vmatpush.msra.mxu0 0.0
        %2469 = vmatpush.msra.mxu0 0.0
        %2470 = vmatpush.msra.mxu0 0.0
        %2471 = vmatpush.msra.mxu0 0.0
        %2472 = vmatpush.msra.mxu0 0.0
        %2473 = vmatpush.msra.mxu0 0.0
        %2474 = vmatpush.msra.mxu0 0.0
        %2475 = vmatpush.msra.mxu0 0.0
        %2476 = vmatpush.msra.mxu0 0.0
        %2477 = vmatpush.msra.mxu0 0.0
        %2478 = vmatpush.msra.mxu0 %v2460
        %2479 = vmatpush.msra.mxu0 %v2459
        %2480 = vmatpush.msra.mxu0 %v2458
        %2481 = vmatpush.msra.mxu0 %v2457
        %2482 = vmatmul.f32.gmra.mxu0 %v2404
        %v2483 = vpop.f32.mrf.mxu0
        %v2484 = vadd.f32 %v2464, %v2483
        %2485 = vdwg.mxu0
        %v2487 = vsel %vm940, %v2424, 0
        %v2490 = vsel %vm940, %v2454, 0
        %2492 = vmatpush.xpose.msra.mxu0 0.0
        %2493 = vmatpush.xpose.msra.mxu0 0.0
        %2494 = vmatpush.xpose.msra.mxu0 0.0
        %2495 = vmatpush.xpose.msra.mxu0 0.0
        %2496 = vmatpush.xpose.msra.mxu0 0.0
        %2497 = vmatpush.xpose.msra.mxu0 0.0
        %2498 = vmatpush.xpose.msra.mxu0 0.0
        %2499 = vmatpush.xpose.msra.mxu0 0.0
        %2500 = vmatpush.xpose.msra.mxu0 0.0
        %2501 = vmatpush.xpose.msra.mxu0 0.0
        %2502 = vmatpush.xpose.msra.mxu0 0.0
        %2503 = vmatpush.xpose.msra.mxu0 0.0
        %2504 = vmatpush.xpose.msra.mxu0 0.0
        %2505 = vmatpush.xpose.msra.mxu0 0.0
        %2506 = vmatpush.xpose.msra.mxu0 0.0
        %2507 = vmatpush.xpose.msra.mxu0 %v2490
        %2508 = vmatmul.f32.gmra.mxu0 %v2487
        %v2509 = vpop.f32.mrf.mxu0
        %v2510 = vadd.f32 0.0, %v2509
        %2511 = vdwg.mxu0
        %v2512 = vmul.f32 %v2510, 0.25
        %v2513 = vsel %vm968, %v2512, -inf
        %2514 = vmax.xlane.f32.xlu0 %v2513
        %v2515 = vpop.xlane.xlu0 %2514
        %v2516 = vsub.f32 %v2512, %v2515
        %v2517 = vmul.f32 %v2516, 1.442695
        %v2518 = vpow.pop %v2517
        %v2519 = vsel %vm968, %v2518, 0.0
        %2520 = vadd.xlane.f32.xlu0 %v2519
        %v2521 = vpop.xlane.xlu0 %2520
        %v2522 = vrcp.pop %v2521
        %v2523 = vmul.f32 %v2521, %v2522
        %v2524 = vsub.f32 1.0, %v2523
        %v2525 = vmul.f32 %v2522, %v2524
        %v2526 = vadd.f32 %v2522, %v2525
        %vm2527 = vweird.f32 %v2521
        %vm2528 = vweird.f32 %v2522
        %vm2529 = vmor %vm2527, %vm2528
        %v2530 = vsel %vm2529, %v2522, %v2526
        %v2531 = vand.u32 2147483647, %v2521
        %vm2532 = vcmp.eq.f32.partialorder %v2531, 8.507059e+37
        %v2533 = vand.u32 %v2521, 2147483648
        %v2534 = vor.u32 1.1754944e-38, %v2533
        %v2535 = vsel %vm2532, %v2534, %v2530
        %v2536 = vmul.f32 %v2518, %v2535
        %v2538 = vsel %vm968, %v2536, 0
        %2540 = vmatpush.msra.mxu0 0.0
        %2541 = vmatpush.msra.mxu0 0.0
        %2542 = vmatpush.msra.mxu0 0.0
        %2543 = vmatpush.msra.mxu0 0.0
        %2544 = vmatpush.msra.mxu0 0.0
        %2545 = vmatpush.msra.mxu0 0.0
        %2546 = vmatpush.msra.mxu0 0.0
        %2547 = vmatpush.msra.mxu0 0.0
        %2548 = vmatpush.msra.mxu0 0.0
        %2549 = vmatpush.msra.mxu0 0.0
        %2550 = vmatpush.msra.mxu0 0.0
        %2551 = vmatpush.msra.mxu0 0.0
        %2552 = vmatpush.msra.mxu0 0.0
        %2553 = vmatpush.msra.mxu0 0.0
        %2554 = vmatpush.msra.mxu0 0.0
        %2555 = vmatpush.msra.mxu0 %v2484
        %2556 = vmatmul.f32.gmra.mxu0 %v2538
        %v2557 = vpop.f32.mrf.mxu0
        %v2558 = vadd.f32 0.0, %v2557
        %2559 = vdwg.mxu0
        %s2560 = scalar_lea.vmem %s9, 32
        %v2561 = vld [vmem:[%s2560] sm:$0xff]
        %v2562 = vld [vmem:[%s2560 + $0x8] sm:$0xff]
        %v2564 = vsel %vm940, %v2558, 0
        %2566 = vmatpush.msra.mxu0 0.0
        %2567 = vmatpush.msra.mxu0 0.0
        %2568 = vmatpush.msra.mxu0 0.0
        %2569 = vmatpush.msra.mxu0 0.0
        %2570 = vmatpush.msra.mxu0 0.0
        %2571 = vmatpush.msra.mxu0 0.0
        %2572 = vmatpush.msra.mxu0 0.0
        %2573 = vmatpush.msra.mxu0 0.0
        %2574 = vmatpush.msra.mxu0 0.0
        %2575 = vmatpush.msra.mxu0 0.0
        %2576 = vmatpush.msra.mxu0 0.0
        %2577 = vmatpush.msra.mxu0 0.0
        %2578 = vmatpush.msra.mxu0 0.0
        %2579 = vmatpush.msra.mxu0 0.0
        %2580 = vmatpush.msra.mxu0 %v2562
        %2581 = vmatpush.msra.mxu0 %v2561
        %2582 = vmatmul.f32.gmra.mxu0 %v2564
        %v2583 = vpop.f32.mrf.mxu0
        %v2584 = vadd.f32 0.0, %v2583
        %2585 = vdwg.mxu0
        %v2587 = vperm.slane %v2392, 0
        %v2589 = vadd.f32 %v2587, %v2584
        %s2590 = scalar_lea.vmem %s3, 96
        %v2591 = vld [vmem:[%s2590] sm:$0xff]
        %v2592 = vld [vmem:[%s2590 + $0x8] sm:$0xff]
        %v2593 = vld [vmem:[%s2590 + $0x10] sm:$0xff]
        %v2594 = vld [vmem:[%s2590 + $0x18] sm:$0xff]
        %s2595 = scalar_lea.vmem %s6, 3
        %v2596 = vld [vmem:[%s2595] sm:$0x1]
        %v2598 = vperm.slane %v2596, 0
        %2600 = vmatpush.msra.mxu0 0.0
        %2601 = vmatpush.msra.mxu0 0.0
        %2602 = vmatpush.msra.mxu0 0.0
        %2603 = vmatpush.msra.mxu0 0.0
        %2604 = vmatpush.msra.mxu0 0.0
        %2605 = vmatpush.msra.mxu0 0.0
        %2606 = vmatpush.msra.mxu0 0.0
        %2607 = vmatpush.msra.mxu0 0.0
        %2608 = vmatpush.msra.mxu0 0.0
        %2609 = vmatpush.msra.mxu0 0.0
        %2610 = vmatpush.msra.mxu0 0.0
        %2611 = vmatpush.msra.mxu0 0.0
        %2612 = vmatpush.msra.mxu0 %v2594
        %2613 = vmatpush.msra.mxu0 %v2593
        %2614 = vmatpush.msra.mxu0 %v2592
        %2615 = vmatpush.msra.mxu0 %v2591
        %2616 = vmatmul.f32.gmra.mxu0 %v2404
        %v2617 = vpop.f32.mrf.mxu0
        %v2618 = vadd.f32 %v2598, %v2617
        %2619 = vdwg.mxu0
        %s2620 = scalar_lea.vmem %s4, 96
        %v2621 = vld [vmem:[%s2620] sm:$0xff]
        %v2622 = vld [vmem:[%s2620 + $0x8] sm:$0xff]
        %v2623 = vld [vmem:[%s2620 + $0x10] sm:$0xff]
        %v2624 = vld [vmem:[%s2620 + $0x18] sm:$0xff]
        %s2625 = scalar_lea.vmem %s7, 3
        %v2626 = vld [vmem:[%s2625] sm:$0x1]
        %v2628 = vperm.slane %v2626, 0
        %2630 = vmatpush.msra.mxu0 0.0
        %2631 = vmatpush.msra.mxu0 0.0
        %2632 = vmatpush.msra.mxu0 0.0
        %2633 = vmatpush.msra.mxu0 0.0
        %2634 = vmatpush.msra.mxu0 0.0
        %2635 = vmatpush.msra.mxu0 0.0
        %2636 = vmatpush.msra.mxu0 0.0
        %2637 = vmatpush.msra.mxu0 0.0
        %2638 = vmatpush.msra.mxu0 0.0
        %2639 = vmatpush.msra.mxu0 0.0
        %2640 = vmatpush.msra.mxu0 0.0
        %2641 = vmatpush.msra.mxu0 0.0
        %2642 = vmatpush.msra.mxu0 %v2624
        %2643 = vmatpush.msra.mxu0 %v2623
        %2644 = vmatpush.msra.mxu0 %v2622
        %2645 = vmatpush.msra.mxu0 %v2621
        %2646 = vmatmul.f32.gmra.mxu0 %v2404
        %v2647 = vpop.f32.mrf.mxu0
        %v2648 = vadd.f32 %v2628, %v2647
        %2649 = vdwg.mxu0
        %s2650 = scalar_lea.vmem %s5, 96
        %v2651 = vld [vmem:[%s2650] sm:$0xff]
        %v2652 = vld [vmem:[%s2650 + $0x8] sm:$0xff]
        %v2653 = vld [vmem:[%s2650 + $0x10] sm:$0xff]
        %v2654 = vld [vmem:[%s2650 + $0x18] sm:$0xff]
        %s2655 = scalar_lea.vmem %s8, 3
        %v2656 = vld [vmem:[%s2655] sm:$0x1]
        %v2658 = vperm.slane %v2656, 0
        %2660 = vmatpush.msra.mxu0 0.0
        %2661 = vmatpush.msra.mxu0 0.0
        %2662 = vmatpush.msra.mxu0 0.0
        %2663 = vmatpush.msra.mxu0 0.0
        %2664 = vmatpush.msra.mxu0 0.0
        %2665 = vmatpush.msra.mxu0 0.0
        %2666 = vmatpush.msra.mxu0 0.0
        %2667 = vmatpush.msra.mxu0 0.0
        %2668 = vmatpush.msra.mxu0 0.0
        %2669 = vmatpush.msra.mxu0 0.0
        %2670 = vmatpush.msra.mxu0 0.0
        %2671 = vmatpush.msra.mxu0 0.0
        %2672 = vmatpush.msra.mxu0 %v2654
        %2673 = vmatpush.msra.mxu0 %v2653
        %2674 = vmatpush.msra.mxu0 %v2652
        %2675 = vmatpush.msra.mxu0 %v2651
        %2676 = vmatmul.f32.gmra.mxu0 %v2404
        %v2677 = vpop.f32.mrf.mxu0
        %v2678 = vadd.f32 %v2658, %v2677
        %2679 = vdwg.mxu0
        %v2681 = vsel %vm940, %v2618, 0
        %v2684 = vsel %vm940, %v2648, 0
        %2686 = vmatpush.xpose.msra.mxu0 0.0
        %2687 = vmatpush.xpose.msra.mxu0 0.0
        %2688 = vmatpush.xpose.msra.mxu0 0.0
        %2689 = vmatpush.xpose.msra.mxu0 0.0
        %2690 = vmatpush.xpose.msra.mxu0 0.0
        %2691 = vmatpush.xpose.msra.mxu0 0.0
        %2692 = vmatpush.xpose.msra.mxu0 0.0
        %2693 = vmatpush.xpose.msra.mxu0 0.0
        %2694 = vmatpush.xpose.msra.mxu0 0.0
        %2695 = vmatpush.xpose.msra.mxu0 0.0
        %2696 = vmatpush.xpose.msra.mxu0 0.0
        %2697 = vmatpush.xpose.msra.mxu0 0.0
        %2698 = vmatpush.xpose.msra.mxu0 0.0
        %2699 = vmatpush.xpose.msra.mxu0 0.0
        %2700 = vmatpush.xpose.msra.mxu0 0.0
        %2701 = vmatpush.xpose.msra.mxu0 %v2684
        %2702 = vmatmul.f32.gmra.mxu0 %v2681
        %v2703 = vpop.f32.mrf.mxu0
        %v2704 = vadd.f32 0.0, %v2703
        %2705 = vdwg.mxu0
        %v2706 = vmul.f32 %v2704, 0.25
        %v2707 = vsel %vm968, %v2706, -inf
        %2708 = vmax.xlane.f32.xlu0 %v2707
        %v2709 = vpop.xlane.xlu0 %2708
        %v2710 = vsub.f32 %v2706, %v2709
        %v2711 = vmul.f32 %v2710, 1.442695
        %v2712 = vpow.pop %v2711
        %v2713 = vsel %vm968, %v2712, 0.0
        %2714 = vadd.xlane.f32.xlu0 %v2713
        %v2715 = vpop.xlane.xlu0 %2714
        %v2716 = vrcp.pop %v2715
        %v2717 = vmul.f32 %v2715, %v2716
        %v2718 = vsub.f32 1.0, %v2717
        %v2719 = vmul.f32 %v2716, %v2718
        %v2720 = vadd.f32 %v2716, %v2719
        %vm2721 = vweird.f32 %v2715
        %vm2722 = vweird.f32 %v2716
        %vm2723 = vmor %vm2721, %vm2722
        %v2724 = vsel %vm2723, %v2716, %v2720
        %v2725 = vand.u32 2147483647, %v2715
        %vm2726 = vcmp.eq.f32.partialorder %v2725, 8.507059e+37
        %v2727 = vand.u32 %v2715, 2147483648
        %v2728 = vor.u32 1.1754944e-38, %v2727
        %v2729 = vsel %vm2726, %v2728, %v2724
        %v2730 = vmul.f32 %v2712, %v2729
        %v2732 = vsel %vm968, %v2730, 0
        %2734 = vmatpush.msra.mxu0 0.0
        %2735 = vmatpush.msra.mxu0 0.0
        %2736 = vmatpush.msra.mxu0 0.0
        %2737 = vmatpush.msra.mxu0 0.0
        %2738 = vmatpush.msra.mxu0 0.0
        %2739 = vmatpush.msra.mxu0 0.0
        %2740 = vmatpush.msra.mxu0 0.0
        %2741 = vmatpush.msra.mxu0 0.0
        %2742 = vmatpush.msra.mxu0 0.0
        %2743 = vmatpush.msra.mxu0 0.0
        %2744 = vmatpush.msra.mxu0 0.0
        %2745 = vmatpush.msra.mxu0 0.0
        %2746 = vmatpush.msra.mxu0 0.0
        %2747 = vmatpush.msra.mxu0 0.0
        %2748 = vmatpush.msra.mxu0 0.0
        %2749 = vmatpush.msra.mxu0 %v2678
        %2750 = vmatmul.f32.gmra.mxu0 %v2732
        %v2751 = vpop.f32.mrf.mxu0
        %v2752 = vadd.f32 0.0, %v2751
        %2753 = vdwg.mxu0
        %s2754 = scalar_lea.vmem %s9, 48
        %v2755 = vld [vmem:[%s2754] sm:$0xff]
        %v2756 = vld [vmem:[%s2754 + $0x8] sm:$0xff]
        %v2758 = vsel %vm940, %v2752, 0
        %2760 = vmatpush.msra.mxu0 0.0
        %2761 = vmatpush.msra.mxu0 0.0
        %2762 = vmatpush.msra.mxu0 0.0
        %2763 = vmatpush.msra.mxu0 0.0
        %2764 = vmatpush.msra.mxu0 0.0
        %2765 = vmatpush.msra.mxu0 0.0
        %2766 = vmatpush.msra.mxu0 0.0
        %2767 = vmatpush.msra.mxu0 0.0
        %2768 = vmatpush.msra.mxu0 0.0
        %2769 = vmatpush.msra.mxu0 0.0
        %2770 = vmatpush.msra.mxu0 0.0
        %2771 = vmatpush.msra.mxu0 0.0
        %2772 = vmatpush.msra.mxu0 0.0
        %2773 = vmatpush.msra.mxu0 0.0
        %2774 = vmatpush.msra.mxu0 %v2756
        %2775 = vmatpush.msra.mxu0 %v2755
        %2776 = vmatmul.f32.gmra.mxu0 %v2758
        %v2777 = vpop.f32.mrf.mxu0
        %v2778 = vadd.f32 0.0, %v2777
        %2779 = vdwg.mxu0
        %v2780 = vadd.f32 %v2589, %v2778
        %v2781 = vadd.f32 %v2390, %v2780
        %s2782 = scalar_lea.vmem %s13, 1
        %v2783 = vld [vmem:[%s2782] sm:$0x1]
        %s2784 = scalar_lea.vmem %s14, 1
        %v2785 = vld [vmem:[%s2784] sm:$0x1]
        %v2786 = vsel %vm860, %v2781, 0.0
        %2787 = vadd.xlane.f32.xlu0 %v2786
        %v2788 = vpop.xlane.xlu0 %2787
        %v2789 = vmul.f32 %v2788, %v1248
        %v2790 = vsub.f32 %v2781, %v2789
        %v2791 = vmul.f32 %v2790, %v2790
        %v2792 = vsel %vm860, %v2791, 0.0
        %2793 = vadd.xlane.f32.xlu0 %v2792
        %v2794 = vpop.xlane.xlu0 %2793
        %v2795 = vmul.f32 %v2794, %v1248
        %v2796 = vadd.f32 %v2795, 1e-05
        %v2797 = vrsqrt.pop %v2796
        %v2798 = vmul.f32 %v2797, %v2796
        %v2799 = vmul.f32 %v2798, %v2797
        %v2800 = vmul.f32 0.5, %v2799
        %v2801 = vsub.f32 1.5, %v2800
        %v2802 = vmul.f32 %v2797, %v2801
        %vm2803 = vweird.f32 %v2796
        %vm2804 = vweird.f32 %v2797
        %vm2805 = vmor %vm2803, %vm2804
        %v2806 = vsel %vm2805, %v2797, %v2802
        %v2807 = vmul.f32 %v2790, %v2806
        %v2809 = vperm.slane %v2783, 0
        %v2811 = vmul.f32 %v2807, %v2809
        %v2813 = vperm.slane %v2785, 0
        %v2815 = vadd.f32 %v2811, %v2813
        %s2816 = scalar_lea.vmem %s11, 32
        %v2817 = vld [vmem:[%s2816] sm:$0xff]
        %v2818 = vld [vmem:[%s2816 + $0x8] sm:$0xff]
        %v2819 = vld [vmem:[%s2816 + $0x10] sm:$0xff]
        %v2820 = vld [vmem:[%s2816 + $0x18] sm:$0xff]
        %s2821 = scalar_lea.vmem %s12, 1
        %v2822 = vld [vmem:[%s2821] sm:$0x1]
        %v2824 = vperm.slane %v2822, 0
        %2826 = vmatpush.msra.mxu0 0.0
        %2827 = vmatpush.msra.mxu0 0.0
        %2828 = vmatpush.msra.mxu0 0.0
        %2829 = vmatpush.msra.mxu0 0.0
        %2830 = vmatpush.msra.mxu0 0.0
        %2831 = vmatpush.msra.mxu0 0.0
        %2832 = vmatpush.msra.mxu0 0.0
        %2833 = vmatpush.msra.mxu0 0.0
        %2834 = vmatpush.msra.mxu0 0.0
        %2835 = vmatpush.msra.mxu0 0.0
        %2836 = vmatpush.msra.mxu0 0.0
        %2837 = vmatpush.msra.mxu0 0.0
        %2838 = vmatpush.msra.mxu0 %v2820
        %2839 = vmatpush.msra.mxu0 %v2819
        %2840 = vmatpush.msra.mxu0 %v2818
        %2841 = vmatpush.msra.mxu0 %v2817
        %2842 = vmatmul.f32.gmra.mxu0 %v1284
        %v2843 = vpop.f32.mrf.mxu0
        %v2844 = vadd.f32 %v2824, %v2843
        %2845 = vdwg.mxu0
        %v2846 = vadd.f32 %v2815, %v2844
        %s2847 = scalar_lea.vmem %s15, 1
        %v2848 = vld [vmem:[%s2847] sm:$0x1]
        %s2849 = scalar_lea.vmem %s16, 1
        %v2850 = vld [vmem:[%s2849] sm:$0x1]
        %v2851 = vsel %vm860, %v2846, 0.0
        %2852 = vadd.xlane.f32.xlu0 %v2851
        %v2853 = vpop.xlane.xlu0 %2852
        %v2854 = vmul.f32 %v2853, %v1248
        %v2855 = vsub.f32 %v2846, %v2854
        %v2856 = vmul.f32 %v2855, %v2855
        %v2857 = vsel %vm860, %v2856, 0.0
        %2858 = vadd.xlane.f32.xlu0 %v2857
        %v2859 = vpop.xlane.xlu0 %2858
        %v2860 = vmul.f32 %v2859, %v1248
        %v2861 = vadd.f32 %v2860, 1e-05
        %v2862 = vrsqrt.pop %v2861
        %v2863 = vmul.f32 %v2862, %v2861
        %v2864 = vmul.f32 %v2863, %v2862
        %v2865 = vmul.f32 0.5, %v2864
        %v2866 = vsub.f32 1.5, %v2865
        %v2867 = vmul.f32 %v2862, %v2866
        %vm2868 = vweird.f32 %v2861
        %vm2869 = vweird.f32 %v2862
        %vm2870 = vmor %vm2868, %vm2869
        %v2871 = vsel %vm2870, %v2862, %v2867
        %v2872 = vmul.f32 %v2855, %v2871
        %v2874 = vperm.slane %v2848, 0
        %v2876 = vmul.f32 %v2872, %v2874
        %v2878 = vperm.slane %v2850, 0
        %v2880 = vadd.f32 %v2876, %v2878
        %s2881 = scalar_lea.vmem %s19, 512
        %v2882 = vld [vmem:[%s2881] sm:$0xff]
        %v2883 = vld [vmem:[%s2881 + $0x8] sm:$0xff]
        %v2884 = vld [vmem:[%s2881 + $0x10] sm:$0xff]
        %v2885 = vld [vmem:[%s2881 + $0x18] sm:$0xff]
        %v2886 = vld [vmem:[%s2881 + $0x20] sm:$0xff]
        %v2887 = vld [vmem:[%s2881 + $0x28] sm:$0xff]
        %v2888 = vld [vmem:[%s2881 + $0x30] sm:$0xff]
        %v2889 = vld [vmem:[%s2881 + $0x38] sm:$0xff]
        %v2890 = vld [vmem:[%s2881 + $0x40] sm:$0xff]
        %v2891 = vld [vmem:[%s2881 + $0x48] sm:$0xff]
        %v2892 = vld [vmem:[%s2881 + $0x50] sm:$0xff]
        %v2893 = vld [vmem:[%s2881 + $0x58] sm:$0xff]
        %v2894 = vld [vmem:[%s2881 + $0x60] sm:$0xff]
        %v2895 = vld [vmem:[%s2881 + $0x68] sm:$0xff]
        %v2896 = vld [vmem:[%s2881 + $0x70] sm:$0xff]
        %v2897 = vld [vmem:[%s2881 + $0x78] sm:$0xff]
        %v2898 = vld [vmem:[%s2881 + $0x80] sm:$0xff]
        %v2899 = vld [vmem:[%s2881 + $0x88] sm:$0xff]
        %v2900 = vld [vmem:[%s2881 + $0x90] sm:$0xff]
        %v2901 = vld [vmem:[%s2881 + $0x98] sm:$0xff]
        %v2902 = vld [vmem:[%s2881 + $0xa0] sm:$0xff]
        %v2903 = vld [vmem:[%s2881 + $0xa8] sm:$0xff]
        %v2904 = vld [vmem:[%s2881 + $0xb0] sm:$0xff]
        %v2905 = vld [vmem:[%s2881 + $0xb8] sm:$0xff]
        %v2906 = vld [vmem:[%s2881 + $0xc0] sm:$0xff]
        %v2907 = vld [vmem:[%s2881 + $0xc8] sm:$0xff]
        %v2908 = vld [vmem:[%s2881 + $0xd0] sm:$0xff]
        %v2909 = vld [vmem:[%s2881 + $0xd8] sm:$0xff]
        %v2910 = vld [vmem:[%s2881 + $0xe0] sm:$0xff]
        %v2911 = vld [vmem:[%s2881 + $0xe8] sm:$0xff]
        %v2912 = vld [vmem:[%s2881 + $0xf0] sm:$0xff]
        %v2913 = vld [vmem:[%s2881 + $0xf8] sm:$0xff]
        %v2914 = vld [vmem:[%s2881 + $0x100] sm:$0xff]
        %v2915 = vld [vmem:[%s2881 + $0x108] sm:$0xff]
        %v2916 = vld [vmem:[%s2881 + $0x110] sm:$0xff]
        %v2917 = vld [vmem:[%s2881 + $0x118] sm:$0xff]
        %v2918 = vld [vmem:[%s2881 + $0x120] sm:$0xff]
        %v2919 = vld [vmem:[%s2881 + $0x128] sm:$0xff]
        %v2920 = vld [vmem:[%s2881 + $0x130] sm:$0xff]
        %v2921 = vld [vmem:[%s2881 + $0x138] sm:$0xff]
        %v2922 = vld [vmem:[%s2881 + $0x140] sm:$0xff]
        %v2923 = vld [vmem:[%s2881 + $0x148] sm:$0xff]
        %v2924 = vld [vmem:[%s2881 + $0x150] sm:$0xff]
        %v2925 = vld [vmem:[%s2881 + $0x158] sm:$0xff]
        %v2926 = vld [vmem:[%s2881 + $0x160] sm:$0xff]
        %v2927 = vld [vmem:[%s2881 + $0x168] sm:$0xff]
        %v2928 = vld [vmem:[%s2881 + $0x170] sm:$0xff]
        %v2929 = vld [vmem:[%s2881 + $0x178] sm:$0xff]
        %v2930 = vld [vmem:[%s2881 + $0x180] sm:$0xff]
        %v2931 = vld [vmem:[%s2881 + $0x188] sm:$0xff]
        %v2932 = vld [vmem:[%s2881 + $0x190] sm:$0xff]
        %v2933 = vld [vmem:[%s2881 + $0x198] sm:$0xff]
        %v2934 = vld [vmem:[%s2881 + $0x1a0] sm:$0xff]
        %v2935 = vld [vmem:[%s2881 + $0x1a8] sm:$0xff]
        %v2936 = vld [vmem:[%s2881 + $0x1b0] sm:$0xff]
        %v2937 = vld [vmem:[%s2881 + $0x1b8] sm:$0xff]
        %v2938 = vld [vmem:[%s2881 + $0x1c0] sm:$0xff]
        %v2939 = vld [vmem:[%s2881 + $0x1c8] sm:$0xff]
        %v2940 = vld [vmem:[%s2881 + $0x1d0] sm:$0xff]
        %v2941 = vld [vmem:[%s2881 + $0x1d8] sm:$0xff]
        %v2942 = vld [vmem:[%s2881 + $0x1e0] sm:$0xff]
        %v2943 = vld [vmem:[%s2881 + $0x1e8] sm:$0xff]
        %v2944 = vld [vmem:[%s2881 + $0x1f0] sm:$0xff]
        %v2945 = vld [vmem:[%s2881 + $0x1f8] sm:$0xff]
        %s2946 = scalar_lea.vmem %s20, 16
        %v2947 = vld [vmem:[%s2946] sm:$0xff]
        %v2948 = vld [vmem:[%s2946 + $0x8] sm:$0xff]
        %v2951 = vperm.slane %v2947, 0
        %v2952 = vperm.slane %v2947, 1
        %v2953 = vperm.slane %v2947, 2
        %v2954 = vperm.slane %v2947, 3
        %v2955 = vperm.slane %v2947, 4
        %v2956 = vperm.slane %v2947, 5
        %v2957 = vperm.slane %v2947, 6
        %v2958 = vperm.slane %v2947, 7
        %v2959 = vperm.slane %v2948, 0
        %v2960 = vperm.slane %v2948, 1
        %v2961 = vperm.slane %v2948, 2
        %v2962 = vperm.slane %v2948, 3
        %v2963 = vperm.slane %v2948, 4
        %v2964 = vperm.slane %v2948, 5
        %v2965 = vperm.slane %v2948, 6
        %v2966 = vperm.slane %v2948, 7
        %v2984 = vsel %vm860, %v2880, 0
        %2986 = vmatpush.msra.mxu0 0.0
        %2987 = vmatpush.msra.mxu0 0.0
        %2988 = vmatpush.msra.mxu0 0.0
        %2989 = vmatpush.msra.mxu0 0.0
        %2990 = vmatpush.msra.mxu0 0.0
        %2991 = vmatpush.msra.mxu0 0.0
        %2992 = vmatpush.msra.mxu0 0.0
        %2993 = vmatpush.msra.mxu0 0.0
        %2994 = vmatpush.msra.mxu0 0.0
        %2995 = vmatpush.msra.mxu0 0.0
        %2996 = vmatpush.msra.mxu0 0.0
        %2997 = vmatpush.msra.mxu0 0.0
        %2998 = vmatpush.msra.mxu0 %v2930
        %2999 = vmatpush.msra.mxu0 %v2914
        %3000 = vmatpush.msra.mxu0 %v2898
        %3001 = vmatpush.msra.mxu0 %v2882
        %3002 = vmatmul.f32.gmra.mxu0 %v2984
        %v3003 = vpop.f32.mrf.mxu0
        %v3004 = vadd.f32 %v2951, %v3003
        %3005 = vdwg.mxu0
        %3006 = vmatpush.msra.mxu0 0.0
        %3007 = vmatpush.msra.mxu0 0.0
        %3008 = vmatpush.msra.mxu0 0.0
        %3009 = vmatpush.msra.mxu0 0.0
        %3010 = vmatpush.msra.mxu0 0.0
        %3011 = vmatpush.msra.mxu0 0.0
        %3012 = vmatpush.msra.mxu0 0.0
        %3013 = vmatpush.msra.mxu0 0.0
        %3014 = vmatpush.msra.mxu0 0.0
        %3015 = vmatpush.msra.mxu0 0.0
        %3016 = vmatpush.msra.mxu0 0.0
        %3017 = vmatpush.msra.mxu0 0.0
        %3018 = vmatpush.msra.mxu0 %v2931
        %3019 = vmatpush.msra.mxu0 %v2915
        %3020 = vmatpush.msra.mxu0 %v2899
        %3021 = vmatpush.msra.mxu0 %v2883
        %3022 = vmatmul.f32.gmra.mxu0 %v2984
        %v3023 = vpop.f32.mrf.mxu0
        %v3024 = vadd.f32 %v2952, %v3023
        %3025 = vdwg.mxu0
        %3026 = vmatpush.msra.mxu0 0.0
        %3027 = vmatpush.msra.mxu0 0.0
        %3028 = vmatpush.msra.mxu0 0.0
        %3029 = vmatpush.msra.mxu0 0.0
        %3030 = vmatpush.msra.mxu0 0.0
        %3031 = vmatpush.msra.mxu0 0.0
        %3032 = vmatpush.msra.mxu0 0.0
        %3033 = vmatpush.msra.mxu0 0.0
        %3034 = vmatpush.msra.mxu0 0.0
        %3035 = vmatpush.msra.mxu0 0.0
        %3036 = vmatpush.msra.mxu0 0.0
        %3037 = vmatpush.msra.mxu0 0.0
        %3038 = vmatpush.msra.mxu0 %v2932
        %3039 = vmatpush.msra.mxu0 %v2916
        %3040 = vmatpush.msra.mxu0 %v2900
        %3041 = vmatpush.msra.mxu0 %v2884
        %3042 = vmatmul.f32.gmra.mxu0 %v2984
        %v3043 = vpop.f32.mrf.mxu0
        %v3044 = vadd.f32 %v2953, %v3043
        %3045 = vdwg.mxu0
        %3046 = vmatpush.msra.mxu0 0.0
        %3047 = vmatpush.msra.mxu0 0.0
        %3048 = vmatpush.msra.mxu0 0.0
        %3049 = vmatpush.msra.mxu0 0.0
        %3050 = vmatpush.msra.mxu0 0.0
        %3051 = vmatpush.msra.mxu0 0.0
        %3052 = vmatpush.msra.mxu0 0.0
        %3053 = vmatpush.msra.mxu0 0.0
        %3054 = vmatpush.msra.mxu0 0.0
        %3055 = vmatpush.msra.mxu0 0.0
        %3056 = vmatpush.msra.mxu0 0.0
        %3057 = vmatpush.msra.mxu0 0.0
        %3058 = vmatpush.msra.mxu0 %v2933
        %3059 = vmatpush.msra.mxu0 %v2917
        %3060 = vmatpush.msra.mxu0 %v2901
        %3061 = vmatpush.msra.mxu0 %v2885
        %3062 = vmatmul.f32.gmra.mxu0 %v2984
        %v3063 = vpop.f32.mrf.mxu0
        %v3064 = vadd.f32 %v2954, %v3063
        %3065 = vdwg.mxu0
        %3066 = vmatpush.msra.mxu0 0.0
        %3067 = vmatpush.msra.mxu0 0.0
        %3068 = vmatpush.msra.mxu0 0.0
        %3069 = vmatpush.msra.mxu0 0.0
        %3070 = vmatpush.msra.mxu0 0.0
        %3071 = vmatpush.msra.mxu0 0.0
        %3072 = vmatpush.msra.mxu0 0.0
        %3073 = vmatpush.msra.mxu0 0.0
        %3074 = vmatpush.msra.mxu0 0.0
        %3075 = vmatpush.msra.mxu0 0.0
        %3076 = vmatpush.msra.mxu0 0.0
        %3077 = vmatpush.msra.mxu0 0.0
        %3078 = vmatpush.msra.mxu0 %v2934
        %3079 = vmatpush.msra.mxu0 %v2918
        %3080 = vmatpush.msra.mxu0 %v2902
        %3081 = vmatpush.msra.mxu0 %v2886
        %3082 = vmatmul.f32.gmra.mxu0 %v2984
        %v3083 = vpop.f32.mrf.mxu0
        %v3084 = vadd.f32 %v2955, %v3083
        %3085 = vdwg.mxu0
        %3086 = vmatpush.msra.mxu0 0.0
        %3087 = vmatpush.msra.mxu0 0.0
        %3088 = vmatpush.msra.mxu0 0.0
        %3089 = vmatpush.msra.mxu0 0.0
        %3090 = vmatpush.msra.mxu0 0.0
        %3091 = vmatpush.msra.mxu0 0.0
        %3092 = vmatpush.msra.mxu0 0.0
        %3093 = vmatpush.msra.mxu0 0.0
        %3094 = vmatpush.msra.mxu0 0.0
        %3095 = vmatpush.msra.mxu0 0.0
        %3096 = vmatpush.msra.mxu0 0.0
        %3097 = vmatpush.msra.mxu0 0.0
        %3098 = vmatpush.msra.mxu0 %v2935
        %3099 = vmatpush.msra.mxu0 %v2919
        %3100 = vmatpush.msra.mxu0 %v2903
        %3101 = vmatpush.msra.mxu0 %v2887
        %3102 = vmatmul.f32.gmra.mxu0 %v2984
        %v3103 = vpop.f32.mrf.mxu0
        %v3104 = vadd.f32 %v2956, %v3103
        %3105 = vdwg.mxu0
        %3106 = vmatpush.msra.mxu0 0.0
        %3107 = vmatpush.msra.mxu0 0.0
        %3108 = vmatpush.msra.mxu0 0.0
        %3109 = vmatpush.msra.mxu0 0.0
        %3110 = vmatpush.msra.mxu0 0.0
        %3111 = vmatpush.msra.mxu0 0.0
        %3112 = vmatpush.msra.mxu0 0.0
        %3113 = vmatpush.msra.mxu0 0.0
        %3114 = vmatpush.msra.mxu0 0.0
        %3115 = vmatpush.msra.mxu0 0.0
        %3116 = vmatpush.msra.mxu0 0.0
        %3117 = vmatpush.msra.mxu0 0.0
        %3118 = vmatpush.msra.mxu0 %v2936
        %3119 = vmatpush.msra.mxu0 %v2920
        %3120 = vmatpush.msra.mxu0 %v2904
        %3121 = vmatpush.msra.mxu0 %v2888
        %3122 = vmatmul.f32.gmra.mxu0 %v2984
        %v3123 = vpop.f32.mrf.mxu0
        %v3124 = vadd.f32 %v2957, %v3123
        %3125 = vdwg.mxu0
        %3126 = vmatpush.msra.mxu0 0.0
        %3127 = vmatpush.msra.mxu0 0.0
        %3128 = vmatpush.msra.mxu0 0.0
        %3129 = vmatpush.msra.mxu0 0.0
        %3130 = vmatpush.msra.mxu0 0.0
        %3131 = vmatpush.msra.mxu0 0.0
        %3132 = vmatpush.msra.mxu0 0.0
        %3133 = vmatpush.msra.mxu0 0.0
        %3134 = vmatpush.msra.mxu0 0.0
        %3135 = vmatpush.msra.mxu0 0.0
        %3136 = vmatpush.msra.mxu0 0.0
        %3137 = vmatpush.msra.mxu0 0.0
        %3138 = vmatpush.msra.mxu0 %v2937
        %3139 = vmatpush.msra.mxu0 %v2921
        %3140 = vmatpush.msra.mxu0 %v2905
        %3141 = vmatpush.msra.mxu0 %v2889
        %3142 = vmatmul.f32.gmra.mxu0 %v2984
        %v3143 = vpop.f32.mrf.mxu0
        %v3144 = vadd.f32 %v2958, %v3143
        %3145 = vdwg.mxu0
        %3146 = vmatpush.msra.mxu0 0.0
        %3147 = vmatpush.msra.mxu0 0.0
        %3148 = vmatpush.msra.mxu0 0.0
        %3149 = vmatpush.msra.mxu0 0.0
        %3150 = vmatpush.msra.mxu0 0.0
        %3151 = vmatpush.msra.mxu0 0.0
        %3152 = vmatpush.msra.mxu0 0.0
        %3153 = vmatpush.msra.mxu0 0.0
        %3154 = vmatpush.msra.mxu0 0.0
        %3155 = vmatpush.msra.mxu0 0.0
        %3156 = vmatpush.msra.mxu0 0.0
        %3157 = vmatpush.msra.mxu0 0.0
        %3158 = vmatpush.msra.mxu0 %v2938
        %3159 = vmatpush.msra.mxu0 %v2922
        %3160 = vmatpush.msra.mxu0 %v2906
        %3161 = vmatpush.msra.mxu0 %v2890
        %3162 = vmatmul.f32.gmra.mxu0 %v2984
        %v3163 = vpop.f32.mrf.mxu0
        %v3164 = vadd.f32 %v2959, %v3163
        %3165 = vdwg.mxu0
        %3166 = vmatpush.msra.mxu0 0.0
        %3167 = vmatpush.msra.mxu0 0.0
        %3168 = vmatpush.msra.mxu0 0.0
        %3169 = vmatpush.msra.mxu0 0.0
        %3170 = vmatpush.msra.mxu0 0.0
        %3171 = vmatpush.msra.mxu0 0.0
        %3172 = vmatpush.msra.mxu0 0.0
        %3173 = vmatpush.msra.mxu0 0.0
        %3174 = vmatpush.msra.mxu0 0.0
        %3175 = vmatpush.msra.mxu0 0.0
        %3176 = vmatpush.msra.mxu0 0.0
        %3177 = vmatpush.msra.mxu0 0.0
        %3178 = vmatpush.msra.mxu0 %v2939
        %3179 = vmatpush.msra.mxu0 %v2923
        %3180 = vmatpush.msra.mxu0 %v2907
        %3181 = vmatpush.msra.mxu0 %v2891
        %3182 = vmatmul.f32.gmra.mxu0 %v2984
        %v3183 = vpop.f32.mrf.mxu0
        %v3184 = vadd.f32 %v2960, %v3183
        %3185 = vdwg.mxu0
        %3186 = vmatpush.msra.mxu0 0.0
        %3187 = vmatpush.msra.mxu0 0.0
        %3188 = vmatpush.msra.mxu0 0.0
        %3189 = vmatpush.msra.mxu0 0.0
        %3190 = vmatpush.msra.mxu0 0.0
        %3191 = vmatpush.msra.mxu0 0.0
        %3192 = vmatpush.msra.mxu0 0.0
        %3193 = vmatpush.msra.mxu0 0.0
        %3194 = vmatpush.msra.mxu0 0.0
        %3195 = vmatpush.msra.mxu0 0.0
        %3196 = vmatpush.msra.mxu0 0.0
        %3197 = vmatpush.msra.mxu0 0.0
        %3198 = vmatpush.msra.mxu0 %v2940
        %3199 = vmatpush.msra.mxu0 %v2924
        %3200 = vmatpush.msra.mxu0 %v2908
        %3201 = vmatpush.msra.mxu0 %v2892
        %3202 = vmatmul.f32.gmra.mxu0 %v2984
        %v3203 = vpop.f32.mrf.mxu0
        %v3204 = vadd.f32 %v2961, %v3203
        %3205 = vdwg.mxu0
        %3206 = vmatpush.msra.mxu0 0.0
        %3207 = vmatpush.msra.mxu0 0.0
        %3208 = vmatpush.msra.mxu0 0.0
        %3209 = vmatpush.msra.mxu0 0.0
        %3210 = vmatpush.msra.mxu0 0.0
        %3211 = vmatpush.msra.mxu0 0.0
        %3212 = vmatpush.msra.mxu0 0.0
        %3213 = vmatpush.msra.mxu0 0.0
        %3214 = vmatpush.msra.mxu0 0.0
        %3215 = vmatpush.msra.mxu0 0.0
        %3216 = vmatpush.msra.mxu0 0.0
        %3217 = vmatpush.msra.mxu0 0.0
        %3218 = vmatpush.msra.mxu0 %v2941
        %3219 = vmatpush.msra.mxu0 %v2925
        %3220 = vmatpush.msra.mxu0 %v2909
        %3221 = vmatpush.msra.mxu0 %v2893
        %3222 = vmatmul.f32.gmra.mxu0 %v2984
        %v3223 = vpop.f32.mrf.mxu0
        %v3224 = vadd.f32 %v2962, %v3223
        %3225 = vdwg.mxu0
        %3226 = vmatpush.msra.mxu0 0.0
        %3227 = vmatpush.msra.mxu0 0.0
        %3228 = vmatpush.msra.mxu0 0.0
        %3229 = vmatpush.msra.mxu0 0.0
        %3230 = vmatpush.msra.mxu0 0.0
        %3231 = vmatpush.msra.mxu0 0.0
        %3232 = vmatpush.msra.mxu0 0.0
        %3233 = vmatpush.msra.mxu0 0.0
        %3234 = vmatpush.msra.mxu0 0.0
        %3235 = vmatpush.msra.mxu0 0.0
        %3236 = vmatpush.msra.mxu0 0.0
        %3237 = vmatpush.msra.mxu0 0.0
        %3238 = vmatpush.msra.mxu0 %v2942
        %3239 = vmatpush.msra.mxu0 %v2926
        %3240 = vmatpush.msra.mxu0 %v2910
        %3241 = vmatpush.msra.mxu0 %v2894
        %3242 = vmatmul.f32.gmra.mxu0 %v2984
        %v3243 = vpop.f32.mrf.mxu0
        %v3244 = vadd.f32 %v2963, %v3243
        %3245 = vdwg.mxu0
        %3246 = vmatpush.msra.mxu0 0.0
        %3247 = vmatpush.msra.mxu0 0.0
        %3248 = vmatpush.msra.mxu0 0.0
        %3249 = vmatpush.msra.mxu0 0.0
        %3250 = vmatpush.msra.mxu0 0.0
        %3251 = vmatpush.msra.mxu0 0.0
        %3252 = vmatpush.msra.mxu0 0.0
        %3253 = vmatpush.msra.mxu0 0.0
        %3254 = vmatpush.msra.mxu0 0.0
        %3255 = vmatpush.msra.mxu0 0.0
        %3256 = vmatpush.msra.mxu0 0.0
        %3257 = vmatpush.msra.mxu0 0.0
        %3258 = vmatpush.msra.mxu0 %v2943
        %3259 = vmatpush.msra.mxu0 %v2927
        %3260 = vmatpush.msra.mxu0 %v2911
        %3261 = vmatpush.msra.mxu0 %v2895
        %3262 = vmatmul.f32.gmra.mxu0 %v2984
        %v3263 = vpop.f32.mrf.mxu0
        %v3264 = vadd.f32 %v2964, %v3263
        %3265 = vdwg.mxu0
        %3266 = vmatpush.msra.mxu0 0.0
        %3267 = vmatpush.msra.mxu0 0.0
        %3268 = vmatpush.msra.mxu0 0.0
        %3269 = vmatpush.msra.mxu0 0.0
        %3270 = vmatpush.msra.mxu0 0.0
        %3271 = vmatpush.msra.mxu0 0.0
        %3272 = vmatpush.msra.mxu0 0.0
        %3273 = vmatpush.msra.mxu0 0.0
        %3274 = vmatpush.msra.mxu0 0.0
        %3275 = vmatpush.msra.mxu0 0.0
        %3276 = vmatpush.msra.mxu0 0.0
        %3277 = vmatpush.msra.mxu0 0.0
        %3278 = vmatpush.msra.mxu0 %v2944
        %3279 = vmatpush.msra.mxu0 %v2928
        %3280 = vmatpush.msra.mxu0 %v2912
        %3281 = vmatpush.msra.mxu0 %v2896
        %3282 = vmatmul.f32.gmra.mxu0 %v2984
        %v3283 = vpop.f32.mrf.mxu0
        %v3284 = vadd.f32 %v2965, %v3283
        %3285 = vdwg.mxu0
        %3286 = vmatpush.msra.mxu0 0.0
        %3287 = vmatpush.msra.mxu0 0.0
        %3288 = vmatpush.msra.mxu0 0.0
        %3289 = vmatpush.msra.mxu0 0.0
        %3290 = vmatpush.msra.mxu0 0.0
        %3291 = vmatpush.msra.mxu0 0.0
        %3292 = vmatpush.msra.mxu0 0.0
        %3293 = vmatpush.msra.mxu0 0.0
        %3294 = vmatpush.msra.mxu0 0.0
        %3295 = vmatpush.msra.mxu0 0.0
        %3296 = vmatpush.msra.mxu0 0.0
        %3297 = vmatpush.msra.mxu0 0.0
        %3298 = vmatpush.msra.mxu0 %v2945
        %3299 = vmatpush.msra.mxu0 %v2929
        %3300 = vmatpush.msra.mxu0 %v2913
        %3301 = vmatpush.msra.mxu0 %v2897
        %3302 = vmatmul.f32.gmra.mxu0 %v2984
        %v3303 = vpop.f32.mrf.mxu0
        %v3304 = vadd.f32 %v2966, %v3303
        %3305 = vdwg.mxu0
        %v3306 = vmax.f32 %v3004, 0.0
        %v3307 = vmax.f32 %v3024, 0.0
        %v3308 = vmax.f32 %v3044, 0.0
        %v3309 = vmax.f32 %v3064, 0.0
        %v3310 = vmax.f32 %v3084, 0.0
        %v3311 = vmax.f32 %v3104, 0.0
        %v3312 = vmax.f32 %v3124, 0.0
        %v3313 = vmax.f32 %v3144, 0.0
        %v3314 = vmax.f32 %v3164, 0.0
        %v3315 = vmax.f32 %v3184, 0.0
        %v3316 = vmax.f32 %v3204, 0.0
        %v3317 = vmax.f32 %v3224, 0.0
        %v3318 = vmax.f32 %v3244, 0.0
        %v3319 = vmax.f32 %v3264, 0.0
        %v3320 = vmax.f32 %v3284, 0.0
        %v3321 = vmax.f32 %v3304, 0.0
        %s3322 = scalar_lea.vmem %s21, 2048
        %v3323 = vld [vmem:[%s3322] sm:$0xff]
        %v3324 = vld [vmem:[%s3322 + $0x8] sm:$0xff]
        %v3325 = vld [vmem:[%s3322 + $0x10] sm:$0xff]
        %v3326 = vld [vmem:[%s3322 + $0x18] sm:$0xff]
        %v3327 = vld [vmem:[%s3322 + $0x20] sm:$0xff]
        %v3328 = vld [vmem:[%s3322 + $0x28] sm:$0xff]
        %v3329 = vld [vmem:[%s3322 + $0x30] sm:$0xff]
        %v3330 = vld [vmem:[%s3322 + $0x38] sm:$0xff]
        %v3331 = vld [vmem:[%s3322 + $0x40] sm:$0xff]
        %v3332 = vld [vmem:[%s3322 + $0x48] sm:$0xff]
        %v3333 = vld [vmem:[%s3322 + $0x50] sm:$0xff]
        %v3334 = vld [vmem:[%s3322 + $0x58] sm:$0xff]
        %v3335 = vld [vmem:[%s3322 + $0x60] sm:$0xff]
        %v3336 = vld [vmem:[%s3322 + $0x68] sm:$0xff]
        %v3337 = vld [vmem:[%s3322 + $0x70] sm:$0xff]
        %v3338 = vld [vmem:[%s3322 + $0x78] sm:$0xff]
        %v3339 = vld [vmem:[%s3322 + $0x80] sm:$0xff]
        %v3340 = vld [vmem:[%s3322 + $0x88] sm:$0xff]
        %v3341 = vld [vmem:[%s3322 + $0x90] sm:$0xff]
        %v3342 = vld [vmem:[%s3322 + $0x98] sm:$0xff]
        %v3343 = vld [vmem:[%s3322 + $0xa0] sm:$0xff]
        %v3344 = vld [vmem:[%s3322 + $0xa8] sm:$0xff]
        %v3345 = vld [vmem:[%s3322 + $0xb0] sm:$0xff]
        %v3346 = vld [vmem:[%s3322 + $0xb8] sm:$0xff]
        %v3347 = vld [vmem:[%s3322 + $0xc0] sm:$0xff]
        %v3348 = vld [vmem:[%s3322 + $0xc8] sm:$0xff]
        %v3349 = vld [vmem:[%s3322 + $0xd0] sm:$0xff]
        %v3350 = vld [vmem:[%s3322 + $0xd8] sm:$0xff]
        %v3351 = vld [vmem:[%s3322 + $0xe0] sm:$0xff]
        %v3352 = vld [vmem:[%s3322 + $0xe8] sm:$0xff]
        %v3353 = vld [vmem:[%s3322 + $0xf0] sm:$0xff]
        %v3354 = vld [vmem:[%s3322 + $0xf8] sm:$0xff]
        %v3355 = vld [vmem:[%s3322 + $0x100] sm:$0xff]
        %v3356 = vld [vmem:[%s3322 + $0x108] sm:$0xff]
        %v3357 = vld [vmem:[%s3322 + $0x110] sm:$0xff]
        %v3358 = vld [vmem:[%s3322 + $0x118] sm:$0xff]
        %v3359 = vld [vmem:[%s3322 + $0x120] sm:$0xff]
        %v3360 = vld [vmem:[%s3322 + $0x128] sm:$0xff]
        %v3361 = vld [vmem:[%s3322 + $0x130] sm:$0xff]
        %v3362 = vld [vmem:[%s3322 + $0x138] sm:$0xff]
        %v3363 = vld [vmem:[%s3322 + $0x140] sm:$0xff]
        %v3364 = vld [vmem:[%s3322 + $0x148] sm:$0xff]
        %v3365 = vld [vmem:[%s3322 + $0x150] sm:$0xff]
        %v3366 = vld [vmem:[%s3322 + $0x158] sm:$0xff]
        %v3367 = vld [vmem:[%s3322 + $0x160] sm:$0xff]
        %v3368 = vld [vmem:[%s3322 + $0x168] sm:$0xff]
        %v3369 = vld [vmem:[%s3322 + $0x170] sm:$0xff]
        %v3370 = vld [vmem:[%s3322 + $0x178] sm:$0xff]
        %v3371 = vld [vmem:[%s3322 + $0x180] sm:$0xff]
        %v3372 = vld [vmem:[%s3322 + $0x188] sm:$0xff]
        %v3373 = vld [vmem:[%s3322 + $0x190] sm:$0xff]
        %v3374 = vld [vmem:[%s3322 + $0x198] sm:$0xff]
        %v3375 = vld [vmem:[%s3322 + $0x1a0] sm:$0xff]
        %v3376 = vld [vmem:[%s3322 + $0x1a8] sm:$0xff]
        %v3377 = vld [vmem:[%s3322 + $0x1b0] sm:$0xff]
        %v3378 = vld [vmem:[%s3322 + $0x1b8] sm:$0xff]
        %v3379 = vld [vmem:[%s3322 + $0x1c0] sm:$0xff]
        %v3380 = vld [vmem:[%s3322 + $0x1c8] sm:$0xff]
        %v3381 = vld [vmem:[%s3322 + $0x1d0] sm:$0xff]
        %v3382 = vld [vmem:[%s3322 + $0x1d8] sm:$0xff]
        %v3383 = vld [vmem:[%s3322 + $0x1e0] sm:$0xff]
        %v3384 = vld [vmem:[%s3322 + $0x1e8] sm:$0xff]
        %v3385 = vld [vmem:[%s3322 + $0x1f0] sm:$0xff]
        %v3386 = vld [vmem:[%s3322 + $0x1f8] sm:$0xff]
        %v3387 = vld [vmem:[%s3322 + $0x200] sm:$0xff]
        %v3388 = vld [vmem:[%s3322 + $0x208] sm:$0xff]
        %v3389 = vld [vmem:[%s3322 + $0x210] sm:$0xff]
        %v3390 = vld [vmem:[%s3322 + $0x218] sm:$0xff]
        %v3391 = vld [vmem:[%s3322 + $0x220] sm:$0xff]
        %v3392 = vld [vmem:[%s3322 + $0x228] sm:$0xff]
        %v3393 = vld [vmem:[%s3322 + $0x230] sm:$0xff]
        %v3394 = vld [vmem:[%s3322 + $0x238] sm:$0xff]
        %v3395 = vld [vmem:[%s3322 + $0x240] sm:$0xff]
        %v3396 = vld [vmem:[%s3322 + $0x248] sm:$0xff]
        %v3397 = vld [vmem:[%s3322 + $0x250] sm:$0xff]
        %v3398 = vld [vmem:[%s3322 + $0x258] sm:$0xff]
        %v3399 = vld [vmem:[%s3322 + $0x260] sm:$0xff]
        %v3400 = vld [vmem:[%s3322 + $0x268] sm:$0xff]
        %v3401 = vld [vmem:[%s3322 + $0x270] sm:$0xff]
        %v3402 = vld [vmem:[%s3322 + $0x278] sm:$0xff]
        %v3403 = vld [vmem:[%s3322 + $0x280] sm:$0xff]
        %v3404 = vld [vmem:[%s3322 + $0x288] sm:$0xff]
        %v3405 = vld [vmem:[%s3322 + $0x290] sm:$0xff]
        %v3406 = vld [vmem:[%s3322 + $0x298] sm:$0xff]
        %v3407 = vld [vmem:[%s3322 + $0x2a0] sm:$0xff]
        %v3408 = vld [vmem:[%s3322 + $0x2a8] sm:$0xff]
        %v3409 = vld [vmem:[%s3322 + $0x2b0] sm:$0xff]
        %v3410 = vld [vmem:[%s3322 + $0x2b8] sm:$0xff]
        %v3411 = vld [vmem:[%s3322 + $0x2c0] sm:$0xff]
        %v3412 = vld [vmem:[%s3322 + $0x2c8] sm:$0xff]
        %v3413 = vld [vmem:[%s3322 + $0x2d0] sm:$0xff]
        %v3414 = vld [vmem:[%s3322 + $0x2d8] sm:$0xff]
        %v3415 = vld [vmem:[%s3322 + $0x2e0] sm:$0xff]
        %v3416 = vld [vmem:[%s3322 + $0x2e8] sm:$0xff]
        %v3417 = vld [vmem:[%s3322 + $0x2f0] sm:$0xff]
        %v3418 = vld [vmem:[%s3322 + $0x2f8] sm:$0xff]
        %v3419 = vld [vmem:[%s3322 + $0x300] sm:$0xff]
        %v3420 = vld [vmem:[%s3322 + $0x308] sm:$0xff]
        %v3421 = vld [vmem:[%s3322 + $0x310] sm:$0xff]
        %v3422 = vld [vmem:[%s3322 + $0x318] sm:$0xff]
        %v3423 = vld [vmem:[%s3322 + $0x320] sm:$0xff]
        %v3424 = vld [vmem:[%s3322 + $0x328] sm:$0xff]
        %v3425 = vld [vmem:[%s3322 + $0x330] sm:$0xff]
        %v3426 = vld [vmem:[%s3322 + $0x338] sm:$0xff]
        %v3427 = vld [vmem:[%s3322 + $0x340] sm:$0xff]
        %v3428 = vld [vmem:[%s3322 + $0x348] sm:$0xff]
        %v3429 = vld [vmem:[%s3322 + $0x350] sm:$0xff]
        %v3430 = vld [vmem:[%s3322 + $0x358] sm:$0xff]
        %v3431 = vld [vmem:[%s3322 + $0x360] sm:$0xff]
        %v3432 = vld [vmem:[%s3322 + $0x368] sm:$0xff]
        %v3433 = vld [vmem:[%s3322 + $0x370] sm:$0xff]
        %v3434 = vld [vmem:[%s3322 + $0x378] sm:$0xff]
        %v3435 = vld [vmem:[%s3322 + $0x380] sm:$0xff]
        %v3436 = vld [vmem:[%s3322 + $0x388] sm:$0xff]
        %v3437 = vld [vmem:[%s3322 + $0x390] sm:$0xff]
        %v3438 = vld [vmem:[%s3322 + $0x398] sm:$0xff]
        %v3439 = vld [vmem:[%s3322 + $0x3a0] sm:$0xff]
        %v3440 = vld [vmem:[%s3322 + $0x3a8] sm:$0xff]
        %v3441 = vld [vmem:[%s3322 + $0x3b0] sm:$0xff]
        %v3442 = vld [vmem:[%s3322 + $0x3b8] sm:$0xff]
        %v3443 = vld [vmem:[%s3322 + $0x3c0] sm:$0xff]
        %v3444 = vld [vmem:[%s3322 + $0x3c8] sm:$0xff]
        %v3445 = vld [vmem:[%s3322 + $0x3d0] sm:$0xff]
        %v3446 = vld [vmem:[%s3322 + $0x3d8] sm:$0xff]
        %v3447 = vld [vmem:[%s3322 + $0x3e0] sm:$0xff]
        %v3448 = vld [vmem:[%s3322 + $0x3e8] sm:$0xff]
        %v3449 = vld [vmem:[%s3322 + $0x3f0] sm:$0xff]
        %v3450 = vld [vmem:[%s3322 + $0x3f8] sm:$0xff]
        %v3451 = vld [vmem:[%s3322 + $0x400] sm:$0xff]
        %v3452 = vld [vmem:[%s3322 + $0x408] sm:$0xff]
        %v3453 = vld [vmem:[%s3322 + $0x410] sm:$0xff]
        %v3454 = vld [vmem:[%s3322 + $0x418] sm:$0xff]
        %v3455 = vld [vmem:[%s3322 + $0x420] sm:$0xff]
        %v3456 = vld [vmem:[%s3322 + $0x428] sm:$0xff]
        %v3457 = vld [vmem:[%s3322 + $0x430] sm:$0xff]
        %v3458 = vld [vmem:[%s3322 + $0x438] sm:$0xff]
        %v3459 = vld [vmem:[%s3322 + $0x440] sm:$0xff]
        %v3460 = vld [vmem:[%s3322 + $0x448] sm:$0xff]
        %v3461 = vld [vmem:[%s3322 + $0x450] sm:$0xff]
        %v3462 = vld [vmem:[%s3322 + $0x458] sm:$0xff]
        %v3463 = vld [vmem:[%s3322 + $0x460] sm:$0xff]
        %v3464 = vld [vmem:[%s3322 + $0x468] sm:$0xff]
        %v3465 = vld [vmem:[%s3322 + $0x470] sm:$0xff]
        %v3466 = vld [vmem:[%s3322 + $0x478] sm:$0xff]
        %v3467 = vld [vmem:[%s3322 + $0x480] sm:$0xff]
        %v3468 = vld [vmem:[%s3322 + $0x488] sm:$0xff]
        %v3469 = vld [vmem:[%s3322 + $0x490] sm:$0xff]
        %v3470 = vld [vmem:[%s3322 + $0x498] sm:$0xff]
        %v3471 = vld [vmem:[%s3322 + $0x4a0] sm:$0xff]
        %v3472 = vld [vmem:[%s3322 + $0x4a8] sm:$0xff]
        %v3473 = vld [vmem:[%s3322 + $0x4b0] sm:$0xff]
        %v3474 = vld [vmem:[%s3322 + $0x4b8] sm:$0xff]
        %v3475 = vld [vmem:[%s3322 + $0x4c0] sm:$0xff]
        %v3476 = vld [vmem:[%s3322 + $0x4c8] sm:$0xff]
        %v3477 = vld [vmem:[%s3322 + $0x4d0] sm:$0xff]
        %v3478 = vld [vmem:[%s3322 + $0x4d8] sm:$0xff]
        %v3479 = vld [vmem:[%s3322 + $0x4e0] sm:$0xff]
        %v3480 = vld [vmem:[%s3322 + $0x4e8] sm:$0xff]
        %v3481 = vld [vmem:[%s3322 + $0x4f0] sm:$0xff]
        %v3482 = vld [vmem:[%s3322 + $0x4f8] sm:$0xff]
        %v3483 = vld [vmem:[%s3322 + $0x500] sm:$0xff]
        %v3484 = vld [vmem:[%s3322 + $0x508] sm:$0xff]
        %v3485 = vld [vmem:[%s3322 + $0x510] sm:$0xff]
        %v3486 = vld [vmem:[%s3322 + $0x518] sm:$0xff]
        %v3487 = vld [vmem:[%s3322 + $0x520] sm:$0xff]
        %v3488 = vld [vmem:[%s3322 + $0x528] sm:$0xff]
        %v3489 = vld [vmem:[%s3322 + $0x530] sm:$0xff]
        %v3490 = vld [vmem:[%s3322 + $0x538] sm:$0xff]
        %v3491 = vld [vmem:[%s3322 + $0x540] sm:$0xff]
        %v3492 = vld [vmem:[%s3322 + $0x548] sm:$0xff]
        %v3493 = vld [vmem:[%s3322 + $0x550] sm:$0xff]
        %v3494 = vld [vmem:[%s3322 + $0x558] sm:$0xff]
        %v3495 = vld [vmem:[%s3322 + $0x560] sm:$0xff]
        %v3496 = vld [vmem:[%s3322 + $0x568] sm:$0xff]
        %v3497 = vld [vmem:[%s3322 + $0x570] sm:$0xff]
        %v3498 = vld [vmem:[%s3322 + $0x578] sm:$0xff]
        %v3499 = vld [vmem:[%s3322 + $0x580] sm:$0xff]
        %v3500 = vld [vmem:[%s3322 + $0x588] sm:$0xff]
        %v3501 = vld [vmem:[%s3322 + $0x590] sm:$0xff]
        %v3502 = vld [vmem:[%s3322 + $0x598] sm:$0xff]
        %v3503 = vld [vmem:[%s3322 + $0x5a0] sm:$0xff]
        %v3504 = vld [vmem:[%s3322 + $0x5a8] sm:$0xff]
        %v3505 = vld [vmem:[%s3322 + $0x5b0] sm:$0xff]
        %v3506 = vld [vmem:[%s3322 + $0x5b8] sm:$0xff]
        %v3507 = vld [vmem:[%s3322 + $0x5c0] sm:$0xff]
        %v3508 = vld [vmem:[%s3322 + $0x5c8] sm:$0xff]
        %v3509 = vld [vmem:[%s3322 + $0x5d0] sm:$0xff]
        %v3510 = vld [vmem:[%s3322 + $0x5d8] sm:$0xff]
        %v3511 = vld [vmem:[%s3322 + $0x5e0] sm:$0xff]
        %v3512 = vld [vmem:[%s3322 + $0x5e8] sm:$0xff]
        %v3513 = vld [vmem:[%s3322 + $0x5f0] sm:$0xff]
        %v3514 = vld [vmem:[%s3322 + $0x5f8] sm:$0xff]
        %v3515 = vld [vmem:[%s3322 + $0x600] sm:$0xff]
        %v3516 = vld [vmem:[%s3322 + $0x608] sm:$0xff]
        %v3517 = vld [vmem:[%s3322 + $0x610] sm:$0xff]
        %v3518 = vld [vmem:[%s3322 + $0x618] sm:$0xff]
        %v3519 = vld [vmem:[%s3322 + $0x620] sm:$0xff]
        %v3520 = vld [vmem:[%s3322 + $0x628] sm:$0xff]
        %v3521 = vld [vmem:[%s3322 + $0x630] sm:$0xff]
        %v3522 = vld [vmem:[%s3322 + $0x638] sm:$0xff]
        %v3523 = vld [vmem:[%s3322 + $0x640] sm:$0xff]
        %v3524 = vld [vmem:[%s3322 + $0x648] sm:$0xff]
        %v3525 = vld [vmem:[%s3322 + $0x650] sm:$0xff]
        %v3526 = vld [vmem:[%s3322 + $0x658] sm:$0xff]
        %v3527 = vld [vmem:[%s3322 + $0x660] sm:$0xff]
        %v3528 = vld [vmem:[%s3322 + $0x668] sm:$0xff]
        %v3529 = vld [vmem:[%s3322 + $0x670] sm:$0xff]
        %v3530 = vld [vmem:[%s3322 + $0x678] sm:$0xff]
        %v3531 = vld [vmem:[%s3322 + $0x680] sm:$0xff]
        %v3532 = vld [vmem:[%s3322 + $0x688] sm:$0xff]
        %v3533 = vld [vmem:[%s3322 + $0x690] sm:$0xff]
        %v3534 = vld [vmem:[%s3322 + $0x698] sm:$0xff]
        %v3535 = vld [vmem:[%s3322 + $0x6a0] sm:$0xff]
        %v3536 = vld [vmem:[%s3322 + $0x6a8] sm:$0xff]
        %v3537 = vld [vmem:[%s3322 + $0x6b0] sm:$0xff]
        %v3538 = vld [vmem:[%s3322 + $0x6b8] sm:$0xff]
        %v3539 = vld [vmem:[%s3322 + $0x6c0] sm:$0xff]
        %v3540 = vld [vmem:[%s3322 + $0x6c8] sm:$0xff]
        %v3541 = vld [vmem:[%s3322 + $0x6d0] sm:$0xff]
        %v3542 = vld [vmem:[%s3322 + $0x6d8] sm:$0xff]
        %v3543 = vld [vmem:[%s3322 + $0x6e0] sm:$0xff]
        %v3544 = vld [vmem:[%s3322 + $0x6e8] sm:$0xff]
        %v3545 = vld [vmem:[%s3322 + $0x6f0] sm:$0xff]
        %v3546 = vld [vmem:[%s3322 + $0x6f8] sm:$0xff]
        %v3547 = vld [vmem:[%s3322 + $0x700] sm:$0xff]
        %v3548 = vld [vmem:[%s3322 + $0x708] sm:$0xff]
        %v3549 = vld [vmem:[%s3322 + $0x710] sm:$0xff]
        %v3550 = vld [vmem:[%s3322 + $0x718] sm:$0xff]
        %v3551 = vld [vmem:[%s3322 + $0x720] sm:$0xff]
        %v3552 = vld [vmem:[%s3322 + $0x728] sm:$0xff]
        %v3553 = vld [vmem:[%s3322 + $0x730] sm:$0xff]
        %v3554 = vld [vmem:[%s3322 + $0x738] sm:$0xff]
        %v3555 = vld [vmem:[%s3322 + $0x740] sm:$0xff]
        %v3556 = vld [vmem:[%s3322 + $0x748] sm:$0xff]
        %v3557 = vld [vmem:[%s3322 + $0x750] sm:$0xff]
        %v3558 = vld [vmem:[%s3322 + $0x758] sm:$0xff]
        %v3559 = vld [vmem:[%s3322 + $0x760] sm:$0xff]
        %v3560 = vld [vmem:[%s3322 + $0x768] sm:$0xff]
        %v3561 = vld [vmem:[%s3322 + $0x770] sm:$0xff]
        %v3562 = vld [vmem:[%s3322 + $0x778] sm:$0xff]
        %v3563 = vld [vmem:[%s3322 + $0x780] sm:$0xff]
        %v3564 = vld [vmem:[%s3322 + $0x788] sm:$0xff]
        %v3565 = vld [vmem:[%s3322 + $0x790] sm:$0xff]
        %v3566 = vld [vmem:[%s3322 + $0x798] sm:$0xff]
        %v3567 = vld [vmem:[%s3322 + $0x7a0] sm:$0xff]
        %v3568 = vld [vmem:[%s3322 + $0x7a8] sm:$0xff]
        %v3569 = vld [vmem:[%s3322 + $0x7b0] sm:$0xff]
        %v3570 = vld [vmem:[%s3322 + $0x7b8] sm:$0xff]
        %v3571 = vld [vmem:[%s3322 + $0x7c0] sm:$0xff]
        %v3572 = vld [vmem:[%s3322 + $0x7c8] sm:$0xff]
        %v3573 = vld [vmem:[%s3322 + $0x7d0] sm:$0xff]
        %v3574 = vld [vmem:[%s3322 + $0x7d8] sm:$0xff]
        %v3575 = vld [vmem:[%s3322 + $0x7e0] sm:$0xff]
        %v3576 = vld [vmem:[%s3322 + $0x7e8] sm:$0xff]
        %v3577 = vld [vmem:[%s3322 + $0x7f0] sm:$0xff]
        %v3578 = vld [vmem:[%s3322 + $0x7f8] sm:$0xff]
        %s3579 = scalar_lea.vmem %s22, 1
        %v3580 = vld [vmem:[%s3579] sm:$0x1]
        %v3582 = vperm.slane %v3580, 0
        %3584 = vmatpush.msra.mxu0 %v3338
        %3585 = vmatpush.msra.mxu0 %v3337
        %3586 = vmatpush.msra.mxu0 %v3336
        %3587 = vmatpush.msra.mxu0 %v3335
        %3588 = vmatpush.msra.mxu0 %v3334
        %3589 = vmatpush.msra.mxu0 %v3333
        %3590 = vmatpush.msra.mxu0 %v3332
        %3591 = vmatpush.msra.mxu0 %v3331
        %3592 = vmatpush.msra.mxu0 %v3330
        %3593 = vmatpush.msra.mxu0 %v3329
        %3594 = vmatpush.msra.mxu0 %v3328
        %3595 = vmatpush.msra.mxu0 %v3327
        %3596 = vmatpush.msra.mxu0 %v3326
        %3597 = vmatpush.msra.mxu0 %v3325
        %3598 = vmatpush.msra.mxu0 %v3324
        %3599 = vmatpush.msra.mxu0 %v3323
        %3600 = vmatmul.f32.gmra.mxu0 %v3306
        %v3601 = vpop.f32.mrf.mxu0
        %v3602 = vadd.f32 %v3582, %v3601
        %3603 = vdwg.mxu0
        %3604 = vmatpush.msra.mxu0 %v3354
        %3605 = vmatpush.msra.mxu0 %v3353
        %3606 = vmatpush.msra.mxu0 %v3352
        %3607 = vmatpush.msra.mxu0 %v3351
        %3608 = vmatpush.msra.mxu0 %v3350
        %3609 = vmatpush.msra.mxu0 %v3349
        %3610 = vmatpush.msra.mxu0 %v3348
        %3611 = vmatpush.msra.mxu0 %v3347
        %3612 = vmatpush.msra.mxu0 %v3346
        %3613 = vmatpush.msra.mxu0 %v3345
        %3614 = vmatpush.msra.mxu0 %v3344
        %3615 = vmatpush.msra.mxu0 %v3343
        %3616 = vmatpush.msra.mxu0 %v3342
        %3617 = vmatpush.msra.mxu0 %v3341
        %3618 = vmatpush.msra.mxu0 %v3340
        %3619 = vmatpush.msra.mxu0 %v3339
        %3620 = vmatmul.f32.gmra.mxu0 %v3307
        %v3621 = vpop.f32.mrf.mxu0
        %v3622 = vadd.f32 %v3602, %v3621
        %3623 = vdwg.mxu0
        %3624 = vmatpush.msra.mxu0 %v3370
        %3625 = vmatpush.msra.mxu0 %v3369
        %3626 = vmatpush.msra.mxu0 %v3368
        %3627 = vmatpush.msra.mxu0 %v3367
        %3628 = vmatpush.msra.mxu0 %v3366
        %3629 = vmatpush.msra.mxu0 %v3365
        %3630 = vmatpush.msra.mxu0 %v3364
        %3631 = vmatpush.msra.mxu0 %v3363
        %3632 = vmatpush.msra.mxu0 %v3362
        %3633 = vmatpush.msra.mxu0 %v3361
        %3634 = vmatpush.msra.mxu0 %v3360
        %3635 = vmatpush.msra.mxu0 %v3359
        %3636 = vmatpush.msra.mxu0 %v3358
        %3637 = vmatpush.msra.mxu0 %v3357
        %3638 = vmatpush.msra.mxu0 %v3356
        %3639 = vmatpush.msra.mxu0 %v3355
        %3640 = vmatmul.f32.gmra.mxu0 %v3308
        %v3641 = vpop.f32.mrf.mxu0
        %v3642 = vadd.f32 %v3622, %v3641
        %3643 = vdwg.mxu0
        %3644 = vmatpush.msra.mxu0 %v3386
        %3645 = vmatpush.msra.mxu0 %v3385
        %3646 = vmatpush.msra.mxu0 %v3384
        %3647 = vmatpush.msra.mxu0 %v3383
        %3648 = vmatpush.msra.mxu0 %v3382
        %3649 = vmatpush.msra.mxu0 %v3381
        %3650 = vmatpush.msra.mxu0 %v3380
        %3651 = vmatpush.msra.mxu0 %v3379
        %3652 = vmatpush.msra.mxu0 %v3378
        %3653 = vmatpush.msra.mxu0 %v3377
        %3654 = vmatpush.msra.mxu0 %v3376
        %3655 = vmatpush.msra.mxu0 %v3375
        %3656 = vmatpush.msra.mxu0 %v3374
        %3657 = vmatpush.msra.mxu0 %v3373
        %3658 = vmatpush.msra.mxu0 %v3372
        %3659 = vmatpush.msra.mxu0 %v3371
        %3660 = vmatmul.f32.gmra.mxu0 %v3309
        %v3661 = vpop.f32.mrf.mxu0
        %v3662 = vadd.f32 %v3642, %v3661
        %3663 = vdwg.mxu0
        %3664 = vmatpush.msra.mxu0 %v3402
        %3665 = vmatpush.msra.mxu0 %v3401
        %3666 = vmatpush.msra.mxu0 %v3400
        %3667 = vmatpush.msra.mxu0 %v3399
        %3668 = vmatpush.msra.mxu0 %v3398
        %3669 = vmatpush.msra.mxu0 %v3397
        %3670 = vmatpush.msra.mxu0 %v3396
        %3671 = vmatpush.msra.mxu0 %v3395
        %3672 = vmatpush.msra.mxu0 %v3394
        %3673 = vmatpush.msra.mxu0 %v3393
        %3674 = vmatpush.msra.mxu0 %v3392
        %3675 = vmatpush.msra.mxu0 %v3391
        %3676 = vmatpush.msra.mxu0 %v3390
        %3677 = vmatpush.msra.mxu0 %v3389
        %3678 = vmatpush.msra.mxu0 %v3388
        %3679 = vmatpush.msra.mxu0 %v3387
        %3680 = vmatmul.f32.gmra.mxu0 %v3310
        %v3681 = vpop.f32.mrf.mxu0
        %v3682 = vadd.f32 %v3662, %v3681
        %3683 = vdwg.mxu0
        %3684 = vmatpush.msra.mxu0 %v3418
        %3685 = vmatpush.msra.mxu0 %v3417
        %3686 = vmatpush.msra.mxu0 %v3416
        %3687 = vmatpush.msra.mxu0 %v3415
        %3688 = vmatpush.msra.mxu0 %v3414
        %3689 = vmatpush.msra.mxu0 %v3413
        %3690 = vmatpush.msra.mxu0 %v3412
        %3691 = vmatpush.msra.mxu0 %v3411
        %3692 = vmatpush.msra.mxu0 %v3410
        %3693 = vmatpush.msra.mxu0 %v3409
        %3694 = vmatpush.msra.mxu0 %v3408
        %3695 = vmatpush.msra.mxu0 %v3407
        %3696 = vmatpush.msra.mxu0 %v3406
        %3697 = vmatpush.msra.mxu0 %v3405
        %3698 = vmatpush.msra.mxu0 %v3404
        %3699 = vmatpush.msra.mxu0 %v3403
        %3700 = vmatmul.f32.gmra.mxu0 %v3311
        %v3701 = vpop.f32.mrf.mxu0
        %v3702 = vadd.f32 %v3682, %v3701
        %3703 = vdwg.mxu0
        %3704 = vmatpush.msra.mxu0 %v3434
        %3705 = vmatpush.msra.mxu0 %v3433
        %3706 = vmatpush.msra.mxu0 %v3432
        %3707 = vmatpush.msra.mxu0 %v3431
        %3708 = vmatpush.msra.mxu0 %v3430
        %3709 = vmatpush.msra.mxu0 %v3429
        %3710 = vmatpush.msra.mxu0 %v3428
        %3711 = vmatpush.msra.mxu0 %v3427
        %3712 = vmatpush.msra.mxu0 %v3426
        %3713 = vmatpush.msra.mxu0 %v3425
        %3714 = vmatpush.msra.mxu0 %v3424
        %3715 = vmatpush.msra.mxu0 %v3423
        %3716 = vmatpush.msra.mxu0 %v3422
        %3717 = vmatpush.msra.mxu0 %v3421
        %3718 = vmatpush.msra.mxu0 %v3420
        %3719 = vmatpush.msra.mxu0 %v3419
        %3720 = vmatmul.f32.gmra.mxu0 %v3312
        %v3721 = vpop.f32.mrf.mxu0
        %v3722 = vadd.f32 %v3702, %v3721
        %3723 = vdwg.mxu0
        %3724 = vmatpush.msra.mxu0 %v3450
        %3725 = vmatpush.msra.mxu0 %v3449
        %3726 = vmatpush.msra.mxu0 %v3448
        %3727 = vmatpush.msra.mxu0 %v3447
        %3728 = vmatpush.msra.mxu0 %v3446
        %3729 = vmatpush.msra.mxu0 %v3445
        %3730 = vmatpush.msra.mxu0 %v3444
        %3731 = vmatpush.msra.mxu0 %v3443
        %3732 = vmatpush.msra.mxu0 %v3442
        %3733 = vmatpush.msra.mxu0 %v3441
        %3734 = vmatpush.msra.mxu0 %v3440
        %3735 = vmatpush.msra.mxu0 %v3439
        %3736 = vmatpush.msra.mxu0 %v3438
        %3737 = vmatpush.msra.mxu0 %v3437
        %3738 = vmatpush.msra.mxu0 %v3436
        %3739 = vmatpush.msra.mxu0 %v3435
        %3740 = vmatmul.f32.gmra.mxu0 %v3313
        %v3741 = vpop.f32.mrf.mxu0
        %v3742 = vadd.f32 %v3722, %v3741
        %3743 = vdwg.mxu0
        %3744 = vmatpush.msra.mxu0 %v3466
        %3745 = vmatpush.msra.mxu0 %v3465
        %3746 = vmatpush.msra.mxu0 %v3464
        %3747 = vmatpush.msra.mxu0 %v3463
        %3748 = vmatpush.msra.mxu0 %v3462
        %3749 = vmatpush.msra.mxu0 %v3461
        %3750 = vmatpush.msra.mxu0 %v3460
        %3751 = vmatpush.msra.mxu0 %v3459
        %3752 = vmatpush.msra.mxu0 %v3458
        %3753 = vmatpush.msra.mxu0 %v3457
        %3754 = vmatpush.msra.mxu0 %v3456
        %3755 = vmatpush.msra.mxu0 %v3455
        %3756 = vmatpush.msra.mxu0 %v3454
        %3757 = vmatpush.msra.mxu0 %v3453
        %3758 = vmatpush.msra.mxu0 %v3452
        %3759 = vmatpush.msra.mxu0 %v3451
        %3760 = vmatmul.f32.gmra.mxu0 %v3314
        %v3761 = vpop.f32.mrf.mxu0
        %v3762 = vadd.f32 %v3742, %v3761
        %3763 = vdwg.mxu0
        %3764 = vmatpush.msra.mxu0 %v3482
        %3765 = vmatpush.msra.mxu0 %v3481
        %3766 = vmatpush.msra.mxu0 %v3480
        %3767 = vmatpush.msra.mxu0 %v3479
        %3768 = vmatpush.msra.mxu0 %v3478
        %3769 = vmatpush.msra.mxu0 %v3477
        %3770 = vmatpush.msra.mxu0 %v3476
        %3771 = vmatpush.msra.mxu0 %v3475
        %3772 = vmatpush.msra.mxu0 %v3474
        %3773 = vmatpush.msra.mxu0 %v3473
        %3774 = vmatpush.msra.mxu0 %v3472
        %3775 = vmatpush.msra.mxu0 %v3471
        %3776 = vmatpush.msra.mxu0 %v3470
        %3777 = vmatpush.msra.mxu0 %v3469
        %3778 = vmatpush.msra.mxu0 %v3468
        %3779 = vmatpush.msra.mxu0 %v3467
        %3780 = vmatmul.f32.gmra.mxu0 %v3315
        %v3781 = vpop.f32.mrf.mxu0
        %v3782 = vadd.f32 %v3762, %v3781
        %3783 = vdwg.mxu0
        %3784 = vmatpush.msra.mxu0 %v3498
        %3785 = vmatpush.msra.mxu0 %v3497
        %3786 = vmatpush.msra.mxu0 %v3496
        %3787 = vmatpush.msra.mxu0 %v3495
        %3788 = vmatpush.msra.mxu0 %v3494
        %3789 = vmatpush.msra.mxu0 %v3493
        %3790 = vmatpush.msra.mxu0 %v3492
        %3791 = vmatpush.msra.mxu0 %v3491
        %3792 = vmatpush.msra.mxu0 %v3490
        %3793 = vmatpush.msra.mxu0 %v3489
        %3794 = vmatpush.msra.mxu0 %v3488
        %3795 = vmatpush.msra.mxu0 %v3487
        %3796 = vmatpush.msra.mxu0 %v3486
        %3797 = vmatpush.msra.mxu0 %v3485
        %3798 = vmatpush.msra.mxu0 %v3484
        %3799 = vmatpush.msra.mxu0 %v3483
        %3800 = vmatmul.f32.gmra.mxu0 %v3316
        %v3801 = vpop.f32.mrf.mxu0
        %v3802 = vadd.f32 %v3782, %v3801
        %3803 = vdwg.mxu0
        %3804 = vmatpush.msra.mxu0 %v3514
        %3805 = vmatpush.msra.mxu0 %v3513
        %3806 = vmatpush.msra.mxu0 %v3512
        %3807 = vmatpush.msra.mxu0 %v3511
        %3808 = vmatpush.msra.mxu0 %v3510
        %3809 = vmatpush.msra.mxu0 %v3509
        %3810 = vmatpush.msra.mxu0 %v3508
        %3811 = vmatpush.msra.mxu0 %v3507
        %3812 = vmatpush.msra.mxu0 %v3506
        %3813 = vmatpush.msra.mxu0 %v3505
        %3814 = vmatpush.msra.mxu0 %v3504
        %3815 = vmatpush.msra.mxu0 %v3503
        %3816 = vmatpush.msra.mxu0 %v3502
        %3817 = vmatpush.msra.mxu0 %v3501
        %3818 = vmatpush.msra.mxu0 %v3500
        %3819 = vmatpush.msra.mxu0 %v3499
        %3820 = vmatmul.f32.gmra.mxu0 %v3317
        %v3821 = vpop.f32.mrf.mxu0
        %v3822 = vadd.f32 %v3802, %v3821
        %3823 = vdwg.mxu0
        %3824 = vmatpush.msra.mxu0 %v3530
        %3825 = vmatpush.msra.mxu0 %v3529
        %3826 = vmatpush.msra.mxu0 %v3528
        %3827 = vmatpush.msra.mxu0 %v3527
        %3828 = vmatpush.msra.mxu0 %v3526
        %3829 = vmatpush.msra.mxu0 %v3525
        %3830 = vmatpush.msra.mxu0 %v3524
        %3831 = vmatpush.msra.mxu0 %v3523
        %3832 = vmatpush.msra.mxu0 %v3522
        %3833 = vmatpush.msra.mxu0 %v3521
        %3834 = vmatpush.msra.mxu0 %v3520
        %3835 = vmatpush.msra.mxu0 %v3519
        %3836 = vmatpush.msra.mxu0 %v3518
        %3837 = vmatpush.msra.mxu0 %v3517
        %3838 = vmatpush.msra.mxu0 %v3516
        %3839 = vmatpush.msra.mxu0 %v3515
        %3840 = vmatmul.f32.gmra.mxu0 %v3318
        %v3841 = vpop.f32.mrf.mxu0
        %v3842 = vadd.f32 %v3822, %v3841
        %3843 = vdwg.mxu0
        %3844 = vmatpush.msra.mxu0 %v3546
        %3845 = vmatpush.msra.mxu0 %v3545
        %3846 = vmatpush.msra.mxu0 %v3544
        %3847 = vmatpush.msra.mxu0 %v3543
        %3848 = vmatpush.msra.mxu0 %v3542
        %3849 = vmatpush.msra.mxu0 %v3541
        %3850 = vmatpush.msra.mxu0 %v3540
        %3851 = vmatpush.msra.mxu0 %v3539
        %3852 = vmatpush.msra.mxu0 %v3538
        %3853 = vmatpush.msra.mxu0 %v3537
        %3854 = vmatpush.msra.mxu0 %v3536
        %3855 = vmatpush.msra.mxu0 %v3535
        %3856 = vmatpush.msra.mxu0 %v3534
        %3857 = vmatpush.msra.mxu0 %v3533
        %3858 = vmatpush.msra.mxu0 %v3532
        %3859 = vmatpush.msra.mxu0 %v3531
        %3860 = vmatmul.f32.gmra.mxu0 %v3319
        %v3861 = vpop.f32.mrf.mxu0
        %v3862 = vadd.f32 %v3842, %v3861
        %3863 = vdwg.mxu0
        %3864 = vmatpush.msra.mxu0 %v3562
        %3865 = vmatpush.msra.mxu0 %v3561
        %3866 = vmatpush.msra.mxu0 %v3560
        %3867 = vmatpush.msra.mxu0 %v3559
        %3868 = vmatpush.msra.mxu0 %v3558
        %3869 = vmatpush.msra.mxu0 %v3557
        %3870 = vmatpush.msra.mxu0 %v3556
        %3871 = vmatpush.msra.mxu0 %v3555
        %3872 = vmatpush.msra.mxu0 %v3554
        %3873 = vmatpush.msra.mxu0 %v3553
        %3874 = vmatpush.msra.mxu0 %v3552
        %3875 = vmatpush.msra.mxu0 %v3551
        %3876 = vmatpush.msra.mxu0 %v3550
        %3877 = vmatpush.msra.mxu0 %v3549
        %3878 = vmatpush.msra.mxu0 %v3548
        %3879 = vmatpush.msra.mxu0 %v3547
        %3880 = vmatmul.f32.gmra.mxu0 %v3320
        %v3881 = vpop.f32.mrf.mxu0
        %v3882 = vadd.f32 %v3862, %v3881
        %3883 = vdwg.mxu0
        %3884 = vmatpush.msra.mxu0 %v3578
        %3885 = vmatpush.msra.mxu0 %v3577
        %3886 = vmatpush.msra.mxu0 %v3576
        %3887 = vmatpush.msra.mxu0 %v3575
        %3888 = vmatpush.msra.mxu0 %v3574
        %3889 = vmatpush.msra.mxu0 %v3573
        %3890 = vmatpush.msra.mxu0 %v3572
        %3891 = vmatpush.msra.mxu0 %v3571
        %3892 = vmatpush.msra.mxu0 %v3570
        %3893 = vmatpush.msra.mxu0 %v3569
        %3894 = vmatpush.msra.mxu0 %v3568
        %3895 = vmatpush.msra.mxu0 %v3567
        %3896 = vmatpush.msra.mxu0 %v3566
        %3897 = vmatpush.msra.mxu0 %v3565
        %3898 = vmatpush.msra.mxu0 %v3564
        %3899 = vmatpush.msra.mxu0 %v3563
        %3900 = vmatmul.f32.gmra.mxu0 %v3321
        %v3901 = vpop.f32.mrf.mxu0
        %v3902 = vadd.f32 %v3882, %v3901
        %3903 = vdwg.mxu0
        %v3904 = vadd.f32 %v2880, %v3902
        %s3905 = scalar_lea.vmem %s17, 1
        %v3906 = vld [vmem:[%s3905] sm:$0x1]
        %s3907 = scalar_lea.vmem %s18, 1
        %v3908 = vld [vmem:[%s3907] sm:$0x1]
        %v3909 = vsel %vm860, %v3904, 0.0
        %3910 = vadd.xlane.f32.xlu0 %v3909
        %v3911 = vpop.xlane.xlu0 %3910
        %v3912 = vmul.f32 %v3911, %v1248
        %v3913 = vsub.f32 %v3904, %v3912
        %v3914 = vmul.f32 %v3913, %v3913
        %v3915 = vsel %vm860, %v3914, 0.0
        %3916 = vadd.xlane.f32.xlu0 %v3915
        %v3917 = vpop.xlane.xlu0 %3916
        %v3918 = vmul.f32 %v3917, %v1248
        %v3919 = vadd.f32 %v3918, 1e-05
        %v3920 = vrsqrt.pop %v3919
        %v3921 = vmul.f32 %v3920, %v3919
        %v3922 = vmul.f32 %v3921, %v3920
        %v3923 = vmul.f32 0.5, %v3922
        %v3924 = vsub.f32 1.5, %v3923
        %v3925 = vmul.f32 %v3920, %v3924
        %vm3926 = vweird.f32 %v3919
        %vm3927 = vweird.f32 %v3920
        %vm3928 = vmor %vm3926, %vm3927
        %v3929 = vsel %vm3928, %v3920, %v3925
        %v3930 = vmul.f32 %v3913, %v3929
        %v3932 = vperm.slane %v3906, 0
        %v3934 = vmul.f32 %v3930, %v3932
        %v3936 = vperm.slane %v3908, 0
        %v3938 = vadd.f32 %v3934, %v3936
        %v3939 = vld [vmem:[%s23] sm:$0x1]
        %v3940 = vld [vmem:[%s24] sm:$0x1]
        %v3941 = vsel %vm860, %v3938, 0.0
        %3942 = vadd.xlane.f32.xlu0 %v3941
        %v3943 = vpop.xlane.xlu0 %3942
        %v3944 = vmul.f32 %v3943, %v1248
        %v3945 = vsub.f32 %v3938, %v3944
        %v3946 = vmul.f32 %v3945, %v3945
        %v3947 = vsel %vm860, %v3946, 0.0
        %3948 = vadd.xlane.f32.xlu0 %v3947
        %v3949 = vpop.xlane.xlu0 %3948
        %v3950 = vmul.f32 %v3949, %v1248
        %v3951 = vadd.f32 %v3950, 1e-05
        %v3952 = vrsqrt.pop %v3951
        %v3953 = vmul.f32 %v3952, %v3951
        %v3954 = vmul.f32 %v3953, %v3952
        %v3955 = vmul.f32 0.5, %v3954
        %v3956 = vsub.f32 1.5, %v3955
        %v3957 = vmul.f32 %v3952, %v3956
        %vm3958 = vweird.f32 %v3951
        %vm3959 = vweird.f32 %v3952
        %vm3960 = vmor %vm3958, %vm3959
        %v3961 = vsel %vm3960, %v3952, %v3957
        %v3962 = vmul.f32 %v3945, %v3961
        %v3964 = vperm.slane %v3939, 0
        %v3966 = vmul.f32 %v3962, %v3964
        %v3968 = vperm.slane %v3940, 0
        %v3970 = vadd.f32 %v3966, %v3968
        %v3971 = vld [vmem:[%s25] sm:$0xff]
        %v3972 = vld [vmem:[%s25 + $0x8] sm:$0xff]
        %v3973 = vld [vmem:[%s25 + $0x10] sm:$0xff]
        %v3974 = vld [vmem:[%s25 + $0x18] sm:$0xff]
        %v3975 = vld [vmem:[%s26] sm:$0x1]
        %v3977 = vperm.slane %v3975, 0
        %v3980 = vsel %vm860, %v3970, 0
        %3982 = vmatpush.msra.mxu0 0.0
        %3983 = vmatpush.msra.mxu0 0.0
        %3984 = vmatpush.msra.mxu0 0.0
        %3985 = vmatpush.msra.mxu0 0.0
        %3986 = vmatpush.msra.mxu0 0.0
        %3987 = vmatpush.msra.mxu0 0.0
        %3988 = vmatpush.msra.mxu0 0.0
        %3989 = vmatpush.msra.mxu0 0.0
        %3990 = vmatpush.msra.mxu0 0.0
        %3991 = vmatpush.msra.mxu0 0.0
        %3992 = vmatpush.msra.mxu0 0.0
        %3993 = vmatpush.msra.mxu0 0.0
        %3994 = vmatpush.msra.mxu0 %v3974
        %3995 = vmatpush.msra.mxu0 %v3973
        %3996 = vmatpush.msra.mxu0 %v3972
        %3997 = vmatpush.msra.mxu0 %v3971
        %3998 = vmatmul.f32.gmra.mxu0 %v3980
        %v3999 = vpop.f32.mrf.mxu0
        %v4000 = vadd.f32 %v3977, %v3999
        %4001 = vdwg.mxu0
        %4002 = vst [vmem:[%s831] sm:$0xff] %v4000
        %s4003 = sand.u32 %s631, 1
        %s4004 = scalar_lea.sflag [#allocation3], %s4003
        %s4005 = sand.u32 %s631, 1
        %s4006 = smul.addr %s4005, 8
        %s4007 = scalar_lea.vmem [#allocation2], %s4006
        // Predicated region
        $region129: #{rnaformer_forward.1} parent=127 // pred_check
          %p4008 = pneg %p641
        $region130: #{rnaformer_forward.1} parent=127 // pred_check_branch
          %4010 = sbr.rel (%p4008) target = $region132
        $region131: #{rnaformer_forward.1} parent=127 // pred_region
          %4012 = vsyncadd %s4004, 0
          %s4013 = smul.addr %s41, 8
          %s4014 = scalar_lea.hbm %s27, %s4013
          %s4016 = sshll.u32 %s4007, 4
          %s4017 = int_to_ptr.vmem [resolvable:$true] %s4016
          %s4018 = sshll.u32 %s4014, 4
          %s4019 = int_to_ptr.hbm [resolvable:$true] %s4018
          %4021 = dma.vmem_to_hbm [thread:$0]  %s4017, 128, %s4019, %s4004
        $region132: #{rnaformer_forward.1} parent=127 // pred_fallthru
          _
      $region128: #{rnaformer_forward.1} parent=5 // pred_fallthru
        _
      %p4022 = scmp.le.s32.totalorder 2, %s36
      // Predicated region
      $region133: #{rnaformer_forward.1} parent=5 // pred_check
        %p4023 = pneg %p4022
      $region134: #{rnaformer_forward.1} parent=5 // pred_check_branch
        %4025 = sbr.rel (%p4023) target = $region136
      $region135: #{rnaformer_forward.1} parent=5 // pred_region
        %s4026 = ssub.s32 %s36, 2
        // Predicated region
        $region137: #{rnaformer_forward.1} parent=135 // pred_check
          %p4027 = pneg %p647
        $region138: #{rnaformer_forward.1} parent=135 // pred_check_branch
          %4029 = sbr.rel (%p4027) target = $region140
        $region139: #{rnaformer_forward.1} parent=135 // pred_region
          %s4030 = sand.u32 %s632, 1
          %s4031 = scalar_lea.sflag [#allocation3], %s4030
          %s4032 = sand.u32 %s632, 1
          %s4033 = smul.addr %s4032, 8
          %s4034 = scalar_lea.vmem [#allocation2], %s4033
          %4036 = dma.done %s4031, 128
        $region140: #{rnaformer_forward.1} parent=135 // pred_fallthru
          _
      $region136: #{rnaformer_forward.1} parent=5 // pred_fallthru
        _
    $region6: #{rnaformer_forward.1} parent=1 // loop_footer
      %s40 = sadd.s32 1, %s36
    $region7: #{rnaformer_forward.1} parent=1 // loop_footer_branch
      %35 = sbr.rel target = $region3
    $region8: #{rnaformer_forward.1} parent=1 // loop_exit
      _
    %4037 = vsyncpa [#allocation3], 1
    %s4038 = scalar_lea.sflag [#allocation3], 1
    %4039 = vsyncpa %s4038, 1

</llo_original>
